<compile_context>
chip_gen: v6e
topology: v6e:2x2x1
jax: 0.10.0
libtpu: 0.0.40
codegen_flags: <defaults>
</compile_context>

<pallas_src>
import jax
import jax.numpy as jnp
from jax import lax
from jax.experimental import pallas as pl
from jax.experimental.pallas import tpu as pltpu


def _lstm_gates(z, c_prev):
    """PyTorch LSTM cell update from pre-activations z=(B,4H), gate order i,f,g,o."""
    H = c_prev.shape[-1]
    i = jax.nn.sigmoid(z[:, 0 * H:1 * H])
    f = jax.nn.sigmoid(z[:, 1 * H:2 * H])
    g = jnp.tanh(z[:, 2 * H:3 * H])
    o = jax.nn.sigmoid(z[:, 3 * H:4 * H])
    c = f * c_prev + i * g
    h = o * jnp.tanh(c)
    return h, c


def stage4_kernel(g1_ref,            # (T, B, 4H) bf16: hoisted input0 @ Wih1 + b1
                  x1_ref,            # (T, B, H)  f32 : residual stream (input1)
                  mask_ref,          # (T, B, H)  bf16: dropout keep-mask * 1/(1-p)
                  whh1_hbm,          # (H, 4H)    int8 HBM: LSTM#1 recurrent weights
                  wih2_hbm,          # (H, 4H)    int8 HBM: LSTM#2 input weights
                  whh2_hbm,          # (H, 4H)    int8 HBM: LSTM#2 recurrent weights
                  aux_ref,           # (4, 4H)    f32: [s_hh1; s_ih2; s_hh2; b2]
                  out_ref,           # (T, B, H)  f32
                  whh1_v, wih2_v, whh2_v,   # int8 VMEM scratch (resident weights)
                  h1, c1, h2, c2,           # f32 VMEM scratch (B, H), persist over grid
                  dma_sem):                 # DMA semaphores (3,)
    step = pl.program_id(0)

    @pl.when(step == 0)
    def _():
        # One-time: pull int8 weights into VMEM scratch (resident for the whole
        # grid; never re-DMA'd, never double-buffered) and zero the LSTM state.
        copies = (pltpu.make_async_copy(whh1_hbm, whh1_v, dma_sem.at[0]),
                  pltpu.make_async_copy(wih2_hbm, wih2_v, dma_sem.at[1]),
                  pltpu.make_async_copy(whh2_hbm, whh2_v, dma_sem.at[2]))
        for cp in copies:
            cp.start()
        h1[...] = jnp.zeros_like(h1)
        c1[...] = jnp.zeros_like(c1)
        h2[...] = jnp.zeros_like(h2)
        c2[...] = jnp.zeros_like(c2)
        for cp in copies:
            cp.wait()

    T = g1_ref.shape[0]
    s_hh1 = aux_ref[0:1, :]
    s_ih2 = aux_ref[1:2, :]
    s_hh2 = aux_ref[2:3, :]
    b2 = aux_ref[3:4, :]

    def timestep(t, carry):
        # ---- LSTM #2 recurrent half FIRST: depends only on last step's h2, so
        # its weight stream overlaps layer-1's dot, gate math and dropout. ----
        z2_hh = jnp.dot(h2[...].astype(jnp.bfloat16),
                        whh2_v[...].astype(jnp.bfloat16),
                        preferred_element_type=jnp.float32) * s_hh2

        # ---- layer2 = LSTM #1 (input projection g1 hoisted out of kernel) ----
        z1 = jnp.dot(h1[...].astype(jnp.bfloat16),
                     whh1_v[...].astype(jnp.bfloat16),
                     preferred_element_type=jnp.float32) * s_hh1
        z1 = z1 + g1_ref[t].astype(jnp.float32)
        h1_new, c1_new = _lstm_gates(z1, c1[...])
        h1[...] = h1_new
        c1[...] = c1_new

        out3 = h1_new + x1_ref[t]                        # residual add (f32)
        out5 = out3 * mask_ref[t].astype(jnp.float32)    # inverted dropout

        # ---- layer6 = LSTM #2 input half + gates ----
        z2 = z2_hh + b2 + jnp.dot(out5.astype(jnp.bfloat16),
                                  wih2_v[...].astype(jnp.bfloat16),
                                  preferred_element_type=jnp.float32) * s_ih2
        h2_new, c2_new = _lstm_gates(z2, c2[...])
        h2[...] = h2_new
        c2[...] = c2_new

        out_ref[t] = (h2_new + out3).astype(out_ref.dtype)
        return carry

    # Short fixed trip count: fully unrolled for LLO scheduler visibility.
    lax.fori_loop(0, T, timestep, 0, unroll=True)


def _quantize_int8(w):
    """Symmetric per-output-column int8 quantization: w ~= q * scale, scale (1,4H)."""
    amax = jnp.max(jnp.abs(w), axis=0, keepdims=True)
    scale = jnp.maximum(amax, 1e-12) / 127.0
    q = jnp.clip(jnp.round(w / scale), -127.0, 127.0).astype(jnp.int8)
    return q, scale.astype(jnp.float32)


def _dropout_mask(key, p, shape):
    keep = jax.random.bernoulli(key, 1.0 - p, shape)
    return keep.astype(jnp.float32) * (1.0 / (1.0 - p))


def stage4_forward(input1, input0, params, dropout_key, *, p=0.2,
                   training=True, block_T=4):
    """input1, input0: (S, B, H) f32.  params: see init_params."""
    S, B, H = input0.shape
    assert input1.shape == (S, B, H)
    wih1, whh1, b1, wih2, whh2, b2 = params

    # Timesteps per grid step: largest divisor of S that is <= block_T.
    T = max(t for t in range(1, min(block_T, S) + 1) if S % t == 0)

    # Hoisted, time-parallel input projection of LSTM #1 (one big GEMM with
    # M = S*B: full MXU efficiency), streamed into the kernel as bf16.
    g1 = jnp.einsum("sbh,hg->sbg",
                    input0.astype(jnp.bfloat16), wih1.astype(jnp.bfloat16),
                    preferred_element_type=jnp.float32) + b1
    g1 = g1.astype(jnp.bfloat16)                                    # (S, B, 4H)

    # Dropout keep-mask, pre-scaled by 1/(1-p) (training) or identity (eval).
    if training:
        mask = _dropout_mask(dropout_key, p, (S, B, H))
    else:
        mask = jnp.ones((S, B, H), jnp.float32)
    mask = mask.astype(jnp.bfloat16)

    # int8 recurrent weights + per-column scales (resident in VMEM all grid).
    whh1_q, s_hh1 = _quantize_int8(whh1)
    wih2_q, s_ih2 = _quantize_int8(wih2)
    whh2_q, s_hh2 = _quantize_int8(whh2)
    aux = jnp.concatenate([s_hh1, s_ih2, s_hh2, b2], axis=0)        # (4, 4H) f32

    tsl_h = pl.BlockSpec((T, B, H), lambda s: (s, 0, 0))
    tsl_4h = pl.BlockSpec((T, B, 4 * H), lambda s: (s, 0, 0))
    aux_spec = pl.BlockSpec((4, 4 * H), lambda s: (0, 0))
    hbm = pl.BlockSpec(memory_space=pl.ANY)

    return pl.pallas_call(
        stage4_kernel,
        out_shape=jax.ShapeDtypeStruct((S, B, H), jnp.float32),
        grid=(S // T,),
        in_specs=[tsl_4h, tsl_h, tsl_h, hbm, hbm, hbm, aux_spec],
        out_specs=tsl_h,
        scratch_shapes=[
            pltpu.VMEM((H, 4 * H), jnp.int8),      # W_hh  LSTM #1 (layer2)
            pltpu.VMEM((H, 4 * H), jnp.int8),      # W_ih  LSTM #2 (layer6)
            pltpu.VMEM((H, 4 * H), jnp.int8),      # W_hh  LSTM #2 (layer6)
            pltpu.VMEM((B, H), jnp.float32),       # h1
            pltpu.VMEM((B, H), jnp.float32),       # c1
            pltpu.VMEM((B, H), jnp.float32),       # h2
            pltpu.VMEM((B, H), jnp.float32),       # c2
            pltpu.SemaphoreType.DMA((3,)),
        ],
        compiler_params=pltpu.CompilerParams(
            dimension_semantics=("arbitrary",),    # sequential recurrence
            vmem_limit_bytes=48 * 1024 * 1024,     # safe on v7x (64 MiB/TC)
        ),
    )(g1, input1, mask, whh1_q, wih2_q, whh2_q, aux)


def init_params(key, hidden):
    """Deterministic PyTorch-style LSTM init: U(-1/sqrt(H), 1/sqrt(H)).
    Weights stored pre-transposed as (H_in, 4H); biases are b_ih + b_hh."""
    k = 1.0 / jnp.sqrt(hidden)
    keys = jax.random.split(key, 8)

    def u(kk, shape):
        return jax.random.uniform(kk, shape, jnp.float32, minval=-k, maxval=k)

    wih1 = u(keys[0], (hidden, 4 * hidden))
    whh1 = u(keys[1], (hidden, 4 * hidden))
    b1 = u(keys[2], (1, 4 * hidden)) + u(keys[3], (1, 4 * hidden))
    wih2 = u(keys[4], (hidden, 4 * hidden))
    whh2 = u(keys[5], (hidden, 4 * hidden))
    b2 = u(keys[6], (1, 4 * hidden)) + u(keys[7], (1, 4 * hidden))
    return (wih1, whh1, b1, wih2, whh2, b2)


def stage4_reference(input1, input0, params, mask):
    """Pure-JAX f32 reference (same weights / mask as the kernel)."""
    wih1, whh1, b1, wih2, whh2, b2 = params
    S, B, H = input0.shape

    def lstm(x_seq, wih, whh, b):
        def step(carry, x_t):
            h, c = carry
            z = x_t @ wih + h @ whh + b
            h, c = _lstm_gates(z, c)
            return (h, c), h
        init = (jnp.zeros((B, H), jnp.float32), jnp.zeros((B, H), jnp.float32))
        _, ys = lax.scan(step, init, x_seq)
        return ys

    out3 = lstm(input0, wih1, whh1, b1) + input1
    out5 = out3 * mask
    out7 = lstm(out5, wih2, whh2, b2) + out3
    return out7


if __name__ == "__main__":
    # Small shapes consistent with the module (real model: S x B x 1024).
    S, B, H = 8, 16, 128
    key = jax.random.PRNGKey(0)
    k1, k2, kp, kd = jax.random.split(key, 4)

    input1 = jax.random.normal(k1, (S, B, H), jnp.float32)   # residual stream
    input0 = jax.random.normal(k2, (S, B, H), jnp.float32)   # LSTM input stream
    params = init_params(kp, H)

    out = stage4_forward(input1, input0, params, kd, block_T=4)
    out = jax.block_until_ready(out)
    assert out.shape == (S, B, H) and out.dtype == jnp.float32
    assert bool(jnp.all(jnp.isfinite(out)))

    # Cross-check against a pure-JAX f32 reference using the SAME dequantized
    # recurrent weights and the SAME dropout mask (remaining difference is the
    # kernel's bf16 activation / g1 rounding -> generous tolerance).
    wih1, whh1, b1, wih2, whh2, b2 = params
    deq = lambda w: (lambda q, s: q.astype(jnp.float32) * s)(*_quantize_int8(w))
    params_deq = (wih1, deq(whh1), b1, deq(wih2), deq(whh2), b2)
    mask_f32 = _dropout_mask(kd, 0.2, (S, B, H))
    ref = stage4_reference(input1, input0, params_deq, mask_f32)
    err = float(jnp.max(jnp.abs(out - ref)))
    assert err < 0.15, f"max abs error vs reference too large: {err}"
    print("KERNEL_OK")
</pallas_src>

<mosaic_0001>
module attributes {stable_mosaic.version = 11 : i64} {
  func.func @stage4_kernel(%arg0: i32, %arg1: memref<4x16x512xbf16, #tpu.memory_space<vmem>>, %arg2: memref<4x16x128xf32, #tpu.memory_space<vmem>>, %arg3: memref<4x16x128xbf16, #tpu.memory_space<vmem>>, %arg4: memref<128x512xi8, #tpu.memory_space<any>>, %arg5: memref<128x512xi8, #tpu.memory_space<any>>, %arg6: memref<128x512xi8, #tpu.memory_space<any>>, %arg7: memref<4x512xf32, #tpu.memory_space<vmem>>, %arg8: memref<4x16x128xf32, #tpu.memory_space<vmem>>, %arg9: memref<128x512xi8, #tpu.memory_space<vmem>>, %arg10: memref<128x512xi8, #tpu.memory_space<vmem>>, %arg11: memref<128x512xi8, #tpu.memory_space<vmem>>, %arg12: memref<16x128xf32, #tpu.memory_space<vmem>>, %arg13: memref<16x128xf32, #tpu.memory_space<vmem>>, %arg14: memref<16x128xf32, #tpu.memory_space<vmem>>, %arg15: memref<16x128xf32, #tpu.memory_space<vmem>>, %arg16: memref<3x!tpu.dma_semaphore, #tpu.memory_space<semaphore_mem>>) attributes {dimension_semantics = [#tpu.dimension_semantics<arbitrary>], iteration_bounds = array<i64: 2>, scalar_prefetch = 0 : i64, scratch_operands = 8 : i64, tpu.core_type = #tpu.core_type<tc>, window_params = [{transform_indices = @transform_0, window_bounds = array<i64: 4, 16, 512>}, {transform_indices = @transform_1, window_bounds = array<i64: 4, 16, 128>}, {transform_indices = @transform_2, window_bounds = array<i64: 4, 16, 128>}, {}, {}, {}, {pipeline_mode = #tpu.pipeline_mode<synchronous>, transform_indices = @transform_6, window_bounds = array<i64: 4, 512>}, {transform_indices = @transform_7, window_bounds = array<i64: 4, 16, 128>}]} {
    %c0_i32 = arith.constant 0 : i32
    %0 = arith.cmpi eq, %arg0, %c0_i32 : i32
    %1 = arith.extui %0 : i1 to i32
    %c0_i32_0 = arith.constant 0 : i32
    %2 = arith.cmpi ne, %1, %c0_i32_0 : i32
    scf.if %2 {
      %c0_i32_161 = arith.constant 0 : i32
      %399 = tpu.memref_slice %arg16[%c0_i32_161] : memref<3x!tpu.dma_semaphore, #tpu.memory_space<semaphore_mem>> -> memref<1x!tpu.dma_semaphore, #tpu.memory_space<semaphore_mem>>
      %400 = tpu.memref_squeeze %399 : memref<1x!tpu.dma_semaphore, #tpu.memory_space<semaphore_mem>> -> memref<!tpu.dma_semaphore, #tpu.memory_space<semaphore_mem>>
      tpu.enqueue_dma source(%arg4 : memref<128x512xi8, #tpu.memory_space<any>>) target(%arg9 : memref<128x512xi8, #tpu.memory_space<vmem>>) target_semaphore(%400 : memref<!tpu.dma_semaphore, #tpu.memory_space<semaphore_mem>>)
      %c1_i32_162 = arith.constant 1 : i32
      %401 = tpu.memref_slice %arg16[%c1_i32_162] : memref<3x!tpu.dma_semaphore, #tpu.memory_space<semaphore_mem>> -> memref<1x!tpu.dma_semaphore, #tpu.memory_space<semaphore_mem>>
      %402 = tpu.memref_squeeze %401 : memref<1x!tpu.dma_semaphore, #tpu.memory_space<semaphore_mem>> -> memref<!tpu.dma_semaphore, #tpu.memory_space<semaphore_mem>>
      tpu.enqueue_dma source(%arg5 : memref<128x512xi8, #tpu.memory_space<any>>) target(%arg10 : memref<128x512xi8, #tpu.memory_space<vmem>>) target_semaphore(%402 : memref<!tpu.dma_semaphore, #tpu.memory_space<semaphore_mem>>)
      %c2_i32_163 = arith.constant 2 : i32
      %403 = tpu.memref_slice %arg16[%c2_i32_163] : memref<3x!tpu.dma_semaphore, #tpu.memory_space<semaphore_mem>> -> memref<1x!tpu.dma_semaphore, #tpu.memory_space<semaphore_mem>>
      %404 = tpu.memref_squeeze %403 : memref<1x!tpu.dma_semaphore, #tpu.memory_space<semaphore_mem>> -> memref<!tpu.dma_semaphore, #tpu.memory_space<semaphore_mem>>
      tpu.enqueue_dma source(%arg6 : memref<128x512xi8, #tpu.memory_space<any>>) target(%arg11 : memref<128x512xi8, #tpu.memory_space<vmem>>) target_semaphore(%404 : memref<!tpu.dma_semaphore, #tpu.memory_space<semaphore_mem>>)
      %cst_164 = arith.constant 0.000000e+00 : f32
      %405 = vector.broadcast %cst_164 : f32 to vector<16x128xf32>
      %c0_165 = arith.constant 0 : index
      %c0_166 = arith.constant 0 : index
      %406 = vector.load %arg12[%c0_165, %c0_166] : memref<16x128xf32, #tpu.memory_space<vmem>>, vector<16x128xf32>
      tpu.vector_store %arg12[%c0_165, %c0_166], %405 {strides = array<i32>} : memref<16x128xf32, #tpu.memory_space<vmem>>, vector<16x128xf32>,
      %cst_167 = arith.constant 0.000000e+00 : f32
      %407 = vector.broadcast %cst_167 : f32 to vector<16x128xf32>
      %c0_168 = arith.constant 0 : index
      %c0_169 = arith.constant 0 : index
      %408 = vector.load %arg13[%c0_168, %c0_169] : memref<16x128xf32, #tpu.memory_space<vmem>>, vector<16x128xf32>
      tpu.vector_store %arg13[%c0_168, %c0_169], %407 {strides = array<i32>} : memref<16x128xf32, #tpu.memory_space<vmem>>, vector<16x128xf32>,
      %cst_170 = arith.constant 0.000000e+00 : f32
      %409 = vector.broadcast %cst_170 : f32 to vector<16x128xf32>
      %c0_171 = arith.constant 0 : index
      %c0_172 = arith.constant 0 : index
      %410 = vector.load %arg14[%c0_171, %c0_172] : memref<16x128xf32, #tpu.memory_space<vmem>>, vector<16x128xf32>
      tpu.vector_store %arg14[%c0_171, %c0_172], %409 {strides = array<i32>} : memref<16x128xf32, #tpu.memory_space<vmem>>, vector<16x128xf32>,
      %cst_173 = arith.constant 0.000000e+00 : f32
      %411 = vector.broadcast %cst_173 : f32 to vector<16x128xf32>
      %c0_174 = arith.constant 0 : index
      %c0_175 = arith.constant 0 : index
      %412 = vector.load %arg15[%c0_174, %c0_175] : memref<16x128xf32, #tpu.memory_space<vmem>>, vector<16x128xf32>
      tpu.vector_store %arg15[%c0_174, %c0_175], %411 {strides = array<i32>} : memref<16x128xf32, #tpu.memory_space<vmem>>, vector<16x128xf32>,
      %c0_i32_176 = arith.constant 0 : i32
      %413 = tpu.memref_slice %arg16[%c0_i32_176] : memref<3x!tpu.dma_semaphore, #tpu.memory_space<semaphore_mem>> -> memref<1x!tpu.dma_semaphore, #tpu.memory_space<semaphore_mem>>
      %414 = tpu.memref_squeeze %413 : memref<1x!tpu.dma_semaphore, #tpu.memory_space<semaphore_mem>> -> memref<!tpu.dma_semaphore, #tpu.memory_space<semaphore_mem>>
      tpu.wait_dma2 semaphore(%414 : memref<!tpu.dma_semaphore, #tpu.memory_space<semaphore_mem>>) src(%arg4 : memref<128x512xi8, #tpu.memory_space<any>>) dst(%arg9 : memref<128x512xi8, #tpu.memory_space<vmem>>)
      %c1_i32_177 = arith.constant 1 : i32
      %415 = tpu.memref_slice %arg16[%c1_i32_177] : memref<3x!tpu.dma_semaphore, #tpu.memory_space<semaphore_mem>> -> memref<1x!tpu.dma_semaphore, #tpu.memory_space<semaphore_mem>>
      %416 = tpu.memref_squeeze %415 : memref<1x!tpu.dma_semaphore, #tpu.memory_space<semaphore_mem>> -> memref<!tpu.dma_semaphore, #tpu.memory_space<semaphore_mem>>
      tpu.wait_dma2 semaphore(%416 : memref<!tpu.dma_semaphore, #tpu.memory_space<semaphore_mem>>) src(%arg5 : memref<128x512xi8, #tpu.memory_space<any>>) dst(%arg10 : memref<128x512xi8, #tpu.memory_space<vmem>>)
      %c2_i32_178 = arith.constant 2 : i32
      %417 = tpu.memref_slice %arg16[%c2_i32_178] : memref<3x!tpu.dma_semaphore, #tpu.memory_space<semaphore_mem>> -> memref<1x!tpu.dma_semaphore, #tpu.memory_space<semaphore_mem>>
      %418 = tpu.memref_squeeze %417 : memref<1x!tpu.dma_semaphore, #tpu.memory_space<semaphore_mem>> -> memref<!tpu.dma_semaphore, #tpu.memory_space<semaphore_mem>>
      tpu.wait_dma2 semaphore(%418 : memref<!tpu.dma_semaphore, #tpu.memory_space<semaphore_mem>>) src(%arg6 : memref<128x512xi8, #tpu.memory_space<any>>) dst(%arg11 : memref<128x512xi8, #tpu.memory_space<vmem>>)
    } else {
    }
    %c0 = arith.constant 0 : index
    %c0_1 = arith.constant 0 : index
    %3 = vector.load %arg7[%c0, %c0_1] : memref<4x512xf32, #tpu.memory_space<vmem>>, vector<1x512xf32>
    %c1 = arith.constant 1 : index
    %c0_2 = arith.constant 0 : index
    %4 = vector.load %arg7[%c1, %c0_2] : memref<4x512xf32, #tpu.memory_space<vmem>>, vector<1x512xf32>
    %c2 = arith.constant 2 : index
    %c0_3 = arith.constant 0 : index
    %5 = vector.load %arg7[%c2, %c0_3] : memref<4x512xf32, #tpu.memory_space<vmem>>, vector<1x512xf32>
    %c3 = arith.constant 3 : index
    %c0_4 = arith.constant 0 : index
    %6 = vector.load %arg7[%c3, %c0_4] : memref<4x512xf32, #tpu.memory_space<vmem>>, vector<1x512xf32>
    %c0_i32_5 = arith.constant 0 : i32
    %c0_6 = arith.constant 0 : index
    %c0_7 = arith.constant 0 : index
    %7 = vector.load %arg14[%c0_6, %c0_7] : memref<16x128xf32, #tpu.memory_space<vmem>>, vector<16x128xf32>
    %8 = arith.truncf %7 : vector<16x128xf32> to vector<16x128xbf16>
    %c0_8 = arith.constant 0 : index
    %c0_9 = arith.constant 0 : index
    %9 = vector.load %arg11[%c0_8, %c0_9] : memref<128x512xi8, #tpu.memory_space<vmem>>, vector<128x512xi8>
    %10 = arith.sitofp %9 : vector<128x512xi8> to vector<128x512xbf16>
    %cst = arith.constant dense<0.000000e+00> : vector<16x512xf32>
    %11 = tpu.matmul %8, %10, %cst {dimension_numbers = #tpu.dot_dimension_numbers<[1], [0], [0], [1], [0, 0, 1, 1], [], []>} : vector<16x128xbf16>, vector<128x512xbf16>, vector<16x512xf32> -> vector<16x512xf32>
    %12 = vector.broadcast %5 : vector<1x512xf32> to vector<16x512xf32>
    %13 = arith.mulf %11, %12 : vector<16x512xf32>
    %c0_10 = arith.constant 0 : index
    %c0_11 = arith.constant 0 : index
    %14 = vector.load %arg12[%c0_10, %c0_11] : memref<16x128xf32, #tpu.memory_space<vmem>>, vector<16x128xf32>
    %15 = arith.truncf %14 : vector<16x128xf32> to vector<16x128xbf16>
    %c0_12 = arith.constant 0 : index
    %c0_13 = arith.constant 0 : index
    %16 = vector.load %arg9[%c0_12, %c0_13] : memref<128x512xi8, #tpu.memory_space<vmem>>, vector<128x512xi8>
    %17 = arith.sitofp %16 : vector<128x512xi8> to vector<128x512xbf16>
    %cst_14 = arith.constant dense<0.000000e+00> : vector<16x512xf32>
    %18 = tpu.matmul %15, %17, %cst_14 {dimension_numbers = #tpu.dot_dimension_numbers<[1], [0], [0], [1], [0, 0, 1, 1], [], []>} : vector<16x128xbf16>, vector<128x512xbf16>, vector<16x512xf32> -> vector<16x512xf32>
    %19 = vector.broadcast %3 : vector<1x512xf32> to vector<16x512xf32>
    %20 = arith.mulf %18, %19 : vector<16x512xf32>
    %21 = arith.index_cast %c0_i32_5 : i32 to index
    %c0_15 = arith.constant 0 : index
    %c0_16 = arith.constant 0 : index
    %22 = vector.load %arg1[%21, %c0_15, %c0_16] : memref<4x16x512xbf16, #tpu.memory_space<vmem>>, vector<1x16x512xbf16>
    %23 = vector.shape_cast %22 : vector<1x16x512xbf16> to vector<16x512xbf16>
    %24 = arith.extf %23 : vector<16x512xbf16> to vector<16x512xf32>
    %25 = arith.addf %20, %24 : vector<16x512xf32>
    %c0_17 = arith.constant 0 : index
    %c0_18 = arith.constant 0 : index
    %26 = vector.load %arg13[%c0_17, %c0_18] : memref<16x128xf32, #tpu.memory_space<vmem>>, vector<16x128xf32>
    %27 = vector.extract_strided_slice %25 {offsets = [0, 0], sizes = [16, 128], strides = [1, 1]} : vector<16x512xf32> to vector<16x128xf32>
    %28 = arith.negf %27 : vector<16x128xf32>
    %29 = math.exp %28 : vector<16x128xf32>
    %cst_19 = arith.constant 1.000000e+00 : f32
    %30 = vector.broadcast %cst_19 : f32 to vector<16x128xf32>
    %31 = arith.addf %30, %29 : vector<16x128xf32>
    %32 = arith.divf %30, %31 : vector<16x128xf32>
    %33 = vector.extract_strided_slice %25 {offsets = [0, 128], sizes = [16, 128], strides = [1, 1]} : vector<16x512xf32> to vector<16x128xf32>
    %34 = arith.negf %33 : vector<16x128xf32>
    %35 = math.exp %34 : vector<16x128xf32>
    %cst_20 = arith.constant 1.000000e+00 : f32
    %36 = vector.broadcast %cst_20 : f32 to vector<16x128xf32>
    %37 = arith.addf %36, %35 : vector<16x128xf32>
    %38 = arith.divf %36, %37 : vector<16x128xf32>
    %39 = vector.extract_strided_slice %25 {offsets = [0, 256], sizes = [16, 128], strides = [1, 1]} : vector<16x512xf32> to vector<16x128xf32>
    %40 = math.tanh %39 : vector<16x128xf32>
    %41 = vector.extract_strided_slice %25 {offsets = [0, 384], sizes = [16, 128], strides = [1, 1]} : vector<16x512xf32> to vector<16x128xf32>
    %42 = arith.negf %41 : vector<16x128xf32>
    %43 = math.exp %42 : vector<16x128xf32>
    %cst_21 = arith.constant 1.000000e+00 : f32
    %44 = vector.broadcast %cst_21 : f32 to vector<16x128xf32>
    %45 = arith.addf %44, %43 : vector<16x128xf32>
    %46 = arith.divf %44, %45 : vector<16x128xf32>
    %47 = arith.mulf %38, %26 : vector<16x128xf32>
    %48 = arith.mulf %32, %40 : vector<16x128xf32>
    %49 = arith.addf %47, %48 : vector<16x128xf32>
    %50 = math.tanh %49 : vector<16x128xf32>
    %51 = arith.mulf %46, %50 : vector<16x128xf32>
    %c0_22 = arith.constant 0 : index
    %c0_23 = arith.constant 0 : index
    %52 = vector.load %arg12[%c0_22, %c0_23] : memref<16x128xf32, #tpu.memory_space<vmem>>, vector<16x128xf32>
    tpu.vector_store %arg12[%c0_22, %c0_23], %51 {strides = array<i32>} : memref<16x128xf32, #tpu.memory_space<vmem>>, vector<16x128xf32>,
    %c0_24 = arith.constant 0 : index
    %c0_25 = arith.constant 0 : index
    %53 = vector.load %arg13[%c0_24, %c0_25] : memref<16x128xf32, #tpu.memory_space<vmem>>, vector<16x128xf32>
    tpu.vector_store %arg13[%c0_24, %c0_25], %49 {strides = array<i32>} : memref<16x128xf32, #tpu.memory_space<vmem>>, vector<16x128xf32>,
    %54 = arith.index_cast %c0_i32_5 : i32 to index
    %c0_26 = arith.constant 0 : index
    %c0_27 = arith.constant 0 : index
    %55 = vector.load %arg2[%54, %c0_26, %c0_27] : memref<4x16x128xf32, #tpu.memory_space<vmem>>, vector<1x16x128xf32>
    %56 = vector.shape_cast %55 : vector<1x16x128xf32> to vector<16x128xf32>
    %57 = arith.addf %51, %56 : vector<16x128xf32>
    %58 = arith.index_cast %c0_i32_5 : i32 to index
    %c0_28 = arith.constant 0 : index
    %c0_29 = arith.constant 0 : index
    %59 = vector.load %arg3[%58, %c0_28, %c0_29] : memref<4x16x128xbf16, #tpu.memory_space<vmem>>, vector<1x16x128xbf16>
    %60 = vector.shape_cast %59 : vector<1x16x128xbf16> to vector<16x128xbf16>
    %61 = arith.extf %60 : vector<16x128xbf16> to vector<16x128xf32>
    %62 = arith.mulf %57, %61 : vector<16x128xf32>
    %63 = vector.broadcast %6 : vector<1x512xf32> to vector<16x512xf32>
    %64 = arith.addf %13, %63 : vector<16x512xf32>
    %65 = arith.truncf %62 : vector<16x128xf32> to vector<16x128xbf16>
    %c0_30 = arith.constant 0 : index
    %c0_31 = arith.constant 0 : index
    %66 = vector.load %arg10[%c0_30, %c0_31] : memref<128x512xi8, #tpu.memory_space<vmem>>, vector<128x512xi8>
    %67 = arith.sitofp %66 : vector<128x512xi8> to vector<128x512xbf16>
    %cst_32 = arith.constant dense<0.000000e+00> : vector<16x512xf32>
    %68 = tpu.matmul %65, %67, %cst_32 {dimension_numbers = #tpu.dot_dimension_numbers<[1], [0], [0], [1], [0, 0, 1, 1], [], []>} : vector<16x128xbf16>, vector<128x512xbf16>, vector<16x512xf32> -> vector<16x512xf32>
    %69 = vector.broadcast %4 : vector<1x512xf32> to vector<16x512xf32>
    %70 = arith.mulf %68, %69 : vector<16x512xf32>
    %71 = arith.addf %64, %70 : vector<16x512xf32>
    %c0_33 = arith.constant 0 : index
    %c0_34 = arith.constant 0 : index
    %72 = vector.load %arg15[%c0_33, %c0_34] : memref<16x128xf32, #tpu.memory_space<vmem>>, vector<16x128xf32>
    %73 = vector.extract_strided_slice %71 {offsets = [0, 0], sizes = [16, 128], strides = [1, 1]} : vector<16x512xf32> to vector<16x128xf32>
    %74 = arith.negf %73 : vector<16x128xf32>
    %75 = math.exp %74 : vector<16x128xf32>
    %cst_35 = arith.constant 1.000000e+00 : f32
    %76 = vector.broadcast %cst_35 : f32 to vector<16x128xf32>
    %77 = arith.addf %76, %75 : vector<16x128xf32>
    %78 = arith.divf %76, %77 : vector<16x128xf32>
    %79 = vector.extract_strided_slice %71 {offsets = [0, 128], sizes = [16, 128], strides = [1, 1]} : vector<16x512xf32> to vector<16x128xf32>
    %80 = arith.negf %79 : vector<16x128xf32>
    %81 = math.exp %80 : vector<16x128xf32>
    %cst_36 = arith.constant 1.000000e+00 : f32
    %82 = vector.broadcast %cst_36 : f32 to vector<16x128xf32>
    %83 = arith.addf %82, %81 : vector<16x128xf32>
    %84 = arith.divf %82, %83 : vector<16x128xf32>
    %85 = vector.extract_strided_slice %71 {offsets = [0, 256], sizes = [16, 128], strides = [1, 1]} : vector<16x512xf32> to vector<16x128xf32>
    %86 = math.tanh %85 : vector<16x128xf32>
    %87 = vector.extract_strided_slice %71 {offsets = [0, 384], sizes = [16, 128], strides = [1, 1]} : vector<16x512xf32> to vector<16x128xf32>
    %88 = arith.negf %87 : vector<16x128xf32>
    %89 = math.exp %88 : vector<16x128xf32>
    %cst_37 = arith.constant 1.000000e+00 : f32
    %90 = vector.broadcast %cst_37 : f32 to vector<16x128xf32>
    %91 = arith.addf %90, %89 : vector<16x128xf32>
    %92 = arith.divf %90, %91 : vector<16x128xf32>
    %93 = arith.mulf %84, %72 : vector<16x128xf32>
    %94 = arith.mulf %78, %86 : vector<16x128xf32>
    %95 = arith.addf %93, %94 : vector<16x128xf32>
    %96 = math.tanh %95 : vector<16x128xf32>
    %97 = arith.mulf %92, %96 : vector<16x128xf32>
    %c0_38 = arith.constant 0 : index
    %c0_39 = arith.constant 0 : index
    %98 = vector.load %arg14[%c0_38, %c0_39] : memref<16x128xf32, #tpu.memory_space<vmem>>, vector<16x128xf32>
    tpu.vector_store %arg14[%c0_38, %c0_39], %97 {strides = array<i32>} : memref<16x128xf32, #tpu.memory_space<vmem>>, vector<16x128xf32>,
    %c0_40 = arith.constant 0 : index
    %c0_41 = arith.constant 0 : index
    %99 = vector.load %arg15[%c0_40, %c0_41] : memref<16x128xf32, #tpu.memory_space<vmem>>, vector<16x128xf32>
    tpu.vector_store %arg15[%c0_40, %c0_41], %95 {strides = array<i32>} : memref<16x128xf32, #tpu.memory_space<vmem>>, vector<16x128xf32>,
    %100 = arith.addf %97, %57 : vector<16x128xf32>
    %101 = arith.index_cast %c0_i32_5 : i32 to index
    %c0_42 = arith.constant 0 : index
    %c0_43 = arith.constant 0 : index
    %102 = vector.load %arg8[%101, %c0_42, %c0_43] : memref<4x16x128xf32, #tpu.memory_space<vmem>>, vector<1x16x128xf32>
    %103 = vector.shape_cast %102 : vector<1x16x128xf32> to vector<16x128xf32>
    %104 = vector.shape_cast %100 : vector<16x128xf32> to vector<1x16x128xf32>
    tpu.vector_store %arg8[%101, %c0_42, %c0_43], %104 {strides = array<i32>} : memref<4x16x128xf32, #tpu.memory_space<vmem>>, vector<1x16x128xf32>,
    %c1_i32 = arith.constant 1 : i32
    %c0_44 = arith.constant 0 : index
    %c0_45 = arith.constant 0 : index
    %105 = vector.load %arg14[%c0_44, %c0_45] : memref<16x128xf32, #tpu.memory_space<vmem>>, vector<16x128xf32>
    %106 = arith.truncf %105 : vector<16x128xf32> to vector<16x128xbf16>
    %c0_46 = arith.constant 0 : index
    %c0_47 = arith.constant 0 : index
    %107 = vector.load %arg11[%c0_46, %c0_47] : memref<128x512xi8, #tpu.memory_space<vmem>>, vector<128x512xi8>
    %108 = arith.sitofp %107 : vector<128x512xi8> to vector<128x512xbf16>
    %cst_48 = arith.constant dense<0.000000e+00> : vector<16x512xf32>
    %109 = tpu.matmul %106, %108, %cst_48 {dimension_numbers = #tpu.dot_dimension_numbers<[1], [0], [0], [1], [0, 0, 1, 1], [], []>} : vector<16x128xbf16>, vector<128x512xbf16>, vector<16x512xf32> -> vector<16x512xf32>
    %110 = vector.broadcast %5 : vector<1x512xf32> to vector<16x512xf32>
    %111 = arith.mulf %109, %110 : vector<16x512xf32>
    %c0_49 = arith.constant 0 : index
    %c0_50 = arith.constant 0 : index
    %112 = vector.load %arg12[%c0_49, %c0_50] : memref<16x128xf32, #tpu.memory_space<vmem>>, vector<16x128xf32>
    %113 = arith.truncf %112 : vector<16x128xf32> to vector<16x128xbf16>
    %c0_51 = arith.constant 0 : index
    %c0_52 = arith.constant 0 : index
    %114 = vector.load %arg9[%c0_51, %c0_52] : memref<128x512xi8, #tpu.memory_space<vmem>>, vector<128x512xi8>
    %115 = arith.sitofp %114 : vector<128x512xi8> to vector<128x512xbf16>
    %cst_53 = arith.constant dense<0.000000e+00> : vector<16x512xf32>
    %116 = tpu.matmul %113, %115, %cst_53 {dimension_numbers = #tpu.dot_dimension_numbers<[1], [0], [0], [1], [0, 0, 1, 1], [], []>} : vector<16x128xbf16>, vector<128x512xbf16>, vector<16x512xf32> -> vector<16x512xf32>
    %117 = vector.broadcast %3 : vector<1x512xf32> to vector<16x512xf32>
    %118 = arith.mulf %116, %117 : vector<16x512xf32>
    %119 = arith.index_cast %c1_i32 : i32 to index
    %c0_54 = arith.constant 0 : index
    %c0_55 = arith.constant 0 : index
    %120 = vector.load %arg1[%119, %c0_54, %c0_55] : memref<4x16x512xbf16, #tpu.memory_space<vmem>>, vector<1x16x512xbf16>
    %121 = vector.shape_cast %120 : vector<1x16x512xbf16> to vector<16x512xbf16>
    %122 = arith.extf %121 : vector<16x512xbf16> to vector<16x512xf32>
    %123 = arith.addf %118, %122 : vector<16x512xf32>
    %c0_56 = arith.constant 0 : index
    %c0_57 = arith.constant 0 : index
    %124 = vector.load %arg13[%c0_56, %c0_57] : memref<16x128xf32, #tpu.memory_space<vmem>>, vector<16x128xf32>
    %125 = vector.extract_strided_slice %123 {offsets = [0, 0], sizes = [16, 128], strides = [1, 1]} : vector<16x512xf32> to vector<16x128xf32>
    %126 = arith.negf %125 : vector<16x128xf32>
    %127 = math.exp %126 : vector<16x128xf32>
    %cst_58 = arith.constant 1.000000e+00 : f32
    %128 = vector.broadcast %cst_58 : f32 to vector<16x128xf32>
    %129 = arith.addf %128, %127 : vector<16x128xf32>
    %130 = arith.divf %128, %129 : vector<16x128xf32>
    %131 = vector.extract_strided_slice %123 {offsets = [0, 128], sizes = [16, 128], strides = [1, 1]} : vector<16x512xf32> to vector<16x128xf32>
    %132 = arith.negf %131 : vector<16x128xf32>
    %133 = math.exp %132 : vector<16x128xf32>
    %cst_59 = arith.constant 1.000000e+00 : f32
    %134 = vector.broadcast %cst_59 : f32 to vector<16x128xf32>
    %135 = arith.addf %134, %133 : vector<16x128xf32>
    %136 = arith.divf %134, %135 : vector<16x128xf32>
    %137 = vector.extract_strided_slice %123 {offsets = [0, 256], sizes = [16, 128], strides = [1, 1]} : vector<16x512xf32> to vector<16x128xf32>
    %138 = math.tanh %137 : vector<16x128xf32>
    %139 = vector.extract_strided_slice %123 {offsets = [0, 384], sizes = [16, 128], strides = [1, 1]} : vector<16x512xf32> to vector<16x128xf32>
    %140 = arith.negf %139 : vector<16x128xf32>
    %141 = math.exp %140 : vector<16x128xf32>
    %cst_60 = arith.constant 1.000000e+00 : f32
    %142 = vector.broadcast %cst_60 : f32 to vector<16x128xf32>
    %143 = arith.addf %142, %141 : vector<16x128xf32>
    %144 = arith.divf %142, %143 : vector<16x128xf32>
    %145 = arith.mulf %136, %124 : vector<16x128xf32>
    %146 = arith.mulf %130, %138 : vector<16x128xf32>
    %147 = arith.addf %145, %146 : vector<16x128xf32>
    %148 = math.tanh %147 : vector<16x128xf32>
    %149 = arith.mulf %144, %148 : vector<16x128xf32>
    %c0_61 = arith.constant 0 : index
    %c0_62 = arith.constant 0 : index
    %150 = vector.load %arg12[%c0_61, %c0_62] : memref<16x128xf32, #tpu.memory_space<vmem>>, vector<16x128xf32>
    tpu.vector_store %arg12[%c0_61, %c0_62], %149 {strides = array<i32>} : memref<16x128xf32, #tpu.memory_space<vmem>>, vector<16x128xf32>,
    %c0_63 = arith.constant 0 : index
    %c0_64 = arith.constant 0 : index
    %151 = vector.load %arg13[%c0_63, %c0_64] : memref<16x128xf32, #tpu.memory_space<vmem>>, vector<16x128xf32>
    tpu.vector_store %arg13[%c0_63, %c0_64], %147 {strides = array<i32>} : memref<16x128xf32, #tpu.memory_space<vmem>>, vector<16x128xf32>,
    %152 = arith.index_cast %c1_i32 : i32 to index
    %c0_65 = arith.constant 0 : index
    %c0_66 = arith.constant 0 : index
    %153 = vector.load %arg2[%152, %c0_65, %c0_66] : memref<4x16x128xf32, #tpu.memory_space<vmem>>, vector<1x16x128xf32>
    %154 = vector.shape_cast %153 : vector<1x16x128xf32> to vector<16x128xf32>
    %155 = arith.addf %149, %154 : vector<16x128xf32>
    %156 = arith.index_cast %c1_i32 : i32 to index
    %c0_67 = arith.constant 0 : index
    %c0_68 = arith.constant 0 : index
    %157 = vector.load %arg3[%156, %c0_67, %c0_68] : memref<4x16x128xbf16, #tpu.memory_space<vmem>>, vector<1x16x128xbf16>
    %158 = vector.shape_cast %157 : vector<1x16x128xbf16> to vector<16x128xbf16>
    %159 = arith.extf %158 : vector<16x128xbf16> to vector<16x128xf32>
    %160 = arith.mulf %155, %159 : vector<16x128xf32>
    %161 = vector.broadcast %6 : vector<1x512xf32> to vector<16x512xf32>
    %162 = arith.addf %111, %161 : vector<16x512xf32>
    %163 = arith.truncf %160 : vector<16x128xf32> to vector<16x128xbf16>
    %c0_69 = arith.constant 0 : index
    %c0_70 = arith.constant 0 : index
    %164 = vector.load %arg10[%c0_69, %c0_70] : memref<128x512xi8, #tpu.memory_space<vmem>>, vector<128x512xi8>
    %165 = arith.sitofp %164 : vector<128x512xi8> to vector<128x512xbf16>
    %cst_71 = arith.constant dense<0.000000e+00> : vector<16x512xf32>
    %166 = tpu.matmul %163, %165, %cst_71 {dimension_numbers = #tpu.dot_dimension_numbers<[1], [0], [0], [1], [0, 0, 1, 1], [], []>} : vector<16x128xbf16>, vector<128x512xbf16>, vector<16x512xf32> -> vector<16x512xf32>
    %167 = vector.broadcast %4 : vector<1x512xf32> to vector<16x512xf32>
    %168 = arith.mulf %166, %167 : vector<16x512xf32>
    %169 = arith.addf %162, %168 : vector<16x512xf32>
    %c0_72 = arith.constant 0 : index
    %c0_73 = arith.constant 0 : index
    %170 = vector.load %arg15[%c0_72, %c0_73] : memref<16x128xf32, #tpu.memory_space<vmem>>, vector<16x128xf32>
    %171 = vector.extract_strided_slice %169 {offsets = [0, 0], sizes = [16, 128], strides = [1, 1]} : vector<16x512xf32> to vector<16x128xf32>
    %172 = arith.negf %171 : vector<16x128xf32>
    %173 = math.exp %172 : vector<16x128xf32>
    %cst_74 = arith.constant 1.000000e+00 : f32
    %174 = vector.broadcast %cst_74 : f32 to vector<16x128xf32>
    %175 = arith.addf %174, %173 : vector<16x128xf32>
    %176 = arith.divf %174, %175 : vector<16x128xf32>
    %177 = vector.extract_strided_slice %169 {offsets = [0, 128], sizes = [16, 128], strides = [1, 1]} : vector<16x512xf32> to vector<16x128xf32>
    %178 = arith.negf %177 : vector<16x128xf32>
    %179 = math.exp %178 : vector<16x128xf32>
    %cst_75 = arith.constant 1.000000e+00 : f32
    %180 = vector.broadcast %cst_75 : f32 to vector<16x128xf32>
    %181 = arith.addf %180, %179 : vector<16x128xf32>
    %182 = arith.divf %180, %181 : vector<16x128xf32>
    %183 = vector.extract_strided_slice %169 {offsets = [0, 256], sizes = [16, 128], strides = [1, 1]} : vector<16x512xf32> to vector<16x128xf32>
    %184 = math.tanh %183 : vector<16x128xf32>
    %185 = vector.extract_strided_slice %169 {offsets = [0, 384], sizes = [16, 128], strides = [1, 1]} : vector<16x512xf32> to vector<16x128xf32>
    %186 = arith.negf %185 : vector<16x128xf32>
    %187 = math.exp %186 : vector<16x128xf32>
    %cst_76 = arith.constant 1.000000e+00 : f32
    %188 = vector.broadcast %cst_76 : f32 to vector<16x128xf32>
    %189 = arith.addf %188, %187 : vector<16x128xf32>
    %190 = arith.divf %188, %189 : vector<16x128xf32>
    %191 = arith.mulf %182, %170 : vector<16x128xf32>
    %192 = arith.mulf %176, %184 : vector<16x128xf32>
    %193 = arith.addf %191, %192 : vector<16x128xf32>
    %194 = math.tanh %193 : vector<16x128xf32>
    %195 = arith.mulf %190, %194 : vector<16x128xf32>
    %c0_77 = arith.constant 0 : index
    %c0_78 = arith.constant 0 : index
    %196 = vector.load %arg14[%c0_77, %c0_78] : memref<16x128xf32, #tpu.memory_space<vmem>>, vector<16x128xf32>
    tpu.vector_store %arg14[%c0_77, %c0_78], %195 {strides = array<i32>} : memref<16x128xf32, #tpu.memory_space<vmem>>, vector<16x128xf32>,
    %c0_79 = arith.constant 0 : index
    %c0_80 = arith.constant 0 : index
    %197 = vector.load %arg15[%c0_79, %c0_80] : memref<16x128xf32, #tpu.memory_space<vmem>>, vector<16x128xf32>
    tpu.vector_store %arg15[%c0_79, %c0_80], %193 {strides = array<i32>} : memref<16x128xf32, #tpu.memory_space<vmem>>, vector<16x128xf32>,
    %198 = arith.addf %195, %155 : vector<16x128xf32>
    %199 = arith.index_cast %c1_i32 : i32 to index
    %c0_81 = arith.constant 0 : index
    %c0_82 = arith.constant 0 : index
    %200 = vector.load %arg8[%199, %c0_81, %c0_82] : memref<4x16x128xf32, #tpu.memory_space<vmem>>, vector<1x16x128xf32>
    %201 = vector.shape_cast %200 : vector<1x16x128xf32> to vector<16x128xf32>
    %202 = vector.shape_cast %198 : vector<16x128xf32> to vector<1x16x128xf32>
    tpu.vector_store %arg8[%199, %c0_81, %c0_82], %202 {strides = array<i32>} : memref<4x16x128xf32, #tpu.memory_space<vmem>>, vector<1x16x128xf32>,
    %c2_i32 = arith.constant 2 : i32
    %c0_83 = arith.constant 0 : index
    %c0_84 = arith.constant 0 : index
    %203 = vector.load %arg14[%c0_83, %c0_84] : memref<16x128xf32, #tpu.memory_space<vmem>>, vector<16x128xf32>
    %204 = arith.truncf %203 : vector<16x128xf32> to vector<16x128xbf16>
    %c0_85 = arith.constant 0 : index
    %c0_86 = arith.constant 0 : index
    %205 = vector.load %arg11[%c0_85, %c0_86] : memref<128x512xi8, #tpu.memory_space<vmem>>, vector<128x512xi8>
    %206 = arith.sitofp %205 : vector<128x512xi8> to vector<128x512xbf16>
    %cst_87 = arith.constant dense<0.000000e+00> : vector<16x512xf32>
    %207 = tpu.matmul %204, %206, %cst_87 {dimension_numbers = #tpu.dot_dimension_numbers<[1], [0], [0], [1], [0, 0, 1, 1], [], []>} : vector<16x128xbf16>, vector<128x512xbf16>, vector<16x512xf32> -> vector<16x512xf32>
    %208 = vector.broadcast %5 : vector<1x512xf32> to vector<16x512xf32>
    %209 = arith.mulf %207, %208 : vector<16x512xf32>
    %c0_88 = arith.constant 0 : index
    %c0_89 = arith.constant 0 : index
    %210 = vector.load %arg12[%c0_88, %c0_89] : memref<16x128xf32, #tpu.memory_space<vmem>>, vector<16x128xf32>
    %211 = arith.truncf %210 : vector<16x128xf32> to vector<16x128xbf16>
    %c0_90 = arith.constant 0 : index
    %c0_91 = arith.constant 0 : index
    %212 = vector.load %arg9[%c0_90, %c0_91] : memref<128x512xi8, #tpu.memory_space<vmem>>, vector<128x512xi8>
    %213 = arith.sitofp %212 : vector<128x512xi8> to vector<128x512xbf16>
    %cst_92 = arith.constant dense<0.000000e+00> : vector<16x512xf32>
    %214 = tpu.matmul %211, %213, %cst_92 {dimension_numbers = #tpu.dot_dimension_numbers<[1], [0], [0], [1], [0, 0, 1, 1], [], []>} : vector<16x128xbf16>, vector<128x512xbf16>, vector<16x512xf32> -> vector<16x512xf32>
    %215 = vector.broadcast %3 : vector<1x512xf32> to vector<16x512xf32>
    %216 = arith.mulf %214, %215 : vector<16x512xf32>
    %217 = arith.index_cast %c2_i32 : i32 to index
    %c0_93 = arith.constant 0 : index
    %c0_94 = arith.constant 0 : index
    %218 = vector.load %arg1[%217, %c0_93, %c0_94] : memref<4x16x512xbf16, #tpu.memory_space<vmem>>, vector<1x16x512xbf16>
    %219 = vector.shape_cast %218 : vector<1x16x512xbf16> to vector<16x512xbf16>
    %220 = arith.extf %219 : vector<16x512xbf16> to vector<16x512xf32>
    %221 = arith.addf %216, %220 : vector<16x512xf32>
    %c0_95 = arith.constant 0 : index
    %c0_96 = arith.constant 0 : index
    %222 = vector.load %arg13[%c0_95, %c0_96] : memref<16x128xf32, #tpu.memory_space<vmem>>, vector<16x128xf32>
    %223 = vector.extract_strided_slice %221 {offsets = [0, 0], sizes = [16, 128], strides = [1, 1]} : vector<16x512xf32> to vector<16x128xf32>
    %224 = arith.negf %223 : vector<16x128xf32>
    %225 = math.exp %224 : vector<16x128xf32>
    %cst_97 = arith.constant 1.000000e+00 : f32
    %226 = vector.broadcast %cst_97 : f32 to vector<16x128xf32>
    %227 = arith.addf %226, %225 : vector<16x128xf32>
    %228 = arith.divf %226, %227 : vector<16x128xf32>
    %229 = vector.extract_strided_slice %221 {offsets = [0, 128], sizes = [16, 128], strides = [1, 1]} : vector<16x512xf32> to vector<16x128xf32>
    %230 = arith.negf %229 : vector<16x128xf32>
    %231 = math.exp %230 : vector<16x128xf32>
    %cst_98 = arith.constant 1.000000e+00 : f32
    %232 = vector.broadcast %cst_98 : f32 to vector<16x128xf32>
    %233 = arith.addf %232, %231 : vector<16x128xf32>
    %234 = arith.divf %232, %233 : vector<16x128xf32>
    %235 = vector.extract_strided_slice %221 {offsets = [0, 256], sizes = [16, 128], strides = [1, 1]} : vector<16x512xf32> to vector<16x128xf32>
    %236 = math.tanh %235 : vector<16x128xf32>
    %237 = vector.extract_strided_slice %221 {offsets = [0, 384], sizes = [16, 128], strides = [1, 1]} : vector<16x512xf32> to vector<16x128xf32>
    %238 = arith.negf %237 : vector<16x128xf32>
    %239 = math.exp %238 : vector<16x128xf32>
    %cst_99 = arith.constant 1.000000e+00 : f32
    %240 = vector.broadcast %cst_99 : f32 to vector<16x128xf32>
    %241 = arith.addf %240, %239 : vector<16x128xf32>
    %242 = arith.divf %240, %241 : vector<16x128xf32>
    %243 = arith.mulf %234, %222 : vector<16x128xf32>
    %244 = arith.mulf %228, %236 : vector<16x128xf32>
    %245 = arith.addf %243, %244 : vector<16x128xf32>
    %246 = math.tanh %245 : vector<16x128xf32>
    %247 = arith.mulf %242, %246 : vector<16x128xf32>
    %c0_100 = arith.constant 0 : index
    %c0_101 = arith.constant 0 : index
    %248 = vector.load %arg12[%c0_100, %c0_101] : memref<16x128xf32, #tpu.memory_space<vmem>>, vector<16x128xf32>
    tpu.vector_store %arg12[%c0_100, %c0_101], %247 {strides = array<i32>} : memref<16x128xf32, #tpu.memory_space<vmem>>, vector<16x128xf32>,
    %c0_102 = arith.constant 0 : index
    %c0_103 = arith.constant 0 : index
    %249 = vector.load %arg13[%c0_102, %c0_103] : memref<16x128xf32, #tpu.memory_space<vmem>>, vector<16x128xf32>
    tpu.vector_store %arg13[%c0_102, %c0_103], %245 {strides = array<i32>} : memref<16x128xf32, #tpu.memory_space<vmem>>, vector<16x128xf32>,
    %250 = arith.index_cast %c2_i32 : i32 to index
    %c0_104 = arith.constant 0 : index
    %c0_105 = arith.constant 0 : index
    %251 = vector.load %arg2[%250, %c0_104, %c0_105] : memref<4x16x128xf32, #tpu.memory_space<vmem>>, vector<1x16x128xf32>
    %252 = vector.shape_cast %251 : vector<1x16x128xf32> to vector<16x128xf32>
    %253 = arith.addf %247, %252 : vector<16x128xf32>
    %254 = arith.index_cast %c2_i32 : i32 to index
    %c0_106 = arith.constant 0 : index
    %c0_107 = arith.constant 0 : index
    %255 = vector.load %arg3[%254, %c0_106, %c0_107] : memref<4x16x128xbf16, #tpu.memory_space<vmem>>, vector<1x16x128xbf16>
    %256 = vector.shape_cast %255 : vector<1x16x128xbf16> to vector<16x128xbf16>
    %257 = arith.extf %256 : vector<16x128xbf16> to vector<16x128xf32>
    %258 = arith.mulf %253, %257 : vector<16x128xf32>
    %259 = vector.broadcast %6 : vector<1x512xf32> to vector<16x512xf32>
    %260 = arith.addf %209, %259 : vector<16x512xf32>
    %261 = arith.truncf %258 : vector<16x128xf32> to vector<16x128xbf16>
    %c0_108 = arith.constant 0 : index
    %c0_109 = arith.constant 0 : index
    %262 = vector.load %arg10[%c0_108, %c0_109] : memref<128x512xi8, #tpu.memory_space<vmem>>, vector<128x512xi8>
    %263 = arith.sitofp %262 : vector<128x512xi8> to vector<128x512xbf16>
    %cst_110 = arith.constant dense<0.000000e+00> : vector<16x512xf32>
    %264 = tpu.matmul %261, %263, %cst_110 {dimension_numbers = #tpu.dot_dimension_numbers<[1], [0], [0], [1], [0, 0, 1, 1], [], []>} : vector<16x128xbf16>, vector<128x512xbf16>, vector<16x512xf32> -> vector<16x512xf32>
    %265 = vector.broadcast %4 : vector<1x512xf32> to vector<16x512xf32>
    %266 = arith.mulf %264, %265 : vector<16x512xf32>
    %267 = arith.addf %260, %266 : vector<16x512xf32>
    %c0_111 = arith.constant 0 : index
    %c0_112 = arith.constant 0 : index
    %268 = vector.load %arg15[%c0_111, %c0_112] : memref<16x128xf32, #tpu.memory_space<vmem>>, vector<16x128xf32>
    %269 = vector.extract_strided_slice %267 {offsets = [0, 0], sizes = [16, 128], strides = [1, 1]} : vector<16x512xf32> to vector<16x128xf32>
    %270 = arith.negf %269 : vector<16x128xf32>
    %271 = math.exp %270 : vector<16x128xf32>
    %cst_113 = arith.constant 1.000000e+00 : f32
    %272 = vector.broadcast %cst_113 : f32 to vector<16x128xf32>
    %273 = arith.addf %272, %271 : vector<16x128xf32>
    %274 = arith.divf %272, %273 : vector<16x128xf32>
    %275 = vector.extract_strided_slice %267 {offsets = [0, 128], sizes = [16, 128], strides = [1, 1]} : vector<16x512xf32> to vector<16x128xf32>
    %276 = arith.negf %275 : vector<16x128xf32>
    %277 = math.exp %276 : vector<16x128xf32>
    %cst_114 = arith.constant 1.000000e+00 : f32
    %278 = vector.broadcast %cst_114 : f32 to vector<16x128xf32>
    %279 = arith.addf %278, %277 : vector<16x128xf32>
    %280 = arith.divf %278, %279 : vector<16x128xf32>
    %281 = vector.extract_strided_slice %267 {offsets = [0, 256], sizes = [16, 128], strides = [1, 1]} : vector<16x512xf32> to vector<16x128xf32>
    %282 = math.tanh %281 : vector<16x128xf32>
    %283 = vector.extract_strided_slice %267 {offsets = [0, 384], sizes = [16, 128], strides = [1, 1]} : vector<16x512xf32> to vector<16x128xf32>
    %284 = arith.negf %283 : vector<16x128xf32>
    %285 = math.exp %284 : vector<16x128xf32>
    %cst_115 = arith.constant 1.000000e+00 : f32
    %286 = vector.broadcast %cst_115 : f32 to vector<16x128xf32>
    %287 = arith.addf %286, %285 : vector<16x128xf32>
    %288 = arith.divf %286, %287 : vector<16x128xf32>
    %289 = arith.mulf %280, %268 : vector<16x128xf32>
    %290 = arith.mulf %274, %282 : vector<16x128xf32>
    %291 = arith.addf %289, %290 : vector<16x128xf32>
    %292 = math.tanh %291 : vector<16x128xf32>
    %293 = arith.mulf %288, %292 : vector<16x128xf32>
    %c0_116 = arith.constant 0 : index
    %c0_117 = arith.constant 0 : index
    %294 = vector.load %arg14[%c0_116, %c0_117] : memref<16x128xf32, #tpu.memory_space<vmem>>, vector<16x128xf32>
    tpu.vector_store %arg14[%c0_116, %c0_117], %293 {strides = array<i32>} : memref<16x128xf32, #tpu.memory_space<vmem>>, vector<16x128xf32>,
    %c0_118 = arith.constant 0 : index
    %c0_119 = arith.constant 0 : index
    %295 = vector.load %arg15[%c0_118, %c0_119] : memref<16x128xf32, #tpu.memory_space<vmem>>, vector<16x128xf32>
    tpu.vector_store %arg15[%c0_118, %c0_119], %291 {strides = array<i32>} : memref<16x128xf32, #tpu.memory_space<vmem>>, vector<16x128xf32>,
    %296 = arith.addf %293, %253 : vector<16x128xf32>
    %297 = arith.index_cast %c2_i32 : i32 to index
    %c0_120 = arith.constant 0 : index
    %c0_121 = arith.constant 0 : index
    %298 = vector.load %arg8[%297, %c0_120, %c0_121] : memref<4x16x128xf32, #tpu.memory_space<vmem>>, vector<1x16x128xf32>
    %299 = vector.shape_cast %298 : vector<1x16x128xf32> to vector<16x128xf32>
    %300 = vector.shape_cast %296 : vector<16x128xf32> to vector<1x16x128xf32>
    tpu.vector_store %arg8[%297, %c0_120, %c0_121], %300 {strides = array<i32>} : memref<4x16x128xf32, #tpu.memory_space<vmem>>, vector<1x16x128xf32>,
    %c3_i32 = arith.constant 3 : i32
    %c0_122 = arith.constant 0 : index
    %c0_123 = arith.constant 0 : index
    %301 = vector.load %arg14[%c0_122, %c0_123] : memref<16x128xf32, #tpu.memory_space<vmem>>, vector<16x128xf32>
    %302 = arith.truncf %301 : vector<16x128xf32> to vector<16x128xbf16>
    %c0_124 = arith.constant 0 : index
    %c0_125 = arith.constant 0 : index
    %303 = vector.load %arg11[%c0_124, %c0_125] : memref<128x512xi8, #tpu.memory_space<vmem>>, vector<128x512xi8>
    %304 = arith.sitofp %303 : vector<128x512xi8> to vector<128x512xbf16>
    %cst_126 = arith.constant dense<0.000000e+00> : vector<16x512xf32>
    %305 = tpu.matmul %302, %304, %cst_126 {dimension_numbers = #tpu.dot_dimension_numbers<[1], [0], [0], [1], [0, 0, 1, 1], [], []>} : vector<16x128xbf16>, vector<128x512xbf16>, vector<16x512xf32> -> vector<16x512xf32>
    %306 = vector.broadcast %5 : vector<1x512xf32> to vector<16x512xf32>
    %307 = arith.mulf %305, %306 : vector<16x512xf32>
    %c0_127 = arith.constant 0 : index
    %c0_128 = arith.constant 0 : index
    %308 = vector.load %arg12[%c0_127, %c0_128] : memref<16x128xf32, #tpu.memory_space<vmem>>, vector<16x128xf32>
    %309 = arith.truncf %308 : vector<16x128xf32> to vector<16x128xbf16>
    %c0_129 = arith.constant 0 : index
    %c0_130 = arith.constant 0 : index
    %310 = vector.load %arg9[%c0_129, %c0_130] : memref<128x512xi8, #tpu.memory_space<vmem>>, vector<128x512xi8>
    %311 = arith.sitofp %310 : vector<128x512xi8> to vector<128x512xbf16>
    %cst_131 = arith.constant dense<0.000000e+00> : vector<16x512xf32>
    %312 = tpu.matmul %309, %311, %cst_131 {dimension_numbers = #tpu.dot_dimension_numbers<[1], [0], [0], [1], [0, 0, 1, 1], [], []>} : vector<16x128xbf16>, vector<128x512xbf16>, vector<16x512xf32> -> vector<16x512xf32>
    %313 = vector.broadcast %3 : vector<1x512xf32> to vector<16x512xf32>
    %314 = arith.mulf %312, %313 : vector<16x512xf32>
    %315 = arith.index_cast %c3_i32 : i32 to index
    %c0_132 = arith.constant 0 : index
    %c0_133 = arith.constant 0 : index
    %316 = vector.load %arg1[%315, %c0_132, %c0_133] : memref<4x16x512xbf16, #tpu.memory_space<vmem>>, vector<1x16x512xbf16>
    %317 = vector.shape_cast %316 : vector<1x16x512xbf16> to vector<16x512xbf16>
    %318 = arith.extf %317 : vector<16x512xbf16> to vector<16x512xf32>
    %319 = arith.addf %314, %318 : vector<16x512xf32>
    %c0_134 = arith.constant 0 : index
    %c0_135 = arith.constant 0 : index
    %320 = vector.load %arg13[%c0_134, %c0_135] : memref<16x128xf32, #tpu.memory_space<vmem>>, vector<16x128xf32>
    %321 = vector.extract_strided_slice %319 {offsets = [0, 0], sizes = [16, 128], strides = [1, 1]} : vector<16x512xf32> to vector<16x128xf32>
    %322 = arith.negf %321 : vector<16x128xf32>
    %323 = math.exp %322 : vector<16x128xf32>
    %cst_136 = arith.constant 1.000000e+00 : f32
    %324 = vector.broadcast %cst_136 : f32 to vector<16x128xf32>
    %325 = arith.addf %324, %323 : vector<16x128xf32>
    %326 = arith.divf %324, %325 : vector<16x128xf32>
    %327 = vector.extract_strided_slice %319 {offsets = [0, 128], sizes = [16, 128], strides = [1, 1]} : vector<16x512xf32> to vector<16x128xf32>
    %328 = arith.negf %327 : vector<16x128xf32>
    %329 = math.exp %328 : vector<16x128xf32>
    %cst_137 = arith.constant 1.000000e+00 : f32
    %330 = vector.broadcast %cst_137 : f32 to vector<16x128xf32>
    %331 = arith.addf %330, %329 : vector<16x128xf32>
    %332 = arith.divf %330, %331 : vector<16x128xf32>
    %333 = vector.extract_strided_slice %319 {offsets = [0, 256], sizes = [16, 128], strides = [1, 1]} : vector<16x512xf32> to vector<16x128xf32>
    %334 = math.tanh %333 : vector<16x128xf32>
    %335 = vector.extract_strided_slice %319 {offsets = [0, 384], sizes = [16, 128], strides = [1, 1]} : vector<16x512xf32> to vector<16x128xf32>
    %336 = arith.negf %335 : vector<16x128xf32>
    %337 = math.exp %336 : vector<16x128xf32>
    %cst_138 = arith.constant 1.000000e+00 : f32
    %338 = vector.broadcast %cst_138 : f32 to vector<16x128xf32>
    %339 = arith.addf %338, %337 : vector<16x128xf32>
    %340 = arith.divf %338, %339 : vector<16x128xf32>
    %341 = arith.mulf %332, %320 : vector<16x128xf32>
    %342 = arith.mulf %326, %334 : vector<16x128xf32>
    %343 = arith.addf %341, %342 : vector<16x128xf32>
    %344 = math.tanh %343 : vector<16x128xf32>
    %345 = arith.mulf %340, %344 : vector<16x128xf32>
    %c0_139 = arith.constant 0 : index
    %c0_140 = arith.constant 0 : index
    %346 = vector.load %arg12[%c0_139, %c0_140] : memref<16x128xf32, #tpu.memory_space<vmem>>, vector<16x128xf32>
    tpu.vector_store %arg12[%c0_139, %c0_140], %345 {strides = array<i32>} : memref<16x128xf32, #tpu.memory_space<vmem>>, vector<16x128xf32>,
    %c0_141 = arith.constant 0 : index
    %c0_142 = arith.constant 0 : index
    %347 = vector.load %arg13[%c0_141, %c0_142] : memref<16x128xf32, #tpu.memory_space<vmem>>, vector<16x128xf32>
    tpu.vector_store %arg13[%c0_141, %c0_142], %343 {strides = array<i32>} : memref<16x128xf32, #tpu.memory_space<vmem>>, vector<16x128xf32>,
    %348 = arith.index_cast %c3_i32 : i32 to index
    %c0_143 = arith.constant 0 : index
    %c0_144 = arith.constant 0 : index
    %349 = vector.load %arg2[%348, %c0_143, %c0_144] : memref<4x16x128xf32, #tpu.memory_space<vmem>>, vector<1x16x128xf32>
    %350 = vector.shape_cast %349 : vector<1x16x128xf32> to vector<16x128xf32>
    %351 = arith.addf %345, %350 : vector<16x128xf32>
    %352 = arith.index_cast %c3_i32 : i32 to index
    %c0_145 = arith.constant 0 : index
    %c0_146 = arith.constant 0 : index
    %353 = vector.load %arg3[%352, %c0_145, %c0_146] : memref<4x16x128xbf16, #tpu.memory_space<vmem>>, vector<1x16x128xbf16>
    %354 = vector.shape_cast %353 : vector<1x16x128xbf16> to vector<16x128xbf16>
    %355 = arith.extf %354 : vector<16x128xbf16> to vector<16x128xf32>
    %356 = arith.mulf %351, %355 : vector<16x128xf32>
    %357 = vector.broadcast %6 : vector<1x512xf32> to vector<16x512xf32>
    %358 = arith.addf %307, %357 : vector<16x512xf32>
    %359 = arith.truncf %356 : vector<16x128xf32> to vector<16x128xbf16>
    %c0_147 = arith.constant 0 : index
    %c0_148 = arith.constant 0 : index
    %360 = vector.load %arg10[%c0_147, %c0_148] : memref<128x512xi8, #tpu.memory_space<vmem>>, vector<128x512xi8>
    %361 = arith.sitofp %360 : vector<128x512xi8> to vector<128x512xbf16>
    %cst_149 = arith.constant dense<0.000000e+00> : vector<16x512xf32>
    %362 = tpu.matmul %359, %361, %cst_149 {dimension_numbers = #tpu.dot_dimension_numbers<[1], [0], [0], [1], [0, 0, 1, 1], [], []>} : vector<16x128xbf16>, vector<128x512xbf16>, vector<16x512xf32> -> vector<16x512xf32>
    %363 = vector.broadcast %4 : vector<1x512xf32> to vector<16x512xf32>
    %364 = arith.mulf %362, %363 : vector<16x512xf32>
    %365 = arith.addf %358, %364 : vector<16x512xf32>
    %c0_150 = arith.constant 0 : index
    %c0_151 = arith.constant 0 : index
    %366 = vector.load %arg15[%c0_150, %c0_151] : memref<16x128xf32, #tpu.memory_space<vmem>>, vector<16x128xf32>
    %367 = vector.extract_strided_slice %365 {offsets = [0, 0], sizes = [16, 128], strides = [1, 1]} : vector<16x512xf32> to vector<16x128xf32>
    %368 = arith.negf %367 : vector<16x128xf32>
    %369 = math.exp %368 : vector<16x128xf32>
    %cst_152 = arith.constant 1.000000e+00 : f32
    %370 = vector.broadcast %cst_152 : f32 to vector<16x128xf32>
    %371 = arith.addf %370, %369 : vector<16x128xf32>
    %372 = arith.divf %370, %371 : vector<16x128xf32>
    %373 = vector.extract_strided_slice %365 {offsets = [0, 128], sizes = [16, 128], strides = [1, 1]} : vector<16x512xf32> to vector<16x128xf32>
    %374 = arith.negf %373 : vector<16x128xf32>
    %375 = math.exp %374 : vector<16x128xf32>
    %cst_153 = arith.constant 1.000000e+00 : f32
    %376 = vector.broadcast %cst_153 : f32 to vector<16x128xf32>
    %377 = arith.addf %376, %375 : vector<16x128xf32>
    %378 = arith.divf %376, %377 : vector<16x128xf32>
    %379 = vector.extract_strided_slice %365 {offsets = [0, 256], sizes = [16, 128], strides = [1, 1]} : vector<16x512xf32> to vector<16x128xf32>
    %380 = math.tanh %379 : vector<16x128xf32>
    %381 = vector.extract_strided_slice %365 {offsets = [0, 384], sizes = [16, 128], strides = [1, 1]} : vector<16x512xf32> to vector<16x128xf32>
    %382 = arith.negf %381 : vector<16x128xf32>
    %383 = math.exp %382 : vector<16x128xf32>
    %cst_154 = arith.constant 1.000000e+00 : f32
    %384 = vector.broadcast %cst_154 : f32 to vector<16x128xf32>
    %385 = arith.addf %384, %383 : vector<16x128xf32>
    %386 = arith.divf %384, %385 : vector<16x128xf32>
    %387 = arith.mulf %378, %366 : vector<16x128xf32>
    %388 = arith.mulf %372, %380 : vector<16x128xf32>
    %389 = arith.addf %387, %388 : vector<16x128xf32>
    %390 = math.tanh %389 : vector<16x128xf32>
    %391 = arith.mulf %386, %390 : vector<16x128xf32>
    %c0_155 = arith.constant 0 : index
    %c0_156 = arith.constant 0 : index
    %392 = vector.load %arg14[%c0_155, %c0_156] : memref<16x128xf32, #tpu.memory_space<vmem>>, vector<16x128xf32>
    tpu.vector_store %arg14[%c0_155, %c0_156], %391 {strides = array<i32>} : memref<16x128xf32, #tpu.memory_space<vmem>>, vector<16x128xf32>,
    %c0_157 = arith.constant 0 : index
    %c0_158 = arith.constant 0 : index
    %393 = vector.load %arg15[%c0_157, %c0_158] : memref<16x128xf32, #tpu.memory_space<vmem>>, vector<16x128xf32>
    tpu.vector_store %arg15[%c0_157, %c0_158], %389 {strides = array<i32>} : memref<16x128xf32, #tpu.memory_space<vmem>>, vector<16x128xf32>,
    %394 = arith.addf %391, %351 : vector<16x128xf32>
    %395 = arith.index_cast %c3_i32 : i32 to index
    %c0_159 = arith.constant 0 : index
    %c0_160 = arith.constant 0 : index
    %396 = vector.load %arg8[%395, %c0_159, %c0_160] : memref<4x16x128xf32, #tpu.memory_space<vmem>>, vector<1x16x128xf32>
    %397 = vector.shape_cast %396 : vector<1x16x128xf32> to vector<16x128xf32>
    %398 = vector.shape_cast %394 : vector<16x128xf32> to vector<1x16x128xf32>
    tpu.vector_store %arg8[%395, %c0_159, %c0_160], %398 {strides = array<i32>} : memref<4x16x128xf32, #tpu.memory_space<vmem>>, vector<1x16x128xf32>,
    %c4_i32 = arith.constant 4 : i32
    return
  }
  func.func @transform_0(%arg0: i32) -> (i32, i32, i32) {
    %c0_i32 = arith.constant 0 : i32
    %c0_i32_0 = arith.constant 0 : i32
    %c0_i32_1 = arith.constant 0 : i32
    return %arg0, %c0_i32, %c0_i32_0 : i32, i32, i32
  }
  func.func @transform_1(%arg0: i32) -> (i32, i32, i32) {
    %c0_i32 = arith.constant 0 : i32
    %c0_i32_0 = arith.constant 0 : i32
    %c0_i32_1 = arith.constant 0 : i32
    return %arg0, %c0_i32, %c0_i32_0 : i32, i32, i32
  }
  func.func @transform_2(%arg0: i32) -> (i32, i32, i32) {
    %c0_i32 = arith.constant 0 : i32
    %c0_i32_0 = arith.constant 0 : i32
    %c0_i32_1 = arith.constant 0 : i32
    return %arg0, %c0_i32, %c0_i32_0 : i32, i32, i32
  }
  func.func @transform_6(%arg0: i32) -> (i32, i32) {
    %c0_i32 = arith.constant 0 : i32
    %c0_i32_0 = arith.constant 0 : i32
    %c0_i32_1 = arith.constant 0 : i32
    return %c0_i32, %c0_i32_0 : i32, i32
  }
  func.func @transform_7(%arg0: i32) -> (i32, i32, i32) {
    %c0_i32 = arith.constant 0 : i32
    %c0_i32_0 = arith.constant 0 : i32
    %c0_i32_1 = arith.constant 0 : i32
    return %arg0, %c0_i32, %c0_i32_0 : i32, i32, i32
  }
}

</mosaic_0001>

<llo_original>
// kernel: tpu_custom_call.1
$region0: #{tpu_custom_call.1}
  #allocation0 [shape = 'u32[]', space=smem, size = 0x4, offset = 0x4, fixed_abs, tag = 'smem constant byte address 0x4 - core index']
  #allocation1 [shape = 'u32[144,128]{1,0:T(1,128)}', space=vmem, size = 0x12000, scoped, tag = 'internal scratch']
  #allocation2 [shape = 's8[128,512]{1,0:T(32,128)(4,1)}', space=vmem, size = 0x10000, scoped, tag = 'scratch operand']
  #allocation3 [shape = 's8[128,512]{1,0:T(32,128)(4,1)}', space=vmem, size = 0x10000, scoped, tag = 'scratch operand']
  #allocation4 [shape = 's8[128,512]{1,0:T(32,128)(4,1)}', space=vmem, size = 0x10000, scoped, tag = 'scratch operand']
  #allocation5 [shape = 'f32[16,128]{1,0:T(8,128)}', space=vmem, size = 0x2000, scoped, tag = 'scratch operand']
  #allocation6 [shape = 'f32[16,128]{1,0:T(8,128)}', space=vmem, size = 0x2000, scoped, tag = 'scratch operand']
  #allocation7 [shape = 'f32[16,128]{1,0:T(8,128)}', space=vmem, size = 0x2000, scoped, tag = 'scratch operand']
  #allocation8 [shape = 'f32[16,128]{1,0:T(8,128)}', space=vmem, size = 0x2000, scoped, tag = 'scratch operand']
  #allocation9 [shape = 's32[3]{0}', space=sflag, size = 0xc, scoped, tag = 'scratch operand']
  #allocation19 [shape = 's32[]', space=sflag, size = 0x4, offset = 0, fixed_abs, tag = 'sflag constant byte address 0x0 - dummy sync flag']
  #allocation20 [shape = 's32[]', space=sflag, size = 0x4, offset = 0, fixed_abs, tag = 'sflag constant byte address 0x0 - dummy sync flag']
  #allocation21 [shape = 'u32[]', space=smem, size = 0x4, offset = 0x44, fixed_abs, tag = 'smem constant byte address 0x44 - assertion arg 0']
  #allocation22 [shape = 'u32[]', space=smem, size = 0x4, offset = 0x48, fixed_abs, tag = 'smem constant byte address 0x48 - assertion arg 1']
  #allocation23 [shape = 's32[]', space=sflag, size = 0x4, offset = 0, fixed_abs, tag = 'sflag constant byte address 0x0 - dummy sync flag']
  #allocation24 [shape = 's32[]', space=sflag, size = 0x4, offset = 0, fixed_abs, tag = 'sflag constant byte address 0x0 - dummy sync flag']
  #allocation25 [shape = 's32[]', space=sflag, size = 0x4, offset = 0, fixed_abs, tag = 'sflag constant byte address 0x0 - dummy sync flag']
  #allocation26 [shape = 's32[]', space=sflag, size = 0x4, offset = 0, fixed_abs, tag = 'sflag constant byte address 0x0 - dummy sync flag']
  %s0 = inlined_call_operand.hbm [shape: bf16[8,16,512], index: 0, kind: input, shape index: {}]
  %s1 = inlined_call_operand.hbm [shape: f32[8,16,128], index: 1, kind: input, shape index: {}]
  %s2 = inlined_call_operand.hbm [shape: bf16[8,16,128], index: 2, kind: input, shape index: {}]
  %s3 = inlined_call_operand.hbm [shape: s8[128,512], index: 3, kind: input, shape index: {}]
  %s4 = inlined_call_operand.hbm [shape: s8[128,512], index: 4, kind: input, shape index: {}]
  %s5 = inlined_call_operand.hbm [shape: s8[128,512], index: 5, kind: input, shape index: {}]
  %s6 = inlined_call_operand.hbm [shape: f32[4,512], index: 6, kind: input, shape index: {}]
  %s7 = inlined_call_operand.hbm [shape: f32[8,16,128], index: 7, kind: output, shape index: {}]
  %s8 = sld [smem:[#allocation0]]
  $region81: #{tpu_custom_call.1} parent=0
    _
  %s10 = ssub.s32 1, %s8
  %s11 = scalar_select 0, %s10, %s8
  $region1: #{tpu_custom_call.1} parent=0
    #allocation10 [shape = 'u8[131072]{0}', space=vmem, size = 0x20000, scoped, tag = 'input window, operand 0']
    #allocation11 [shape = 's32[2]{0}', space=sflag, size = 0x8, scoped, tag = 'scoped memory for tpu_custom_call.1']
    #allocation12 [shape = 's32[2]{0}', space=sflag, size = 0x8, scoped, tag = 'scoped memory for tpu_custom_call.1']
    #allocation13 [shape = 'u8[65536]{0}', space=vmem, size = 0x10000, scoped, tag = 'input window, operand 1']
    #allocation14 [shape = 's32[2]{0}', space=sflag, size = 0x8, scoped, tag = 'scoped memory for tpu_custom_call.1']
    #allocation15 [shape = 'u8[32768]{0}', space=vmem, size = 0x8000, scoped, tag = 'input window, operand 2']
    #allocation16 [shape = 'u8[8192]{0}', space=vmem, size = 0x2000, scoped, tag = 'input window, operand 6, single buffered']
    #allocation17 [shape = 's32[1]{0}', space=sflag, size = 0x4, scoped, tag = 'scoped memory for tpu_custom_call.1']
    #allocation18 [shape = 'u8[65536]{0}', space=vmem, size = 0x10000, scoped, tag = 'output window, operand 0']
    %12 = vsyncpa [#allocation11], 0
    %s13 = scalar_lea.sflag [#allocation11], 1
    %14 = vsyncpa %s13, 0
    %15 = vsyncpa [#allocation14], 0
    %s16 = scalar_lea.sflag [#allocation14], 1
    %17 = vsyncpa %s16, 0
    %18 = vsyncpa [#allocation17], 0
    %19 = vsyncpa [#allocation12], 0
    %s20 = scalar_lea.sflag [#allocation12], 1
    %21 = vsyncpa %s20, 0
    loop: start=0, step=1, limit=4
    $region2: #{tpu_custom_call.1} parent=1 // loop_pre_header
      _
    $region3: #{tpu_custom_call.1} parent=1 // loop_header
      %s23 = sphi 0, %s27
      %p24 = scmp.ge.s32.totalorder %s23, 4
      %s33 = sphi 0, %s35
      %s36 = sphi 0, %s33
      %s37 = sphi 0, %s36
      %s53 = sphi 0, %s37
      %s59 = sphi 0, %s61
      %s62 = sphi 0, %s59
      %s63 = sphi 0, %s62
      %s79 = sphi 0, %s63
      %s85 = sphi 0, %s87
      %s88 = sphi 0, %s85
      %s89 = sphi 0, %s88
      %s105 = sphi 0, %s89
      %s109 = sphi 0, %s109
      %s111 = sphi 0, %s109
      %s112 = sphi 0, %s111
      %s126 = sphi 0, %s112
      %s132 = sphi 0, %s134
      %s135 = sphi 0, %s132
      %s136 = sphi 0, %s135
      %s152 = sphi 0, %s136
    $region4: #{tpu_custom_call.1} parent=1 // loop_header_branch
      %26 = sbr.rel (%p24) target = $region8
    $region5: #{tpu_custom_call.1} parent=1 // loop_body
      %s28 = ssub.s32 %s23, 1
      %s29 = ssub.s32 %s23, 2
      %s30 = sadd.s32 %s23, 1
      %s31 = ssub.s32 %s23, %s30
      %p32 = scmp.eq.s32.totalorder %s31, 0
      %s34 = sadd.s32 %s33, 1
      %s35 = scalar_select %p32, %s33, %s34
      %p38 = pneg %p32
      %p39 = scmp.eq.s32.totalorder %s23, 1
      %p40 = por %p38, %p39
      %p41 = scmp.ne.s32.totalorder %s33, %s36
      %p42 = scmp.eq.s32.totalorder %s23, 0
      %p43 = por %p41, %p42
      %p44 = scmp.ne.s32.totalorder %s33, %s36
      %p45 = scmp.eq.s32.totalorder %s28, 1
      %p46 = por %p44, %p45
      %p47 = scmp.ne.s32.totalorder %s36, %s37
      %p48 = scmp.eq.s32.totalorder %s28, 0
      %p49 = por %p47, %p48
      %p50 = scmp.ne.s32.totalorder %s36, %s37
      %p51 = scmp.eq.s32.totalorder %s29, 1
      %p52 = por %p50, %p51
      %p54 = scmp.ne.s32.totalorder %s37, %s53
      %p55 = scmp.eq.s32.totalorder %s29, 0
      %p56 = por %p54, %p55
      %s57 = ssub.s32 %s23, %s30
      %p58 = scmp.eq.s32.totalorder %s57, 0
      %s60 = sadd.s32 %s59, 1
      %s61 = scalar_select %p58, %s59, %s60
      %p64 = pneg %p58
      %p65 = scmp.eq.s32.totalorder %s23, 1
      %p66 = por %p64, %p65
      %p67 = scmp.ne.s32.totalorder %s59, %s62
      %p68 = scmp.eq.s32.totalorder %s23, 0
      %p69 = por %p67, %p68
      %p70 = scmp.ne.s32.totalorder %s59, %s62
      %p71 = scmp.eq.s32.totalorder %s28, 1
      %p72 = por %p70, %p71
      %p73 = scmp.ne.s32.totalorder %s62, %s63
      %p74 = scmp.eq.s32.totalorder %s28, 0
      %p75 = por %p73, %p74
      %p76 = scmp.ne.s32.totalorder %s62, %s63
      %p77 = scmp.eq.s32.totalorder %s29, 1
      %p78 = por %p76, %p77
      %p80 = scmp.ne.s32.totalorder %s63, %s79
      %p81 = scmp.eq.s32.totalorder %s29, 0
      %p82 = por %p80, %p81
      %s83 = ssub.s32 %s23, %s30
      %p84 = scmp.eq.s32.totalorder %s83, 0
      %s86 = sadd.s32 %s85, 1
      %s87 = scalar_select %p84, %s85, %s86
      %p90 = pneg %p84
      %p91 = scmp.eq.s32.totalorder %s23, 1
      %p92 = por %p90, %p91
      %p93 = scmp.ne.s32.totalorder %s85, %s88
      %p94 = scmp.eq.s32.totalorder %s23, 0
      %p95 = por %p93, %p94
      %p96 = scmp.ne.s32.totalorder %s85, %s88
      %p97 = scmp.eq.s32.totalorder %s28, 1
      %p98 = por %p96, %p97
      %p99 = scmp.ne.s32.totalorder %s88, %s89
      %p100 = scmp.eq.s32.totalorder %s28, 0
      %p101 = por %p99, %p100
      %p102 = scmp.ne.s32.totalorder %s88, %s89
      %p103 = scmp.eq.s32.totalorder %s29, 1
      %p104 = por %p102, %p103
      %p106 = scmp.ne.s32.totalorder %s89, %s105
      %p107 = scmp.eq.s32.totalorder %s29, 0
      %p108 = por %p106, %p107
      %s110 = sadd.s32 %s109, 1
      %p113 = scmp.eq.s32.totalorder %s23, 1
      %p114 = scmp.ne.s32.totalorder %s109, %s111
      %p115 = scmp.eq.s32.totalorder %s23, 0
      %p116 = por %p114, %p115
      %p117 = scmp.ne.s32.totalorder %s109, %s111
      %p118 = scmp.eq.s32.totalorder %s28, 1
      %p119 = por %p117, %p118
      %p120 = scmp.ne.s32.totalorder %s111, %s112
      %p121 = scmp.eq.s32.totalorder %s28, 0
      %p122 = por %p120, %p121
      %p123 = scmp.ne.s32.totalorder %s111, %s112
      %p124 = scmp.eq.s32.totalorder %s29, 1
      %p125 = por %p123, %p124
      %p127 = scmp.ne.s32.totalorder %s112, %s126
      %p128 = scmp.eq.s32.totalorder %s29, 0
      %p129 = por %p127, %p128
      %s130 = ssub.s32 %s23, %s30
      %p131 = scmp.eq.s32.totalorder %s130, 0
      %s133 = sadd.s32 %s132, 1
      %s134 = scalar_select %p131, %s132, %s133
      %p137 = pneg %p131
      %p138 = scmp.eq.s32.totalorder %s23, 1
      %p139 = por %p137, %p138
      %p140 = scmp.ne.s32.totalorder %s132, %s135
      %p141 = scmp.eq.s32.totalorder %s23, 0
      %p142 = por %p140, %p141
      %p143 = scmp.ne.s32.totalorder %s132, %s135
      %p144 = scmp.eq.s32.totalorder %s28, 1
      %p145 = por %p143, %p144
      %p146 = scmp.ne.s32.totalorder %s135, %s136
      %p147 = scmp.eq.s32.totalorder %s28, 0
      %p148 = por %p146, %p147
      %p149 = scmp.ne.s32.totalorder %s135, %s136
      %p150 = scmp.eq.s32.totalorder %s29, 1
      %p151 = por %p149, %p150
      %p153 = scmp.ne.s32.totalorder %s136, %s152
      %p154 = scmp.eq.s32.totalorder %s29, 0
      %p155 = por %p153, %p154
      %p156 = scmp.le.s32.totalorder 1, %s23
      %p157 = scmp.lt.s32.totalorder %s23, 3
      %p158 = pnand %p156, %p157
      %p159 = pneg %p158
      // Predicated region
      $region9: #{tpu_custom_call.1} parent=5 // pred_check
        _
      $region10: #{tpu_custom_call.1} parent=5 // pred_check_branch
        %161 = sbr.rel (%p158) target = $region12
      $region11: #{tpu_custom_call.1} parent=5 // pred_region
        %s162 = ssub.s32 %s23, 1
        // Predicated region
        $region13: #{tpu_custom_call.1} parent=11 // pred_check
          %p163 = pneg %p122
        $region14: #{tpu_custom_call.1} parent=11 // pred_check_branch
          %165 = sbr.rel (%p163) target = $region16
        $region15: #{tpu_custom_call.1} parent=11 // pred_region
          %s167 = ssub.s32 256, 256
          %168 = vsyncadd [#allocation17], %s167
          %s170 = sshll.u32 [#allocation16], 4
          %s171 = int_to_ptr.vmem [resolvable:$true] %s170
          %173 = dma.hbm_to_vmem [thread:$0]  %s6, 256, %s171, [#allocation17]
        $region16: #{tpu_custom_call.1} parent=11 // pred_fallthru
          _
      $region12: #{tpu_custom_call.1} parent=5 // pred_fallthru
        _
      %p174 = scmp.lt.s32.totalorder %s23, 2
      // Predicated region
      $region17: #{tpu_custom_call.1} parent=5 // pred_check
        %p175 = pneg %p174
      $region18: #{tpu_custom_call.1} parent=5 // pred_check_branch
        %177 = sbr.rel (%p175) target = $region20
      $region19: #{tpu_custom_call.1} parent=5 // pred_region
        // Predicated region
        $region21: #{tpu_custom_call.1} parent=19 // pred_check
          %p178 = pneg %p43
        $region22: #{tpu_custom_call.1} parent=19 // pred_check_branch
          %180 = sbr.rel (%p178) target = $region24
        $region23: #{tpu_custom_call.1} parent=19 // pred_region
          %s181 = sand.u32 %s33, 1
          %s182 = scalar_lea.sflag [#allocation11], %s181
          %s183 = sand.u32 %s33, 1
          %s184 = smul.addr %s183, 128
          %s185 = scalar_lea.vmem [#allocation10], %s184
          %s186 = smul.u32 4, %s23
          %s188 = ssub.s32 2048, 2048
          %189 = vsyncadd %s182, %s188
          %s190 = smul.addr %s186, 8
          %s191 = smul.addr %s190, 64
          %s192 = scalar_lea.hbm %s0, %s191
          %s193 = sshll.u32 %s185, 4
          %s194 = int_to_ptr.vmem [resolvable:$true] %s193
          %199 = dma.hbm_to_vmem [thread:$0]  %s192, 2048, %s194, %s182, 256, 256, 16
        $region24: #{tpu_custom_call.1} parent=19 // pred_fallthru
          _
        // Predicated region
        $region25: #{tpu_custom_call.1} parent=19 // pred_check
          %p200 = pneg %p69
        $region26: #{tpu_custom_call.1} parent=19 // pred_check_branch
          %202 = sbr.rel (%p200) target = $region28
        $region27: #{tpu_custom_call.1} parent=19 // pred_region
          %s203 = sand.u32 %s23, 1
          %s204 = scalar_lea.sflag [#allocation14], %s203
          %s205 = sand.u32 %s59, 1
          %s206 = smul.addr %s205, 64
          %s207 = scalar_lea.vmem [#allocation13], %s206
          %s208 = smul.u32 4, %s23
          %s210 = ssub.s32 1024, 1024
          %211 = vsyncadd %s204, %s210
          %s212 = smul.addr %s208, 2
          %s213 = smul.addr %s212, 128
          %s214 = scalar_lea.hbm %s1, %s213
          %s215 = sshll.u32 %s207, 4
          %s216 = int_to_ptr.vmem [resolvable:$true] %s215
          %221 = dma.hbm_to_vmem [thread:$0]  %s214, 1024, %s216, %s204, 128, 128, 8
        $region28: #{tpu_custom_call.1} parent=19 // pred_fallthru
          _
        // Predicated region
        $region29: #{tpu_custom_call.1} parent=19 // pred_check
          %p222 = pneg %p95
        $region30: #{tpu_custom_call.1} parent=19 // pred_check_branch
          %224 = sbr.rel (%p222) target = $region32
        $region31: #{tpu_custom_call.1} parent=19 // pred_region
          %s225 = sand.u32 %s23, 1
          %s226 = scalar_lea.sflag [#allocation14], %s225
          %s227 = sand.u32 %s85, 1
          %s228 = smul.addr %s227, 32
          %s229 = scalar_lea.vmem [#allocation15], %s228
          %s230 = smul.u32 4, %s23
          %s232 = ssub.s32 512, 512
          %233 = vsyncadd %s226, %s232
          %s234 = smul.addr %s230, 2
          %s235 = smul.addr %s234, 64
          %s236 = scalar_lea.hbm %s2, %s235
          %s237 = sshll.u32 %s229, 4
          %s238 = int_to_ptr.vmem [resolvable:$true] %s237
          %243 = dma.hbm_to_vmem [thread:$0]  %s236, 512, %s238, %s226, 64, 64, 4
        $region32: #{tpu_custom_call.1} parent=19 // pred_fallthru
          _
      $region20: #{tpu_custom_call.1} parent=5 // pred_fallthru
        _
      %p244 = scmp.le.s32.totalorder 1, %s23
      %p245 = scmp.lt.s32.totalorder %s23, 3
      %p246 = pnand %p244, %p245
      %p247 = pneg %p246
      // Predicated region
      $region33: #{tpu_custom_call.1} parent=5 // pred_check
        _
      $region34: #{tpu_custom_call.1} parent=5 // pred_check_branch
        %249 = sbr.rel (%p246) target = $region36
      $region35: #{tpu_custom_call.1} parent=5 // pred_region
        %s250 = ssub.s32 %s23, 1
        %s251 = sand.u32 %s36, 1
        %s252 = scalar_lea.sflag [#allocation11], %s251
        %s253 = sand.u32 %s36, 1
        %s254 = smul.addr %s253, 128
        %s255 = scalar_lea.vmem [#allocation10], %s254
        // Predicated region
        $region37: #{tpu_custom_call.1} parent=35 // pred_check
          %p256 = pneg %p49
        $region38: #{tpu_custom_call.1} parent=35 // pred_check_branch
          %258 = sbr.rel (%p256) target = $region40
        $region39: #{tpu_custom_call.1} parent=35 // pred_region
          %259 = dma.done %s252, 2048
        $region40: #{tpu_custom_call.1} parent=35 // pred_fallthru
          _
        %s260 = sand.u32 %s28, 1
        %s261 = scalar_lea.sflag [#allocation14], %s260
        %s262 = sand.u32 %s62, 1
        %s263 = smul.addr %s262, 64
        %s264 = scalar_lea.vmem [#allocation13], %s263
        // Predicated region
        $region41: #{tpu_custom_call.1} parent=35 // pred_check
          %p265 = pneg %p75
        $region42: #{tpu_custom_call.1} parent=35 // pred_check_branch
          %267 = sbr.rel (%p265) target = $region44
        $region43: #{tpu_custom_call.1} parent=35 // pred_region
          %268 = dma.done %s261, 1024
        $region44: #{tpu_custom_call.1} parent=35 // pred_fallthru
          _
        %s269 = sand.u32 %s28, 1
        %s270 = scalar_lea.sflag [#allocation14], %s269
        %s271 = sand.u32 %s88, 1
        %s272 = smul.addr %s271, 32
        %s273 = scalar_lea.vmem [#allocation15], %s272
        // Predicated region
        $region45: #{tpu_custom_call.1} parent=35 // pred_check
          %p274 = pneg %p101
        $region46: #{tpu_custom_call.1} parent=35 // pred_check_branch
          %276 = sbr.rel (%p274) target = $region48
        $region47: #{tpu_custom_call.1} parent=35 // pred_region
          %277 = dma.done %s270, 512
        $region48: #{tpu_custom_call.1} parent=35 // pred_fallthru
          _
        // Predicated region
        $region49: #{tpu_custom_call.1} parent=35 // pred_check
          %p278 = pneg %p122
        $region50: #{tpu_custom_call.1} parent=35 // pred_check_branch
          %280 = sbr.rel (%p278) target = $region52
        $region51: #{tpu_custom_call.1} parent=35 // pred_region
          %281 = dma.done [#allocation17], 256
        $region52: #{tpu_custom_call.1} parent=35 // pred_fallthru
          _
        %s282 = sand.u32 %s36, 1
        %s283 = scalar_lea.sflag [#allocation11], %s282
        %s284 = sand.u32 %s36, 1
        %s285 = smul.addr %s284, 128
        %s286 = scalar_lea.vmem [#allocation10], %s285
        %p287 = pneg %p49
        %p288 = pneg %p46
        %s289 = sand.u32 %s28, 1
        %s290 = scalar_lea.sflag [#allocation14], %s289
        %s291 = sand.u32 %s62, 1
        %s292 = smul.addr %s291, 64
        %s293 = scalar_lea.vmem [#allocation13], %s292
        %p294 = pneg %p75
        %p295 = pneg %p72
        %s296 = sand.u32 %s28, 1
        %s297 = scalar_lea.sflag [#allocation14], %s296
        %s298 = sand.u32 %s88, 1
        %s299 = smul.addr %s298, 32
        %s300 = scalar_lea.vmem [#allocation15], %s299
        %p301 = pneg %p101
        %p302 = pneg %p98
        %p303 = pneg %p122
        %p304 = pneg %p119
        %p305 = pneg %p148
        %p306 = pneg %p145
        %s307 = sand.u32 %s135, 1
        %s308 = scalar_lea.sflag [#allocation12], %s307
        %s309 = sand.u32 %s135, 1
        %s310 = smul.addr %s309, 64
        %s311 = scalar_lea.vmem [#allocation18], %s310
        %s312 = smul.u32 4, %s28
        %s313 = smul.u32 4, %s28
        %s314 = smul.u32 4, %s28
        %s315 = smul.u32 4, %s28
        %p317 = scmp.eq.s32.totalorder %s28, 0
        // Predicated region
        $region53: #{tpu_custom_call.1} parent=35 // pred_check
          %p318 = pneg %p317
        $region54: #{tpu_custom_call.1} parent=35 // pred_check_branch
          %320 = sbr.rel (%p318) target = $region56
        $region55: #{tpu_custom_call.1} parent=35 // pred_region
          // Predicated region
          $region57: #{tpu_custom_call.1} parent=55 // pred_check
            _
          $region58: #{tpu_custom_call.1} parent=55 // pred_check_branch
            %322 = sbr.rel target = $region60
          $region59: #{tpu_custom_call.1} parent=55 // pred_region
            %323 = sst [smem:[#allocation21]] [#allocation20]
            %324 = sst [smem:[#allocation22]] [#allocation19]
          $region60: #{tpu_custom_call.1} parent=55 // pred_fallthru
            _
          %326 = shalt.err (0)
          %s328 = sshll.u32 [#allocation2], 4
          %s329 = int_to_ptr.vmem [resolvable:$true] %s328
          %331 = dma.hbm_to_vmem [thread:$0]  %s3, 2048, %s329, [#allocation9]
          %s332 = scalar_lea.sflag [#allocation9], 1
          // Predicated region
          $region61: #{tpu_custom_call.1} parent=55 // pred_check
            _
          $region62: #{tpu_custom_call.1} parent=55 // pred_check_branch
            %334 = sbr.rel target = $region64
          $region63: #{tpu_custom_call.1} parent=55 // pred_region
            %335 = sst [smem:[#allocation21]] [#allocation24]
            %336 = sst [smem:[#allocation22]] [#allocation23]
          $region64: #{tpu_custom_call.1} parent=55 // pred_fallthru
            _
          %338 = shalt.err (0)
          %s340 = sshll.u32 [#allocation3], 4
          %s341 = int_to_ptr.vmem [resolvable:$true] %s340
          %343 = dma.hbm_to_vmem [thread:$0]  %s4, 2048, %s341, %s332
          %s344 = scalar_lea.sflag [#allocation9], 2
          // Predicated region
          $region65: #{tpu_custom_call.1} parent=55 // pred_check
            _
          $region66: #{tpu_custom_call.1} parent=55 // pred_check_branch
            %346 = sbr.rel target = $region68
          $region67: #{tpu_custom_call.1} parent=55 // pred_region
            %347 = sst [smem:[#allocation21]] [#allocation26]
            %348 = sst [smem:[#allocation22]] [#allocation25]
          $region68: #{tpu_custom_call.1} parent=55 // pred_fallthru
            _
          %350 = shalt.err (0)
          %s352 = sshll.u32 [#allocation4], 4
          %s353 = int_to_ptr.vmem [resolvable:$true] %s352
          %355 = dma.hbm_to_vmem [thread:$0]  %s5, 2048, %s353, %s344
          %356 = vst [vmem:[#allocation5] sm:$0xff] 0.0
          %357 = vst [vmem:[#allocation5 + $0x8] sm:$0xff] 0.0
          %358 = vst [vmem:[#allocation6] sm:$0xff] 0.0
          %359 = vst [vmem:[#allocation6 + $0x8] sm:$0xff] 0.0
          %360 = vst [vmem:[#allocation7] sm:$0xff] 0.0
          %361 = vst [vmem:[#allocation7 + $0x8] sm:$0xff] 0.0
          %362 = vst [vmem:[#allocation8] sm:$0xff] 0.0
          %363 = vst [vmem:[#allocation8 + $0x8] sm:$0xff] 0.0
          %s364 = smul.u32 2, 16
          %s365 = smul.u32 %s364, 4
          %s366 = sshll.u32 %s365, 4
          %367 = dma.done [#allocation9], %s366
          %s368 = sshll.u32 %s365, 4
          %369 = dma.done %s332, %s368
          %s370 = sshll.u32 %s365, 4
          %371 = dma.done %s344, %s370
        $region56: #{tpu_custom_call.1} parent=35 // pred_fallthru
          _
        %v372 = vld [vmem:[#allocation16] ss:$4 sm:$0xf]
        %s373 = scalar_lea.vmem [#allocation16], 1
        %v374 = vld [vmem:[%s373] ss:$4 sm:$0xf]
        %s375 = scalar_lea.vmem [#allocation16], 2
        %v376 = vld [vmem:[%s375] ss:$4 sm:$0xf]
        %s377 = scalar_lea.vmem [#allocation16], 3
        %v378 = vld [vmem:[%s377] ss:$4 sm:$0xf]
        %v379 = vld [vmem:[#allocation7] sm:$0xff]
        %v380 = vld [vmem:[#allocation7 + $0x8] sm:$0xff]
        %v381 = vpack.c.bf16 %v380, %v379
        %v382 = vld [vmem:[#allocation4] sm:$0xff]
        %v383 = vld [vmem:[#allocation4 + $0x8] sm:$0xff]
        %v384 = vld [vmem:[#allocation4 + $0x10] sm:$0xff]
        %v385 = vld [vmem:[#allocation4 + $0x18] sm:$0xff]
        %v386 = vld [vmem:[#allocation4 + $0x20] sm:$0xff]
        %v387 = vld [vmem:[#allocation4 + $0x28] sm:$0xff]
        %v388 = vld [vmem:[#allocation4 + $0x30] sm:$0xff]
        %v389 = vld [vmem:[#allocation4 + $0x38] sm:$0xff]
        %v390 = vld [vmem:[#allocation4 + $0x40] sm:$0xff]
        %v391 = vld [vmem:[#allocation4 + $0x48] sm:$0xff]
        %v392 = vld [vmem:[#allocation4 + $0x50] sm:$0xff]
        %v393 = vld [vmem:[#allocation4 + $0x58] sm:$0xff]
        %v394 = vld [vmem:[#allocation4 + $0x60] sm:$0xff]
        %v395 = vld [vmem:[#allocation4 + $0x68] sm:$0xff]
        %v396 = vld [vmem:[#allocation4 + $0x70] sm:$0xff]
        %v397 = vld [vmem:[#allocation4 + $0x78] sm:$0xff]
        %v398 = vunpack.c.l.s8.bf16 %v382
        %v399 = vunpack.c.l.s8.bf16 %v383
        %v400 = vunpack.c.l.s8.bf16 %v384
        %v401 = vunpack.c.l.s8.bf16 %v385
        %v402 = vunpack.c.h.s8.bf16 %v382
        %v403 = vunpack.c.h.s8.bf16 %v383
        %v404 = vunpack.c.h.s8.bf16 %v384
        %v405 = vunpack.c.h.s8.bf16 %v385
        %v406 = vunpack.c.l.s8.bf16 %v386
        %v407 = vunpack.c.l.s8.bf16 %v387
        %v408 = vunpack.c.l.s8.bf16 %v388
        %v409 = vunpack.c.l.s8.bf16 %v389
        %v410 = vunpack.c.h.s8.bf16 %v386
        %v411 = vunpack.c.h.s8.bf16 %v387
        %v412 = vunpack.c.h.s8.bf16 %v388
        %v413 = vunpack.c.h.s8.bf16 %v389
        %v414 = vunpack.c.l.s8.bf16 %v390
        %v415 = vunpack.c.l.s8.bf16 %v391
        %v416 = vunpack.c.l.s8.bf16 %v392
        %v417 = vunpack.c.l.s8.bf16 %v393
        %v418 = vunpack.c.h.s8.bf16 %v390
        %v419 = vunpack.c.h.s8.bf16 %v391
        %v420 = vunpack.c.h.s8.bf16 %v392
        %v421 = vunpack.c.h.s8.bf16 %v393
        %v422 = vunpack.c.l.s8.bf16 %v394
        %v423 = vunpack.c.l.s8.bf16 %v395
        %v424 = vunpack.c.l.s8.bf16 %v396
        %v425 = vunpack.c.l.s8.bf16 %v397
        %v426 = vunpack.c.h.s8.bf16 %v394
        %v427 = vunpack.c.h.s8.bf16 %v395
        %v428 = vunpack.c.h.s8.bf16 %v396
        %v429 = vunpack.c.h.s8.bf16 %v397
        %430 = vmatprep.subr.bf16.mxu0 %v427
        %431 = vmatpush1.bf16.msra.mxu0 %v426
        %432 = vmatprep.subr.bf16.mxu0 %v423
        %433 = vmatpush1.bf16.msra.mxu0 %v422
        %434 = vmatprep.subr.bf16.mxu0 %v419
        %435 = vmatpush1.bf16.msra.mxu0 %v418
        %436 = vmatprep.subr.bf16.mxu0 %v415
        %437 = vmatpush1.bf16.msra.mxu0 %v414
        %438 = vmatprep.subr.bf16.mxu0 %v411
        %439 = vmatpush1.bf16.msra.mxu0 %v410
        %440 = vmatprep.subr.bf16.mxu0 %v407
        %441 = vmatpush1.bf16.msra.mxu0 %v406
        %442 = vmatprep.subr.bf16.mxu0 %v403
        %443 = vmatpush1.bf16.msra.mxu0 %v402
        %444 = vmatprep.subr.bf16.mxu0 %v399
        %445 = vmatpush1.bf16.msra.mxu0 %v398
        %446 = vmatprep.subr.bf16.mxu0 0
        %447 = vmatpush2.bf16.msra.mxu0 0
        %448 = vmatprep.subr.bf16.mxu0 0
        %449 = vmatpush2.bf16.msra.mxu0 0
        %450 = vmatprep.subr.bf16.mxu0 0
        %451 = vmatpush2.bf16.msra.mxu0 0
        %452 = vmatprep.subr.bf16.mxu0 0
        %453 = vmatpush2.bf16.msra.mxu0 0
        %454 = vmatprep.subr.bf16.mxu0 0
        %455 = vmatpush2.bf16.msra.mxu0 0
        %456 = vmatprep.subr.bf16.mxu0 0
        %457 = vmatpush2.bf16.msra.mxu0 0
        %458 = vmatprep.subr.bf16.mxu0 0
        %459 = vmatpush2.bf16.msra.mxu0 0
        %460 = vmatprep.subr.bf16.mxu0 0
        %461 = vmatpush2.bf16.msra.mxu0 0
        %462 = vmatprep.mubr.bf16.mxu0 0
        %463 = vmatmul.mubr.bf16.gmra.mxu0 %v381
        %v464 = vpop.f32.mrf.mxu0
        %v465 = vadd.f32 0.0, %v464
        %v466 = vpop.f32.mrf.mxu0
        %v467 = vadd.f32 0.0, %v466
        %v468 = vpop.f32.mrf.mxu0
        %v469 = vadd.f32 0.0, %v468
        %v470 = vpop.f32.mrf.mxu0
        %v471 = vadd.f32 0.0, %v470
        %472 = vdwg.mxu0
        %473 = vmatprep.subr.bf16.mxu0 %v429
        %474 = vmatpush1.bf16.msra.mxu0 %v428
        %475 = vmatprep.subr.bf16.mxu0 %v425
        %476 = vmatpush1.bf16.msra.mxu0 %v424
        %477 = vmatprep.subr.bf16.mxu0 %v421
        %478 = vmatpush1.bf16.msra.mxu0 %v420
        %479 = vmatprep.subr.bf16.mxu0 %v417
        %480 = vmatpush1.bf16.msra.mxu0 %v416
        %481 = vmatprep.subr.bf16.mxu0 %v413
        %482 = vmatpush1.bf16.msra.mxu0 %v412
        %483 = vmatprep.subr.bf16.mxu0 %v409
        %484 = vmatpush1.bf16.msra.mxu0 %v408
        %485 = vmatprep.subr.bf16.mxu0 %v405
        %486 = vmatpush1.bf16.msra.mxu0 %v404
        %487 = vmatprep.subr.bf16.mxu0 %v401
        %488 = vmatpush1.bf16.msra.mxu0 %v400
        %489 = vmatprep.subr.bf16.mxu0 0
        %490 = vmatpush2.bf16.msra.mxu0 0
        %491 = vmatprep.subr.bf16.mxu0 0
        %492 = vmatpush2.bf16.msra.mxu0 0
        %493 = vmatprep.subr.bf16.mxu0 0
        %494 = vmatpush2.bf16.msra.mxu0 0
        %495 = vmatprep.subr.bf16.mxu0 0
        %496 = vmatpush2.bf16.msra.mxu0 0
        %497 = vmatprep.subr.bf16.mxu0 0
        %498 = vmatpush2.bf16.msra.mxu0 0
        %499 = vmatprep.subr.bf16.mxu0 0
        %500 = vmatpush2.bf16.msra.mxu0 0
        %501 = vmatprep.subr.bf16.mxu0 0
        %502 = vmatpush2.bf16.msra.mxu0 0
        %503 = vmatprep.subr.bf16.mxu0 0
        %504 = vmatpush2.bf16.msra.mxu0 0
        %505 = vmatprep.mubr.bf16.mxu0 0
        %506 = vmatmul.mubr.bf16.gmra.mxu0 %v381
        %v507 = vpop.f32.mrf.mxu0
        %v508 = vadd.f32 0.0, %v507
        %v509 = vpop.f32.mrf.mxu0
        %v510 = vadd.f32 0.0, %v509
        %v511 = vpop.f32.mrf.mxu0
        %v512 = vadd.f32 0.0, %v511
        %v513 = vpop.f32.mrf.mxu0
        %v514 = vadd.f32 0.0, %v513
        %515 = vdwg.mxu0
        %v517 = vlaneseq
        %v518 = vshrl.u32 %v517, 7
        %v519 = vsub.s32 0, %v518
        %v520 = vrot.slane %v376, %v519
        %v521 = vlaneseq
        %v522 = vshrl.u32 %v521, 7
        %v523 = vsub.s32 1, %v522
        %v524 = vrot.slane %v376, %v523
        %v525 = vlaneseq
        %v526 = vshrl.u32 %v525, 7
        %v527 = vsub.s32 2, %v526
        %v528 = vrot.slane %v376, %v527
        %v529 = vlaneseq
        %v530 = vshrl.u32 %v529, 7
        %v531 = vsub.s32 3, %v530
        %v532 = vrot.slane %v376, %v531
        %v537 = vmul.f32 %v465, %v520
        %v538 = vmul.f32 %v467, %v524
        %v539 = vmul.f32 %v508, %v528
        %v540 = vmul.f32 %v510, %v532
        %v541 = vmul.f32 %v469, %v520
        %v542 = vmul.f32 %v471, %v524
        %v543 = vmul.f32 %v512, %v528
        %v544 = vmul.f32 %v514, %v532
        %v545 = vld [vmem:[#allocation5] sm:$0xff]
        %v546 = vld [vmem:[#allocation5 + $0x8] sm:$0xff]
        %v547 = vpack.c.bf16 %v546, %v545
        %v548 = vld [vmem:[#allocation2] sm:$0xff]
        %v549 = vld [vmem:[#allocation2 + $0x8] sm:$0xff]
        %v550 = vld [vmem:[#allocation2 + $0x10] sm:$0xff]
        %v551 = vld [vmem:[#allocation2 + $0x18] sm:$0xff]
        %v552 = vld [vmem:[#allocation2 + $0x20] sm:$0xff]
        %v553 = vld [vmem:[#allocation2 + $0x28] sm:$0xff]
        %v554 = vld [vmem:[#allocation2 + $0x30] sm:$0xff]
        %v555 = vld [vmem:[#allocation2 + $0x38] sm:$0xff]
        %v556 = vld [vmem:[#allocation2 + $0x40] sm:$0xff]
        %v557 = vld [vmem:[#allocation2 + $0x48] sm:$0xff]
        %v558 = vld [vmem:[#allocation2 + $0x50] sm:$0xff]
        %v559 = vld [vmem:[#allocation2 + $0x58] sm:$0xff]
        %v560 = vld [vmem:[#allocation2 + $0x60] sm:$0xff]
        %v561 = vld [vmem:[#allocation2 + $0x68] sm:$0xff]
        %v562 = vld [vmem:[#allocation2 + $0x70] sm:$0xff]
        %v563 = vld [vmem:[#allocation2 + $0x78] sm:$0xff]
        %v564 = vunpack.c.l.s8.bf16 %v548
        %v565 = vunpack.c.l.s8.bf16 %v549
        %v566 = vunpack.c.l.s8.bf16 %v550
        %v567 = vunpack.c.l.s8.bf16 %v551
        %v568 = vunpack.c.h.s8.bf16 %v548
        %v569 = vunpack.c.h.s8.bf16 %v549
        %v570 = vunpack.c.h.s8.bf16 %v550
        %v571 = vunpack.c.h.s8.bf16 %v551
        %v572 = vunpack.c.l.s8.bf16 %v552
        %v573 = vunpack.c.l.s8.bf16 %v553
        %v574 = vunpack.c.l.s8.bf16 %v554
        %v575 = vunpack.c.l.s8.bf16 %v555
        %v576 = vunpack.c.h.s8.bf16 %v552
        %v577 = vunpack.c.h.s8.bf16 %v553
        %v578 = vunpack.c.h.s8.bf16 %v554
        %v579 = vunpack.c.h.s8.bf16 %v555
        %v580 = vunpack.c.l.s8.bf16 %v556
        %v581 = vunpack.c.l.s8.bf16 %v557
        %v582 = vunpack.c.l.s8.bf16 %v558
        %v583 = vunpack.c.l.s8.bf16 %v559
        %v584 = vunpack.c.h.s8.bf16 %v556
        %v585 = vunpack.c.h.s8.bf16 %v557
        %v586 = vunpack.c.h.s8.bf16 %v558
        %v587 = vunpack.c.h.s8.bf16 %v559
        %v588 = vunpack.c.l.s8.bf16 %v560
        %v589 = vunpack.c.l.s8.bf16 %v561
        %v590 = vunpack.c.l.s8.bf16 %v562
        %v591 = vunpack.c.l.s8.bf16 %v563
        %v592 = vunpack.c.h.s8.bf16 %v560
        %v593 = vunpack.c.h.s8.bf16 %v561
        %v594 = vunpack.c.h.s8.bf16 %v562
        %v595 = vunpack.c.h.s8.bf16 %v563
        %596 = vmatprep.subr.bf16.mxu0 %v593
        %597 = vmatpush1.bf16.msra.mxu0 %v592
        %598 = vmatprep.subr.bf16.mxu0 %v589
        %599 = vmatpush1.bf16.msra.mxu0 %v588
        %600 = vmatprep.subr.bf16.mxu0 %v585
        %601 = vmatpush1.bf16.msra.mxu0 %v584
        %602 = vmatprep.subr.bf16.mxu0 %v581
        %603 = vmatpush1.bf16.msra.mxu0 %v580
        %604 = vmatprep.subr.bf16.mxu0 %v577
        %605 = vmatpush1.bf16.msra.mxu0 %v576
        %606 = vmatprep.subr.bf16.mxu0 %v573
        %607 = vmatpush1.bf16.msra.mxu0 %v572
        %608 = vmatprep.subr.bf16.mxu0 %v569
        %609 = vmatpush1.bf16.msra.mxu0 %v568
        %610 = vmatprep.subr.bf16.mxu0 %v565
        %611 = vmatpush1.bf16.msra.mxu0 %v564
        %612 = vmatprep.subr.bf16.mxu0 0
        %613 = vmatpush2.bf16.msra.mxu0 0
        %614 = vmatprep.subr.bf16.mxu0 0
        %615 = vmatpush2.bf16.msra.mxu0 0
        %616 = vmatprep.subr.bf16.mxu0 0
        %617 = vmatpush2.bf16.msra.mxu0 0
        %618 = vmatprep.subr.bf16.mxu0 0
        %619 = vmatpush2.bf16.msra.mxu0 0
        %620 = vmatprep.subr.bf16.mxu0 0
        %621 = vmatpush2.bf16.msra.mxu0 0
        %622 = vmatprep.subr.bf16.mxu0 0
        %623 = vmatpush2.bf16.msra.mxu0 0
        %624 = vmatprep.subr.bf16.mxu0 0
        %625 = vmatpush2.bf16.msra.mxu0 0
        %626 = vmatprep.subr.bf16.mxu0 0
        %627 = vmatpush2.bf16.msra.mxu0 0
        %628 = vmatprep.mubr.bf16.mxu0 0
        %629 = vmatmul.mubr.bf16.gmra.mxu0 %v547
        %v630 = vpop.f32.mrf.mxu0
        %v631 = vadd.f32 0.0, %v630
        %v632 = vpop.f32.mrf.mxu0
        %v633 = vadd.f32 0.0, %v632
        %v634 = vpop.f32.mrf.mxu0
        %v635 = vadd.f32 0.0, %v634
        %v636 = vpop.f32.mrf.mxu0
        %v637 = vadd.f32 0.0, %v636
        %638 = vdwg.mxu0
        %639 = vmatprep.subr.bf16.mxu0 %v595
        %640 = vmatpush1.bf16.msra.mxu0 %v594
        %641 = vmatprep.subr.bf16.mxu0 %v591
        %642 = vmatpush1.bf16.msra.mxu0 %v590
        %643 = vmatprep.subr.bf16.mxu0 %v587
        %644 = vmatpush1.bf16.msra.mxu0 %v586
        %645 = vmatprep.subr.bf16.mxu0 %v583
        %646 = vmatpush1.bf16.msra.mxu0 %v582
        %647 = vmatprep.subr.bf16.mxu0 %v579
        %648 = vmatpush1.bf16.msra.mxu0 %v578
        %649 = vmatprep.subr.bf16.mxu0 %v575
        %650 = vmatpush1.bf16.msra.mxu0 %v574
        %651 = vmatprep.subr.bf16.mxu0 %v571
        %652 = vmatpush1.bf16.msra.mxu0 %v570
        %653 = vmatprep.subr.bf16.mxu0 %v567
        %654 = vmatpush1.bf16.msra.mxu0 %v566
        %655 = vmatprep.subr.bf16.mxu0 0
        %656 = vmatpush2.bf16.msra.mxu0 0
        %657 = vmatprep.subr.bf16.mxu0 0
        %658 = vmatpush2.bf16.msra.mxu0 0
        %659 = vmatprep.subr.bf16.mxu0 0
        %660 = vmatpush2.bf16.msra.mxu0 0
        %661 = vmatprep.subr.bf16.mxu0 0
        %662 = vmatpush2.bf16.msra.mxu0 0
        %663 = vmatprep.subr.bf16.mxu0 0
        %664 = vmatpush2.bf16.msra.mxu0 0
        %665 = vmatprep.subr.bf16.mxu0 0
        %666 = vmatpush2.bf16.msra.mxu0 0
        %667 = vmatprep.subr.bf16.mxu0 0
        %668 = vmatpush2.bf16.msra.mxu0 0
        %669 = vmatprep.subr.bf16.mxu0 0
        %670 = vmatpush2.bf16.msra.mxu0 0
        %671 = vmatprep.mubr.bf16.mxu0 0
        %672 = vmatmul.mubr.bf16.gmra.mxu0 %v547
        %v673 = vpop.f32.mrf.mxu0
        %v674 = vadd.f32 0.0, %v673
        %v675 = vpop.f32.mrf.mxu0
        %v676 = vadd.f32 0.0, %v675
        %v677 = vpop.f32.mrf.mxu0
        %v678 = vadd.f32 0.0, %v677
        %v679 = vpop.f32.mrf.mxu0
        %v680 = vadd.f32 0.0, %v679
        %681 = vdwg.mxu0
        %v683 = vlaneseq
        %v684 = vshrl.u32 %v683, 7
        %v685 = vsub.s32 0, %v684
        %v686 = vrot.slane %v372, %v685
        %v687 = vlaneseq
        %v688 = vshrl.u32 %v687, 7
        %v689 = vsub.s32 1, %v688
        %v690 = vrot.slane %v372, %v689
        %v691 = vlaneseq
        %v692 = vshrl.u32 %v691, 7
        %v693 = vsub.s32 2, %v692
        %v694 = vrot.slane %v372, %v693
        %v695 = vlaneseq
        %v696 = vshrl.u32 %v695, 7
        %v697 = vsub.s32 3, %v696
        %v698 = vrot.slane %v372, %v697
        %v703 = vmul.f32 %v631, %v686
        %v704 = vmul.f32 %v633, %v690
        %v705 = vmul.f32 %v674, %v694
        %v706 = vmul.f32 %v676, %v698
        %v707 = vmul.f32 %v635, %v686
        %v708 = vmul.f32 %v637, %v690
        %v709 = vmul.f32 %v678, %v694
        %v710 = vmul.f32 %v680, %v698
        %v711 = vld [vmem:[%s255] sm:$0xff]
        %v712 = vld [vmem:[%s255 + $0x8] sm:$0xff]
        %v713 = vld [vmem:[%s255 + $0x10] sm:$0xff]
        %v714 = vld [vmem:[%s255 + $0x18] sm:$0xff]
        %v715 = vunpack.c.l.bf16 %v711
        %v716 = vunpack.c.h.bf16 %v711
        %v717 = vunpack.c.l.bf16 %v712
        %v718 = vunpack.c.h.bf16 %v712
        %v719 = vunpack.c.l.bf16 %v713
        %v720 = vunpack.c.h.bf16 %v713
        %v721 = vunpack.c.l.bf16 %v714
        %v722 = vunpack.c.h.bf16 %v714
        %v723 = vadd.f32 %v703, %v715
        %v724 = vadd.f32 %v704, %v716
        %v725 = vadd.f32 %v705, %v717
        %v726 = vadd.f32 %v706, %v718
        %v727 = vadd.f32 %v707, %v719
        %v728 = vadd.f32 %v708, %v720
        %v729 = vadd.f32 %v709, %v721
        %v730 = vadd.f32 %v710, %v722
        %v731 = vld [vmem:[#allocation6] sm:$0xff]
        %v732 = vld [vmem:[#allocation6 + $0x8] sm:$0xff]
        %v733 = vxor.u32 %v723, 2147483648
        %v734 = vxor.u32 %v727, 2147483648
        %v735 = vmul.f32 %v733, 1.442695
        %v736 = vpow.pop %v735
        %v737 = vmul.f32 %v734, 1.442695
        %v738 = vpow.pop %v737
        %v739 = vadd.f32 %v736, 1.0
        %v740 = vadd.f32 %v738, 1.0
        %v741 = vrcp.pop %v739
        %v742 = vmul.f32 1.0, %v741
        %v743 = vrcp.pop %v740
        %v744 = vmul.f32 1.0, %v743
        %v745 = vxor.u32 %v724, 2147483648
        %v746 = vxor.u32 %v728, 2147483648
        %v747 = vmul.f32 %v745, 1.442695
        %v748 = vpow.pop %v747
        %v749 = vmul.f32 %v746, 1.442695
        %v750 = vpow.pop %v749
        %v751 = vadd.f32 %v748, 1.0
        %v752 = vadd.f32 %v750, 1.0
        %v753 = vrcp.pop %v751
        %v754 = vmul.f32 1.0, %v753
        %v755 = vrcp.pop %v752
        %v756 = vmul.f32 1.0, %v755
        %v757 = vtanh.pop %v725
        %v758 = vtanh.pop %v729
        %v759 = vxor.u32 %v726, 2147483648
        %v760 = vxor.u32 %v730, 2147483648
        %v761 = vmul.f32 %v759, 1.442695
        %v762 = vpow.pop %v761
        %v763 = vmul.f32 %v760, 1.442695
        %v764 = vpow.pop %v763
        %v765 = vadd.f32 %v762, 1.0
        %v766 = vadd.f32 %v764, 1.0
        %v767 = vrcp.pop %v765
        %v768 = vmul.f32 1.0, %v767
        %v769 = vrcp.pop %v766
        %v770 = vmul.f32 1.0, %v769
        %v771 = vmul.f32 %v754, %v731
        %v772 = vmul.f32 %v756, %v732
        %v773 = vmul.f32 %v742, %v757
        %v774 = vmul.f32 %v744, %v758
        %v775 = vadd.f32 %v771, %v773
        %v776 = vadd.f32 %v772, %v774
        %v777 = vtanh.pop %v775
        %v778 = vtanh.pop %v776
        %v779 = vmul.f32 %v768, %v777
        %v780 = vmul.f32 %v770, %v778
        %781 = vst [vmem:[#allocation5] sm:$0xff] %v779
        %782 = vst [vmem:[#allocation5 + $0x8] sm:$0xff] %v780
        %783 = vst [vmem:[#allocation6] sm:$0xff] %v775
        %784 = vst [vmem:[#allocation6 + $0x8] sm:$0xff] %v776
        %v785 = vld [vmem:[%s264] sm:$0xff]
        %v786 = vld [vmem:[%s264 + $0x8] sm:$0xff]
        %v787 = vadd.f32 %v779, %v785
        %v788 = vadd.f32 %v780, %v786
        %v789 = vld [vmem:[%s273] sm:$0xf]
        %v790 = vld [vmem:[%s273 + $0x4] sm:$0xf]
        %v791 = vunpack.c.l.bf16 %v789
        %v792 = vunpack.c.l.bf16 %v790
        %v793 = vmul.f32 %v787, %v791
        %v794 = vmul.f32 %v788, %v792
        %v796 = vlaneseq
        %v797 = vshrl.u32 %v796, 7
        %v798 = vsub.s32 0, %v797
        %v799 = vrot.slane %v378, %v798
        %v800 = vlaneseq
        %v801 = vshrl.u32 %v800, 7
        %v802 = vsub.s32 1, %v801
        %v803 = vrot.slane %v378, %v802
        %v804 = vlaneseq
        %v805 = vshrl.u32 %v804, 7
        %v806 = vsub.s32 2, %v805
        %v807 = vrot.slane %v378, %v806
        %v808 = vlaneseq
        %v809 = vshrl.u32 %v808, 7
        %v810 = vsub.s32 3, %v809
        %v811 = vrot.slane %v378, %v810
        %v816 = vadd.f32 %v537, %v799
        %v817 = vadd.f32 %v538, %v803
        %v818 = vadd.f32 %v539, %v807
        %v819 = vadd.f32 %v540, %v811
        %v820 = vadd.f32 %v541, %v799
        %v821 = vadd.f32 %v542, %v803
        %v822 = vadd.f32 %v543, %v807
        %v823 = vadd.f32 %v544, %v811
        %v824 = vpack.c.bf16 %v794, %v793
        %v825 = vld [vmem:[#allocation3] sm:$0xff]
        %v826 = vld [vmem:[#allocation3 + $0x8] sm:$0xff]
        %v827 = vld [vmem:[#allocation3 + $0x10] sm:$0xff]
        %v828 = vld [vmem:[#allocation3 + $0x18] sm:$0xff]
        %v829 = vld [vmem:[#allocation3 + $0x20] sm:$0xff]
        %v830 = vld [vmem:[#allocation3 + $0x28] sm:$0xff]
        %v831 = vld [vmem:[#allocation3 + $0x30] sm:$0xff]
        %v832 = vld [vmem:[#allocation3 + $0x38] sm:$0xff]
        %v833 = vld [vmem:[#allocation3 + $0x40] sm:$0xff]
        %v834 = vld [vmem:[#allocation3 + $0x48] sm:$0xff]
        %v835 = vld [vmem:[#allocation3 + $0x50] sm:$0xff]
        %v836 = vld [vmem:[#allocation3 + $0x58] sm:$0xff]
        %v837 = vld [vmem:[#allocation3 + $0x60] sm:$0xff]
        %v838 = vld [vmem:[#allocation3 + $0x68] sm:$0xff]
        %v839 = vld [vmem:[#allocation3 + $0x70] sm:$0xff]
        %v840 = vld [vmem:[#allocation3 + $0x78] sm:$0xff]
        %v841 = vunpack.c.l.s8.bf16 %v825
        %v842 = vunpack.c.l.s8.bf16 %v826
        %v843 = vunpack.c.l.s8.bf16 %v827
        %v844 = vunpack.c.l.s8.bf16 %v828
        %v845 = vunpack.c.h.s8.bf16 %v825
        %v846 = vunpack.c.h.s8.bf16 %v826
        %v847 = vunpack.c.h.s8.bf16 %v827
        %v848 = vunpack.c.h.s8.bf16 %v828
        %v849 = vunpack.c.l.s8.bf16 %v829
        %v850 = vunpack.c.l.s8.bf16 %v830
        %v851 = vunpack.c.l.s8.bf16 %v831
        %v852 = vunpack.c.l.s8.bf16 %v832
        %v853 = vunpack.c.h.s8.bf16 %v829
        %v854 = vunpack.c.h.s8.bf16 %v830
        %v855 = vunpack.c.h.s8.bf16 %v831
        %v856 = vunpack.c.h.s8.bf16 %v832
        %v857 = vunpack.c.l.s8.bf16 %v833
        %v858 = vunpack.c.l.s8.bf16 %v834
        %v859 = vunpack.c.l.s8.bf16 %v835
        %v860 = vunpack.c.l.s8.bf16 %v836
        %v861 = vunpack.c.h.s8.bf16 %v833
        %v862 = vunpack.c.h.s8.bf16 %v834
        %v863 = vunpack.c.h.s8.bf16 %v835
        %v864 = vunpack.c.h.s8.bf16 %v836
        %v865 = vunpack.c.l.s8.bf16 %v837
        %v866 = vunpack.c.l.s8.bf16 %v838
        %v867 = vunpack.c.l.s8.bf16 %v839
        %v868 = vunpack.c.l.s8.bf16 %v840
        %v869 = vunpack.c.h.s8.bf16 %v837
        %v870 = vunpack.c.h.s8.bf16 %v838
        %v871 = vunpack.c.h.s8.bf16 %v839
        %v872 = vunpack.c.h.s8.bf16 %v840
        %873 = vmatprep.subr.bf16.mxu0 %v870
        %874 = vmatpush1.bf16.msra.mxu0 %v869
        %875 = vmatprep.subr.bf16.mxu0 %v866
        %876 = vmatpush1.bf16.msra.mxu0 %v865
        %877 = vmatprep.subr.bf16.mxu0 %v862
        %878 = vmatpush1.bf16.msra.mxu0 %v861
        %879 = vmatprep.subr.bf16.mxu0 %v858
        %880 = vmatpush1.bf16.msra.mxu0 %v857
        %881 = vmatprep.subr.bf16.mxu0 %v854
        %882 = vmatpush1.bf16.msra.mxu0 %v853
        %883 = vmatprep.subr.bf16.mxu0 %v850
        %884 = vmatpush1.bf16.msra.mxu0 %v849
        %885 = vmatprep.subr.bf16.mxu0 %v846
        %886 = vmatpush1.bf16.msra.mxu0 %v845
        %887 = vmatprep.subr.bf16.mxu0 %v842
        %888 = vmatpush1.bf16.msra.mxu0 %v841
        %889 = vmatprep.subr.bf16.mxu0 0
        %890 = vmatpush2.bf16.msra.mxu0 0
        %891 = vmatprep.subr.bf16.mxu0 0
        %892 = vmatpush2.bf16.msra.mxu0 0
        %893 = vmatprep.subr.bf16.mxu0 0
        %894 = vmatpush2.bf16.msra.mxu0 0
        %895 = vmatprep.subr.bf16.mxu0 0
        %896 = vmatpush2.bf16.msra.mxu0 0
        %897 = vmatprep.subr.bf16.mxu0 0
        %898 = vmatpush2.bf16.msra.mxu0 0
        %899 = vmatprep.subr.bf16.mxu0 0
        %900 = vmatpush2.bf16.msra.mxu0 0
        %901 = vmatprep.subr.bf16.mxu0 0
        %902 = vmatpush2.bf16.msra.mxu0 0
        %903 = vmatprep.subr.bf16.mxu0 0
        %904 = vmatpush2.bf16.msra.mxu0 0
        %905 = vmatprep.mubr.bf16.mxu0 0
        %906 = vmatmul.mubr.bf16.gmra.mxu0 %v824
        %v907 = vpop.f32.mrf.mxu0
        %v908 = vadd.f32 0.0, %v907
        %v909 = vpop.f32.mrf.mxu0
        %v910 = vadd.f32 0.0, %v909
        %v911 = vpop.f32.mrf.mxu0
        %v912 = vadd.f32 0.0, %v911
        %v913 = vpop.f32.mrf.mxu0
        %v914 = vadd.f32 0.0, %v913
        %915 = vdwg.mxu0
        %916 = vmatprep.subr.bf16.mxu0 %v872
        %917 = vmatpush1.bf16.msra.mxu0 %v871
        %918 = vmatprep.subr.bf16.mxu0 %v868
        %919 = vmatpush1.bf16.msra.mxu0 %v867
        %920 = vmatprep.subr.bf16.mxu0 %v864
        %921 = vmatpush1.bf16.msra.mxu0 %v863
        %922 = vmatprep.subr.bf16.mxu0 %v860
        %923 = vmatpush1.bf16.msra.mxu0 %v859
        %924 = vmatprep.subr.bf16.mxu0 %v856
        %925 = vmatpush1.bf16.msra.mxu0 %v855
        %926 = vmatprep.subr.bf16.mxu0 %v852
        %927 = vmatpush1.bf16.msra.mxu0 %v851
        %928 = vmatprep.subr.bf16.mxu0 %v848
        %929 = vmatpush1.bf16.msra.mxu0 %v847
        %930 = vmatprep.subr.bf16.mxu0 %v844
        %931 = vmatpush1.bf16.msra.mxu0 %v843
        %932 = vmatprep.subr.bf16.mxu0 0
        %933 = vmatpush2.bf16.msra.mxu0 0
        %934 = vmatprep.subr.bf16.mxu0 0
        %935 = vmatpush2.bf16.msra.mxu0 0
        %936 = vmatprep.subr.bf16.mxu0 0
        %937 = vmatpush2.bf16.msra.mxu0 0
        %938 = vmatprep.subr.bf16.mxu0 0
        %939 = vmatpush2.bf16.msra.mxu0 0
        %940 = vmatprep.subr.bf16.mxu0 0
        %941 = vmatpush2.bf16.msra.mxu0 0
        %942 = vmatprep.subr.bf16.mxu0 0
        %943 = vmatpush2.bf16.msra.mxu0 0
        %944 = vmatprep.subr.bf16.mxu0 0
        %945 = vmatpush2.bf16.msra.mxu0 0
        %946 = vmatprep.subr.bf16.mxu0 0
        %947 = vmatpush2.bf16.msra.mxu0 0
        %948 = vmatprep.mubr.bf16.mxu0 0
        %949 = vmatmul.mubr.bf16.gmra.mxu0 %v824
        %v950 = vpop.f32.mrf.mxu0
        %v951 = vadd.f32 0.0, %v950
        %v952 = vpop.f32.mrf.mxu0
        %v953 = vadd.f32 0.0, %v952
        %v954 = vpop.f32.mrf.mxu0
        %v955 = vadd.f32 0.0, %v954
        %v956 = vpop.f32.mrf.mxu0
        %v957 = vadd.f32 0.0, %v956
        %958 = vdwg.mxu0
        %v960 = vlaneseq
        %v961 = vshrl.u32 %v960, 7
        %v962 = vsub.s32 0, %v961
        %v963 = vrot.slane %v374, %v962
        %v964 = vlaneseq
        %v965 = vshrl.u32 %v964, 7
        %v966 = vsub.s32 1, %v965
        %v967 = vrot.slane %v374, %v966
        %v968 = vlaneseq
        %v969 = vshrl.u32 %v968, 7
        %v970 = vsub.s32 2, %v969
        %v971 = vrot.slane %v374, %v970
        %v972 = vlaneseq
        %v973 = vshrl.u32 %v972, 7
        %v974 = vsub.s32 3, %v973
        %v975 = vrot.slane %v374, %v974
        %v980 = vmul.f32 %v908, %v963
        %v981 = vmul.f32 %v910, %v967
        %v982 = vmul.f32 %v951, %v971
        %v983 = vmul.f32 %v953, %v975
        %v984 = vmul.f32 %v912, %v963
        %v985 = vmul.f32 %v914, %v967
        %v986 = vmul.f32 %v955, %v971
        %v987 = vmul.f32 %v957, %v975
        %v988 = vadd.f32 %v816, %v980
        %v989 = vadd.f32 %v817, %v981
        %v990 = vadd.f32 %v818, %v982
        %v991 = vadd.f32 %v819, %v983
        %v992 = vadd.f32 %v820, %v984
        %v993 = vadd.f32 %v821, %v985
        %v994 = vadd.f32 %v822, %v986
        %v995 = vadd.f32 %v823, %v987
        %v996 = vld [vmem:[#allocation8] sm:$0xff]
        %v997 = vld [vmem:[#allocation8 + $0x8] sm:$0xff]
        %v998 = vxor.u32 %v988, 2147483648
        %v999 = vxor.u32 %v992, 2147483648
        %v1000 = vmul.f32 %v998, 1.442695
        %v1001 = vpow.pop %v1000
        %v1002 = vmul.f32 %v999, 1.442695
        %v1003 = vpow.pop %v1002
        %v1004 = vadd.f32 %v1001, 1.0
        %v1005 = vadd.f32 %v1003, 1.0
        %v1006 = vrcp.pop %v1004
        %v1007 = vmul.f32 1.0, %v1006
        %v1008 = vrcp.pop %v1005
        %v1009 = vmul.f32 1.0, %v1008
        %v1010 = vxor.u32 %v989, 2147483648
        %v1011 = vxor.u32 %v993, 2147483648
        %v1012 = vmul.f32 %v1010, 1.442695
        %v1013 = vpow.pop %v1012
        %v1014 = vmul.f32 %v1011, 1.442695
        %v1015 = vpow.pop %v1014
        %v1016 = vadd.f32 %v1013, 1.0
        %v1017 = vadd.f32 %v1015, 1.0
        %v1018 = vrcp.pop %v1016
        %v1019 = vmul.f32 1.0, %v1018
        %v1020 = vrcp.pop %v1017
        %v1021 = vmul.f32 1.0, %v1020
        %v1022 = vtanh.pop %v990
        %v1023 = vtanh.pop %v994
        %v1024 = vxor.u32 %v991, 2147483648
        %v1025 = vxor.u32 %v995, 2147483648
        %v1026 = vmul.f32 %v1024, 1.442695
        %v1027 = vpow.pop %v1026
        %v1028 = vmul.f32 %v1025, 1.442695
        %v1029 = vpow.pop %v1028
        %v1030 = vadd.f32 %v1027, 1.0
        %v1031 = vadd.f32 %v1029, 1.0
        %v1032 = vrcp.pop %v1030
        %v1033 = vmul.f32 1.0, %v1032
        %v1034 = vrcp.pop %v1031
        %v1035 = vmul.f32 1.0, %v1034
        %v1036 = vmul.f32 %v1019, %v996
        %v1037 = vmul.f32 %v1021, %v997
        %v1038 = vmul.f32 %v1007, %v1022
        %v1039 = vmul.f32 %v1009, %v1023
        %v1040 = vadd.f32 %v1036, %v1038
        %v1041 = vadd.f32 %v1037, %v1039
        %v1042 = vtanh.pop %v1040
        %v1043 = vtanh.pop %v1041
        %v1044 = vmul.f32 %v1033, %v1042
        %v1045 = vmul.f32 %v1035, %v1043
        %1046 = vst [vmem:[#allocation7] sm:$0xff] %v1044
        %1047 = vst [vmem:[#allocation7 + $0x8] sm:$0xff] %v1045
        %1048 = vst [vmem:[#allocation8] sm:$0xff] %v1040
        %1049 = vst [vmem:[#allocation8 + $0x8] sm:$0xff] %v1041
        %v1050 = vadd.f32 %v1044, %v787
        %v1051 = vadd.f32 %v1045, %v788
        %1052 = vst [vmem:[%s311] sm:$0xff] %v1050
        %1053 = vst [vmem:[%s311 + $0x8] sm:$0xff] %v1051
        %v1054 = vld [vmem:[#allocation7] sm:$0xff]
        %v1055 = vld [vmem:[#allocation7 + $0x8] sm:$0xff]
        %v1056 = vpack.c.bf16 %v1055, %v1054
        %v1057 = vld [vmem:[#allocation4] sm:$0xff]
        %v1058 = vld [vmem:[#allocation4 + $0x8] sm:$0xff]
        %v1059 = vld [vmem:[#allocation4 + $0x10] sm:$0xff]
        %v1060 = vld [vmem:[#allocation4 + $0x18] sm:$0xff]
        %v1061 = vld [vmem:[#allocation4 + $0x20] sm:$0xff]
        %v1062 = vld [vmem:[#allocation4 + $0x28] sm:$0xff]
        %v1063 = vld [vmem:[#allocation4 + $0x30] sm:$0xff]
        %v1064 = vld [vmem:[#allocation4 + $0x38] sm:$0xff]
        %v1065 = vld [vmem:[#allocation4 + $0x40] sm:$0xff]
        %v1066 = vld [vmem:[#allocation4 + $0x48] sm:$0xff]
        %v1067 = vld [vmem:[#allocation4 + $0x50] sm:$0xff]
        %v1068 = vld [vmem:[#allocation4 + $0x58] sm:$0xff]
        %v1069 = vld [vmem:[#allocation4 + $0x60] sm:$0xff]
        %v1070 = vld [vmem:[#allocation4 + $0x68] sm:$0xff]
        %v1071 = vld [vmem:[#allocation4 + $0x70] sm:$0xff]
        %v1072 = vld [vmem:[#allocation4 + $0x78] sm:$0xff]
        %v1073 = vunpack.c.l.s8.bf16 %v1057
        %v1074 = vunpack.c.l.s8.bf16 %v1058
        %v1075 = vunpack.c.l.s8.bf16 %v1059
        %v1076 = vunpack.c.l.s8.bf16 %v1060
        %v1077 = vunpack.c.h.s8.bf16 %v1057
        %v1078 = vunpack.c.h.s8.bf16 %v1058
        %v1079 = vunpack.c.h.s8.bf16 %v1059
        %v1080 = vunpack.c.h.s8.bf16 %v1060
        %v1081 = vunpack.c.l.s8.bf16 %v1061
        %v1082 = vunpack.c.l.s8.bf16 %v1062
        %v1083 = vunpack.c.l.s8.bf16 %v1063
        %v1084 = vunpack.c.l.s8.bf16 %v1064
        %v1085 = vunpack.c.h.s8.bf16 %v1061
        %v1086 = vunpack.c.h.s8.bf16 %v1062
        %v1087 = vunpack.c.h.s8.bf16 %v1063
        %v1088 = vunpack.c.h.s8.bf16 %v1064
        %v1089 = vunpack.c.l.s8.bf16 %v1065
        %v1090 = vunpack.c.l.s8.bf16 %v1066
        %v1091 = vunpack.c.l.s8.bf16 %v1067
        %v1092 = vunpack.c.l.s8.bf16 %v1068
        %v1093 = vunpack.c.h.s8.bf16 %v1065
        %v1094 = vunpack.c.h.s8.bf16 %v1066
        %v1095 = vunpack.c.h.s8.bf16 %v1067
        %v1096 = vunpack.c.h.s8.bf16 %v1068
        %v1097 = vunpack.c.l.s8.bf16 %v1069
        %v1098 = vunpack.c.l.s8.bf16 %v1070
        %v1099 = vunpack.c.l.s8.bf16 %v1071
        %v1100 = vunpack.c.l.s8.bf16 %v1072
        %v1101 = vunpack.c.h.s8.bf16 %v1069
        %v1102 = vunpack.c.h.s8.bf16 %v1070
        %v1103 = vunpack.c.h.s8.bf16 %v1071
        %v1104 = vunpack.c.h.s8.bf16 %v1072
        %1105 = vmatprep.subr.bf16.mxu0 %v1102
        %1106 = vmatpush1.bf16.msra.mxu0 %v1101
        %1107 = vmatprep.subr.bf16.mxu0 %v1098
        %1108 = vmatpush1.bf16.msra.mxu0 %v1097
        %1109 = vmatprep.subr.bf16.mxu0 %v1094
        %1110 = vmatpush1.bf16.msra.mxu0 %v1093
        %1111 = vmatprep.subr.bf16.mxu0 %v1090
        %1112 = vmatpush1.bf16.msra.mxu0 %v1089
        %1113 = vmatprep.subr.bf16.mxu0 %v1086
        %1114 = vmatpush1.bf16.msra.mxu0 %v1085
        %1115 = vmatprep.subr.bf16.mxu0 %v1082
        %1116 = vmatpush1.bf16.msra.mxu0 %v1081
        %1117 = vmatprep.subr.bf16.mxu0 %v1078
        %1118 = vmatpush1.bf16.msra.mxu0 %v1077
        %1119 = vmatprep.subr.bf16.mxu0 %v1074
        %1120 = vmatpush1.bf16.msra.mxu0 %v1073
        %1121 = vmatprep.subr.bf16.mxu0 0
        %1122 = vmatpush2.bf16.msra.mxu0 0
        %1123 = vmatprep.subr.bf16.mxu0 0
        %1124 = vmatpush2.bf16.msra.mxu0 0
        %1125 = vmatprep.subr.bf16.mxu0 0
        %1126 = vmatpush2.bf16.msra.mxu0 0
        %1127 = vmatprep.subr.bf16.mxu0 0
        %1128 = vmatpush2.bf16.msra.mxu0 0
        %1129 = vmatprep.subr.bf16.mxu0 0
        %1130 = vmatpush2.bf16.msra.mxu0 0
        %1131 = vmatprep.subr.bf16.mxu0 0
        %1132 = vmatpush2.bf16.msra.mxu0 0
        %1133 = vmatprep.subr.bf16.mxu0 0
        %1134 = vmatpush2.bf16.msra.mxu0 0
        %1135 = vmatprep.subr.bf16.mxu0 0
        %1136 = vmatpush2.bf16.msra.mxu0 0
        %1137 = vmatprep.mubr.bf16.mxu0 0
        %1138 = vmatmul.mubr.bf16.gmra.mxu0 %v1056
        %v1139 = vpop.f32.mrf.mxu0
        %v1140 = vadd.f32 0.0, %v1139
        %v1141 = vpop.f32.mrf.mxu0
        %v1142 = vadd.f32 0.0, %v1141
        %v1143 = vpop.f32.mrf.mxu0
        %v1144 = vadd.f32 0.0, %v1143
        %v1145 = vpop.f32.mrf.mxu0
        %v1146 = vadd.f32 0.0, %v1145
        %1147 = vdwg.mxu0
        %1148 = vmatprep.subr.bf16.mxu0 %v1104
        %1149 = vmatpush1.bf16.msra.mxu0 %v1103
        %1150 = vmatprep.subr.bf16.mxu0 %v1100
        %1151 = vmatpush1.bf16.msra.mxu0 %v1099
        %1152 = vmatprep.subr.bf16.mxu0 %v1096
        %1153 = vmatpush1.bf16.msra.mxu0 %v1095
        %1154 = vmatprep.subr.bf16.mxu0 %v1092
        %1155 = vmatpush1.bf16.msra.mxu0 %v1091
        %1156 = vmatprep.subr.bf16.mxu0 %v1088
        %1157 = vmatpush1.bf16.msra.mxu0 %v1087
        %1158 = vmatprep.subr.bf16.mxu0 %v1084
        %1159 = vmatpush1.bf16.msra.mxu0 %v1083
        %1160 = vmatprep.subr.bf16.mxu0 %v1080
        %1161 = vmatpush1.bf16.msra.mxu0 %v1079
        %1162 = vmatprep.subr.bf16.mxu0 %v1076
        %1163 = vmatpush1.bf16.msra.mxu0 %v1075
        %1164 = vmatprep.subr.bf16.mxu0 0
        %1165 = vmatpush2.bf16.msra.mxu0 0
        %1166 = vmatprep.subr.bf16.mxu0 0
        %1167 = vmatpush2.bf16.msra.mxu0 0
        %1168 = vmatprep.subr.bf16.mxu0 0
        %1169 = vmatpush2.bf16.msra.mxu0 0
        %1170 = vmatprep.subr.bf16.mxu0 0
        %1171 = vmatpush2.bf16.msra.mxu0 0
        %1172 = vmatprep.subr.bf16.mxu0 0
        %1173 = vmatpush2.bf16.msra.mxu0 0
        %1174 = vmatprep.subr.bf16.mxu0 0
        %1175 = vmatpush2.bf16.msra.mxu0 0
        %1176 = vmatprep.subr.bf16.mxu0 0
        %1177 = vmatpush2.bf16.msra.mxu0 0
        %1178 = vmatprep.subr.bf16.mxu0 0
        %1179 = vmatpush2.bf16.msra.mxu0 0
        %1180 = vmatprep.mubr.bf16.mxu0 0
        %1181 = vmatmul.mubr.bf16.gmra.mxu0 %v1056
        %v1182 = vpop.f32.mrf.mxu0
        %v1183 = vadd.f32 0.0, %v1182
        %v1184 = vpop.f32.mrf.mxu0
        %v1185 = vadd.f32 0.0, %v1184
        %v1186 = vpop.f32.mrf.mxu0
        %v1187 = vadd.f32 0.0, %v1186
        %v1188 = vpop.f32.mrf.mxu0
        %v1189 = vadd.f32 0.0, %v1188
        %1190 = vdwg.mxu0
        %v1191 = vmul.f32 %v1140, %v520
        %v1192 = vmul.f32 %v1142, %v524
        %v1193 = vmul.f32 %v1183, %v528
        %v1194 = vmul.f32 %v1185, %v532
        %v1195 = vmul.f32 %v1144, %v520
        %v1196 = vmul.f32 %v1146, %v524
        %v1197 = vmul.f32 %v1187, %v528
        %v1198 = vmul.f32 %v1189, %v532
        %v1199 = vld [vmem:[#allocation5] sm:$0xff]
        %v1200 = vld [vmem:[#allocation5 + $0x8] sm:$0xff]
        %v1201 = vpack.c.bf16 %v1200, %v1199
        %v1202 = vld [vmem:[#allocation2] sm:$0xff]
        %v1203 = vld [vmem:[#allocation2 + $0x8] sm:$0xff]
        %v1204 = vld [vmem:[#allocation2 + $0x10] sm:$0xff]
        %v1205 = vld [vmem:[#allocation2 + $0x18] sm:$0xff]
        %v1206 = vld [vmem:[#allocation2 + $0x20] sm:$0xff]
        %v1207 = vld [vmem:[#allocation2 + $0x28] sm:$0xff]
        %v1208 = vld [vmem:[#allocation2 + $0x30] sm:$0xff]
        %v1209 = vld [vmem:[#allocation2 + $0x38] sm:$0xff]
        %v1210 = vld [vmem:[#allocation2 + $0x40] sm:$0xff]
        %v1211 = vld [vmem:[#allocation2 + $0x48] sm:$0xff]
        %v1212 = vld [vmem:[#allocation2 + $0x50] sm:$0xff]
        %v1213 = vld [vmem:[#allocation2 + $0x58] sm:$0xff]
        %v1214 = vld [vmem:[#allocation2 + $0x60] sm:$0xff]
        %v1215 = vld [vmem:[#allocation2 + $0x68] sm:$0xff]
        %v1216 = vld [vmem:[#allocation2 + $0x70] sm:$0xff]
        %v1217 = vld [vmem:[#allocation2 + $0x78] sm:$0xff]
        %v1218 = vunpack.c.l.s8.bf16 %v1202
        %v1219 = vunpack.c.l.s8.bf16 %v1203
        %v1220 = vunpack.c.l.s8.bf16 %v1204
        %v1221 = vunpack.c.l.s8.bf16 %v1205
        %v1222 = vunpack.c.h.s8.bf16 %v1202
        %v1223 = vunpack.c.h.s8.bf16 %v1203
        %v1224 = vunpack.c.h.s8.bf16 %v1204
        %v1225 = vunpack.c.h.s8.bf16 %v1205
        %v1226 = vunpack.c.l.s8.bf16 %v1206
        %v1227 = vunpack.c.l.s8.bf16 %v1207
        %v1228 = vunpack.c.l.s8.bf16 %v1208
        %v1229 = vunpack.c.l.s8.bf16 %v1209
        %v1230 = vunpack.c.h.s8.bf16 %v1206
        %v1231 = vunpack.c.h.s8.bf16 %v1207
        %v1232 = vunpack.c.h.s8.bf16 %v1208
        %v1233 = vunpack.c.h.s8.bf16 %v1209
        %v1234 = vunpack.c.l.s8.bf16 %v1210
        %v1235 = vunpack.c.l.s8.bf16 %v1211
        %v1236 = vunpack.c.l.s8.bf16 %v1212
        %v1237 = vunpack.c.l.s8.bf16 %v1213
        %v1238 = vunpack.c.h.s8.bf16 %v1210
        %v1239 = vunpack.c.h.s8.bf16 %v1211
        %v1240 = vunpack.c.h.s8.bf16 %v1212
        %v1241 = vunpack.c.h.s8.bf16 %v1213
        %v1242 = vunpack.c.l.s8.bf16 %v1214
        %v1243 = vunpack.c.l.s8.bf16 %v1215
        %v1244 = vunpack.c.l.s8.bf16 %v1216
        %v1245 = vunpack.c.l.s8.bf16 %v1217
        %v1246 = vunpack.c.h.s8.bf16 %v1214
        %v1247 = vunpack.c.h.s8.bf16 %v1215
        %v1248 = vunpack.c.h.s8.bf16 %v1216
        %v1249 = vunpack.c.h.s8.bf16 %v1217
        %1250 = vmatprep.subr.bf16.mxu0 %v1247
        %1251 = vmatpush1.bf16.msra.mxu0 %v1246
        %1252 = vmatprep.subr.bf16.mxu0 %v1243
        %1253 = vmatpush1.bf16.msra.mxu0 %v1242
        %1254 = vmatprep.subr.bf16.mxu0 %v1239
        %1255 = vmatpush1.bf16.msra.mxu0 %v1238
        %1256 = vmatprep.subr.bf16.mxu0 %v1235
        %1257 = vmatpush1.bf16.msra.mxu0 %v1234
        %1258 = vmatprep.subr.bf16.mxu0 %v1231
        %1259 = vmatpush1.bf16.msra.mxu0 %v1230
        %1260 = vmatprep.subr.bf16.mxu0 %v1227
        %1261 = vmatpush1.bf16.msra.mxu0 %v1226
        %1262 = vmatprep.subr.bf16.mxu0 %v1223
        %1263 = vmatpush1.bf16.msra.mxu0 %v1222
        %1264 = vmatprep.subr.bf16.mxu0 %v1219
        %1265 = vmatpush1.bf16.msra.mxu0 %v1218
        %1266 = vmatprep.subr.bf16.mxu0 0
        %1267 = vmatpush2.bf16.msra.mxu0 0
        %1268 = vmatprep.subr.bf16.mxu0 0
        %1269 = vmatpush2.bf16.msra.mxu0 0
        %1270 = vmatprep.subr.bf16.mxu0 0
        %1271 = vmatpush2.bf16.msra.mxu0 0
        %1272 = vmatprep.subr.bf16.mxu0 0
        %1273 = vmatpush2.bf16.msra.mxu0 0
        %1274 = vmatprep.subr.bf16.mxu0 0
        %1275 = vmatpush2.bf16.msra.mxu0 0
        %1276 = vmatprep.subr.bf16.mxu0 0
        %1277 = vmatpush2.bf16.msra.mxu0 0
        %1278 = vmatprep.subr.bf16.mxu0 0
        %1279 = vmatpush2.bf16.msra.mxu0 0
        %1280 = vmatprep.subr.bf16.mxu0 0
        %1281 = vmatpush2.bf16.msra.mxu0 0
        %1282 = vmatprep.mubr.bf16.mxu0 0
        %1283 = vmatmul.mubr.bf16.gmra.mxu0 %v1201
        %v1284 = vpop.f32.mrf.mxu0
        %v1285 = vadd.f32 0.0, %v1284
        %v1286 = vpop.f32.mrf.mxu0
        %v1287 = vadd.f32 0.0, %v1286
        %v1288 = vpop.f32.mrf.mxu0
        %v1289 = vadd.f32 0.0, %v1288
        %v1290 = vpop.f32.mrf.mxu0
        %v1291 = vadd.f32 0.0, %v1290
        %1292 = vdwg.mxu0
        %1293 = vmatprep.subr.bf16.mxu0 %v1249
        %1294 = vmatpush1.bf16.msra.mxu0 %v1248
        %1295 = vmatprep.subr.bf16.mxu0 %v1245
        %1296 = vmatpush1.bf16.msra.mxu0 %v1244
        %1297 = vmatprep.subr.bf16.mxu0 %v1241
        %1298 = vmatpush1.bf16.msra.mxu0 %v1240
        %1299 = vmatprep.subr.bf16.mxu0 %v1237
        %1300 = vmatpush1.bf16.msra.mxu0 %v1236
        %1301 = vmatprep.subr.bf16.mxu0 %v1233
        %1302 = vmatpush1.bf16.msra.mxu0 %v1232
        %1303 = vmatprep.subr.bf16.mxu0 %v1229
        %1304 = vmatpush1.bf16.msra.mxu0 %v1228
        %1305 = vmatprep.subr.bf16.mxu0 %v1225
        %1306 = vmatpush1.bf16.msra.mxu0 %v1224
        %1307 = vmatprep.subr.bf16.mxu0 %v1221
        %1308 = vmatpush1.bf16.msra.mxu0 %v1220
        %1309 = vmatprep.subr.bf16.mxu0 0
        %1310 = vmatpush2.bf16.msra.mxu0 0
        %1311 = vmatprep.subr.bf16.mxu0 0
        %1312 = vmatpush2.bf16.msra.mxu0 0
        %1313 = vmatprep.subr.bf16.mxu0 0
        %1314 = vmatpush2.bf16.msra.mxu0 0
        %1315 = vmatprep.subr.bf16.mxu0 0
        %1316 = vmatpush2.bf16.msra.mxu0 0
        %1317 = vmatprep.subr.bf16.mxu0 0
        %1318 = vmatpush2.bf16.msra.mxu0 0
        %1319 = vmatprep.subr.bf16.mxu0 0
        %1320 = vmatpush2.bf16.msra.mxu0 0
        %1321 = vmatprep.subr.bf16.mxu0 0
        %1322 = vmatpush2.bf16.msra.mxu0 0
        %1323 = vmatprep.subr.bf16.mxu0 0
        %1324 = vmatpush2.bf16.msra.mxu0 0
        %1325 = vmatprep.mubr.bf16.mxu0 0
        %1326 = vmatmul.mubr.bf16.gmra.mxu0 %v1201
        %v1327 = vpop.f32.mrf.mxu0
        %v1328 = vadd.f32 0.0, %v1327
        %v1329 = vpop.f32.mrf.mxu0
        %v1330 = vadd.f32 0.0, %v1329
        %v1331 = vpop.f32.mrf.mxu0
        %v1332 = vadd.f32 0.0, %v1331
        %v1333 = vpop.f32.mrf.mxu0
        %v1334 = vadd.f32 0.0, %v1333
        %1335 = vdwg.mxu0
        %v1336 = vmul.f32 %v1285, %v686
        %v1337 = vmul.f32 %v1287, %v690
        %v1338 = vmul.f32 %v1328, %v694
        %v1339 = vmul.f32 %v1330, %v698
        %v1340 = vmul.f32 %v1289, %v686
        %v1341 = vmul.f32 %v1291, %v690
        %v1342 = vmul.f32 %v1332, %v694
        %v1343 = vmul.f32 %v1334, %v698
        %s1344 = scalar_lea.vmem %s255, 32 [#allocation10]
        %v1345 = vld [vmem:[%s1344] sm:$0xff]
        %v1346 = vld [vmem:[%s1344 + $0x8] sm:$0xff]
        %v1347 = vld [vmem:[%s1344 + $0x10] sm:$0xff]
        %v1348 = vld [vmem:[%s1344 + $0x18] sm:$0xff]
        %v1349 = vunpack.c.l.bf16 %v1345
        %v1350 = vunpack.c.h.bf16 %v1345
        %v1351 = vunpack.c.l.bf16 %v1346
        %v1352 = vunpack.c.h.bf16 %v1346
        %v1353 = vunpack.c.l.bf16 %v1347
        %v1354 = vunpack.c.h.bf16 %v1347
        %v1355 = vunpack.c.l.bf16 %v1348
        %v1356 = vunpack.c.h.bf16 %v1348
        %v1357 = vadd.f32 %v1336, %v1349
        %v1358 = vadd.f32 %v1337, %v1350
        %v1359 = vadd.f32 %v1338, %v1351
        %v1360 = vadd.f32 %v1339, %v1352
        %v1361 = vadd.f32 %v1340, %v1353
        %v1362 = vadd.f32 %v1341, %v1354
        %v1363 = vadd.f32 %v1342, %v1355
        %v1364 = vadd.f32 %v1343, %v1356
        %v1365 = vld [vmem:[#allocation6] sm:$0xff]
        %v1366 = vld [vmem:[#allocation6 + $0x8] sm:$0xff]
        %v1367 = vxor.u32 %v1357, 2147483648
        %v1368 = vxor.u32 %v1361, 2147483648
        %v1369 = vmul.f32 %v1367, 1.442695
        %v1370 = vpow.pop %v1369
        %v1371 = vmul.f32 %v1368, 1.442695
        %v1372 = vpow.pop %v1371
        %v1373 = vadd.f32 %v1370, 1.0
        %v1374 = vadd.f32 %v1372, 1.0
        %v1375 = vrcp.pop %v1373
        %v1376 = vmul.f32 1.0, %v1375
        %v1377 = vrcp.pop %v1374
        %v1378 = vmul.f32 1.0, %v1377
        %v1379 = vxor.u32 %v1358, 2147483648
        %v1380 = vxor.u32 %v1362, 2147483648
        %v1381 = vmul.f32 %v1379, 1.442695
        %v1382 = vpow.pop %v1381
        %v1383 = vmul.f32 %v1380, 1.442695
        %v1384 = vpow.pop %v1383
        %v1385 = vadd.f32 %v1382, 1.0
        %v1386 = vadd.f32 %v1384, 1.0
        %v1387 = vrcp.pop %v1385
        %v1388 = vmul.f32 1.0, %v1387
        %v1389 = vrcp.pop %v1386
        %v1390 = vmul.f32 1.0, %v1389
        %v1391 = vtanh.pop %v1359
        %v1392 = vtanh.pop %v1363
        %v1393 = vxor.u32 %v1360, 2147483648
        %v1394 = vxor.u32 %v1364, 2147483648
        %v1395 = vmul.f32 %v1393, 1.442695
        %v1396 = vpow.pop %v1395
        %v1397 = vmul.f32 %v1394, 1.442695
        %v1398 = vpow.pop %v1397
        %v1399 = vadd.f32 %v1396, 1.0
        %v1400 = vadd.f32 %v1398, 1.0
        %v1401 = vrcp.pop %v1399
        %v1402 = vmul.f32 1.0, %v1401
        %v1403 = vrcp.pop %v1400
        %v1404 = vmul.f32 1.0, %v1403
        %v1405 = vmul.f32 %v1388, %v1365
        %v1406 = vmul.f32 %v1390, %v1366
        %v1407 = vmul.f32 %v1376, %v1391
        %v1408 = vmul.f32 %v1378, %v1392
        %v1409 = vadd.f32 %v1405, %v1407
        %v1410 = vadd.f32 %v1406, %v1408
        %v1411 = vtanh.pop %v1409
        %v1412 = vtanh.pop %v1410
        %v1413 = vmul.f32 %v1402, %v1411
        %v1414 = vmul.f32 %v1404, %v1412
        %1415 = vst [vmem:[#allocation5] sm:$0xff] %v1413
        %1416 = vst [vmem:[#allocation5 + $0x8] sm:$0xff] %v1414
        %1417 = vst [vmem:[#allocation6] sm:$0xff] %v1409
        %1418 = vst [vmem:[#allocation6 + $0x8] sm:$0xff] %v1410
        %s1419 = scalar_lea.vmem %s264, 16 [#allocation13]
        %v1420 = vld [vmem:[%s1419] sm:$0xff]
        %v1421 = vld [vmem:[%s1419 + $0x8] sm:$0xff]
        %v1422 = vadd.f32 %v1413, %v1420
        %v1423 = vadd.f32 %v1414, %v1421
        %s1424 = scalar_lea.vmem %s273, 8 [#allocation15]
        %v1425 = vld [vmem:[%s1424] sm:$0xf]
        %v1426 = vld [vmem:[%s1424 + $0x4] sm:$0xf]
        %v1427 = vunpack.c.l.bf16 %v1425
        %v1428 = vunpack.c.l.bf16 %v1426
        %v1429 = vmul.f32 %v1422, %v1427
        %v1430 = vmul.f32 %v1423, %v1428
        %v1431 = vadd.f32 %v1191, %v799
        %v1432 = vadd.f32 %v1192, %v803
        %v1433 = vadd.f32 %v1193, %v807
        %v1434 = vadd.f32 %v1194, %v811
        %v1435 = vadd.f32 %v1195, %v799
        %v1436 = vadd.f32 %v1196, %v803
        %v1437 = vadd.f32 %v1197, %v807
        %v1438 = vadd.f32 %v1198, %v811
        %v1439 = vpack.c.bf16 %v1430, %v1429
        %v1440 = vld [vmem:[#allocation3] sm:$0xff]
        %v1441 = vld [vmem:[#allocation3 + $0x8] sm:$0xff]
        %v1442 = vld [vmem:[#allocation3 + $0x10] sm:$0xff]
        %v1443 = vld [vmem:[#allocation3 + $0x18] sm:$0xff]
        %v1444 = vld [vmem:[#allocation3 + $0x20] sm:$0xff]
        %v1445 = vld [vmem:[#allocation3 + $0x28] sm:$0xff]
        %v1446 = vld [vmem:[#allocation3 + $0x30] sm:$0xff]
        %v1447 = vld [vmem:[#allocation3 + $0x38] sm:$0xff]
        %v1448 = vld [vmem:[#allocation3 + $0x40] sm:$0xff]
        %v1449 = vld [vmem:[#allocation3 + $0x48] sm:$0xff]
        %v1450 = vld [vmem:[#allocation3 + $0x50] sm:$0xff]
        %v1451 = vld [vmem:[#allocation3 + $0x58] sm:$0xff]
        %v1452 = vld [vmem:[#allocation3 + $0x60] sm:$0xff]
        %v1453 = vld [vmem:[#allocation3 + $0x68] sm:$0xff]
        %v1454 = vld [vmem:[#allocation3 + $0x70] sm:$0xff]
        %v1455 = vld [vmem:[#allocation3 + $0x78] sm:$0xff]
        %v1456 = vunpack.c.l.s8.bf16 %v1440
        %v1457 = vunpack.c.l.s8.bf16 %v1441
        %v1458 = vunpack.c.l.s8.bf16 %v1442
        %v1459 = vunpack.c.l.s8.bf16 %v1443
        %v1460 = vunpack.c.h.s8.bf16 %v1440
        %v1461 = vunpack.c.h.s8.bf16 %v1441
        %v1462 = vunpack.c.h.s8.bf16 %v1442
        %v1463 = vunpack.c.h.s8.bf16 %v1443
        %v1464 = vunpack.c.l.s8.bf16 %v1444
        %v1465 = vunpack.c.l.s8.bf16 %v1445
        %v1466 = vunpack.c.l.s8.bf16 %v1446
        %v1467 = vunpack.c.l.s8.bf16 %v1447
        %v1468 = vunpack.c.h.s8.bf16 %v1444
        %v1469 = vunpack.c.h.s8.bf16 %v1445
        %v1470 = vunpack.c.h.s8.bf16 %v1446
        %v1471 = vunpack.c.h.s8.bf16 %v1447
        %v1472 = vunpack.c.l.s8.bf16 %v1448
        %v1473 = vunpack.c.l.s8.bf16 %v1449
        %v1474 = vunpack.c.l.s8.bf16 %v1450
        %v1475 = vunpack.c.l.s8.bf16 %v1451
        %v1476 = vunpack.c.h.s8.bf16 %v1448
        %v1477 = vunpack.c.h.s8.bf16 %v1449
        %v1478 = vunpack.c.h.s8.bf16 %v1450
        %v1479 = vunpack.c.h.s8.bf16 %v1451
        %v1480 = vunpack.c.l.s8.bf16 %v1452
        %v1481 = vunpack.c.l.s8.bf16 %v1453
        %v1482 = vunpack.c.l.s8.bf16 %v1454
        %v1483 = vunpack.c.l.s8.bf16 %v1455
        %v1484 = vunpack.c.h.s8.bf16 %v1452
        %v1485 = vunpack.c.h.s8.bf16 %v1453
        %v1486 = vunpack.c.h.s8.bf16 %v1454
        %v1487 = vunpack.c.h.s8.bf16 %v1455
        %1488 = vmatprep.subr.bf16.mxu0 %v1485
        %1489 = vmatpush1.bf16.msra.mxu0 %v1484
        %1490 = vmatprep.subr.bf16.mxu0 %v1481
        %1491 = vmatpush1.bf16.msra.mxu0 %v1480
        %1492 = vmatprep.subr.bf16.mxu0 %v1477
        %1493 = vmatpush1.bf16.msra.mxu0 %v1476
        %1494 = vmatprep.subr.bf16.mxu0 %v1473
        %1495 = vmatpush1.bf16.msra.mxu0 %v1472
        %1496 = vmatprep.subr.bf16.mxu0 %v1469
        %1497 = vmatpush1.bf16.msra.mxu0 %v1468
        %1498 = vmatprep.subr.bf16.mxu0 %v1465
        %1499 = vmatpush1.bf16.msra.mxu0 %v1464
        %1500 = vmatprep.subr.bf16.mxu0 %v1461
        %1501 = vmatpush1.bf16.msra.mxu0 %v1460
        %1502 = vmatprep.subr.bf16.mxu0 %v1457
        %1503 = vmatpush1.bf16.msra.mxu0 %v1456
        %1504 = vmatprep.subr.bf16.mxu0 0
        %1505 = vmatpush2.bf16.msra.mxu0 0
        %1506 = vmatprep.subr.bf16.mxu0 0
        %1507 = vmatpush2.bf16.msra.mxu0 0
        %1508 = vmatprep.subr.bf16.mxu0 0
        %1509 = vmatpush2.bf16.msra.mxu0 0
        %1510 = vmatprep.subr.bf16.mxu0 0
        %1511 = vmatpush2.bf16.msra.mxu0 0
        %1512 = vmatprep.subr.bf16.mxu0 0
        %1513 = vmatpush2.bf16.msra.mxu0 0
        %1514 = vmatprep.subr.bf16.mxu0 0
        %1515 = vmatpush2.bf16.msra.mxu0 0
        %1516 = vmatprep.subr.bf16.mxu0 0
        %1517 = vmatpush2.bf16.msra.mxu0 0
        %1518 = vmatprep.subr.bf16.mxu0 0
        %1519 = vmatpush2.bf16.msra.mxu0 0
        %1520 = vmatprep.mubr.bf16.mxu0 0
        %1521 = vmatmul.mubr.bf16.gmra.mxu0 %v1439
        %v1522 = vpop.f32.mrf.mxu0
        %v1523 = vadd.f32 0.0, %v1522
        %v1524 = vpop.f32.mrf.mxu0
        %v1525 = vadd.f32 0.0, %v1524
        %v1526 = vpop.f32.mrf.mxu0
        %v1527 = vadd.f32 0.0, %v1526
        %v1528 = vpop.f32.mrf.mxu0
        %v1529 = vadd.f32 0.0, %v1528
        %1530 = vdwg.mxu0
        %1531 = vmatprep.subr.bf16.mxu0 %v1487
        %1532 = vmatpush1.bf16.msra.mxu0 %v1486
        %1533 = vmatprep.subr.bf16.mxu0 %v1483
        %1534 = vmatpush1.bf16.msra.mxu0 %v1482
        %1535 = vmatprep.subr.bf16.mxu0 %v1479
        %1536 = vmatpush1.bf16.msra.mxu0 %v1478
        %1537 = vmatprep.subr.bf16.mxu0 %v1475
        %1538 = vmatpush1.bf16.msra.mxu0 %v1474
        %1539 = vmatprep.subr.bf16.mxu0 %v1471
        %1540 = vmatpush1.bf16.msra.mxu0 %v1470
        %1541 = vmatprep.subr.bf16.mxu0 %v1467
        %1542 = vmatpush1.bf16.msra.mxu0 %v1466
        %1543 = vmatprep.subr.bf16.mxu0 %v1463
        %1544 = vmatpush1.bf16.msra.mxu0 %v1462
        %1545 = vmatprep.subr.bf16.mxu0 %v1459
        %1546 = vmatpush1.bf16.msra.mxu0 %v1458
        %1547 = vmatprep.subr.bf16.mxu0 0
        %1548 = vmatpush2.bf16.msra.mxu0 0
        %1549 = vmatprep.subr.bf16.mxu0 0
        %1550 = vmatpush2.bf16.msra.mxu0 0
        %1551 = vmatprep.subr.bf16.mxu0 0
        %1552 = vmatpush2.bf16.msra.mxu0 0
        %1553 = vmatprep.subr.bf16.mxu0 0
        %1554 = vmatpush2.bf16.msra.mxu0 0
        %1555 = vmatprep.subr.bf16.mxu0 0
        %1556 = vmatpush2.bf16.msra.mxu0 0
        %1557 = vmatprep.subr.bf16.mxu0 0
        %1558 = vmatpush2.bf16.msra.mxu0 0
        %1559 = vmatprep.subr.bf16.mxu0 0
        %1560 = vmatpush2.bf16.msra.mxu0 0
        %1561 = vmatprep.subr.bf16.mxu0 0
        %1562 = vmatpush2.bf16.msra.mxu0 0
        %1563 = vmatprep.mubr.bf16.mxu0 0
        %1564 = vmatmul.mubr.bf16.gmra.mxu0 %v1439
        %v1565 = vpop.f32.mrf.mxu0
        %v1566 = vadd.f32 0.0, %v1565
        %v1567 = vpop.f32.mrf.mxu0
        %v1568 = vadd.f32 0.0, %v1567
        %v1569 = vpop.f32.mrf.mxu0
        %v1570 = vadd.f32 0.0, %v1569
        %v1571 = vpop.f32.mrf.mxu0
        %v1572 = vadd.f32 0.0, %v1571
        %1573 = vdwg.mxu0
        %v1574 = vmul.f32 %v1523, %v963
        %v1575 = vmul.f32 %v1525, %v967
        %v1576 = vmul.f32 %v1566, %v971
        %v1577 = vmul.f32 %v1568, %v975
        %v1578 = vmul.f32 %v1527, %v963
        %v1579 = vmul.f32 %v1529, %v967
        %v1580 = vmul.f32 %v1570, %v971
        %v1581 = vmul.f32 %v1572, %v975
        %v1582 = vadd.f32 %v1431, %v1574
        %v1583 = vadd.f32 %v1432, %v1575
        %v1584 = vadd.f32 %v1433, %v1576
        %v1585 = vadd.f32 %v1434, %v1577
        %v1586 = vadd.f32 %v1435, %v1578
        %v1587 = vadd.f32 %v1436, %v1579
        %v1588 = vadd.f32 %v1437, %v1580
        %v1589 = vadd.f32 %v1438, %v1581
        %v1590 = vld [vmem:[#allocation8] sm:$0xff]
        %v1591 = vld [vmem:[#allocation8 + $0x8] sm:$0xff]
        %v1592 = vxor.u32 %v1582, 2147483648
        %v1593 = vxor.u32 %v1586, 2147483648
        %v1594 = vmul.f32 %v1592, 1.442695
        %v1595 = vpow.pop %v1594
        %v1596 = vmul.f32 %v1593, 1.442695
        %v1597 = vpow.pop %v1596
        %v1598 = vadd.f32 %v1595, 1.0
        %v1599 = vadd.f32 %v1597, 1.0
        %v1600 = vrcp.pop %v1598
        %v1601 = vmul.f32 1.0, %v1600
        %v1602 = vrcp.pop %v1599
        %v1603 = vmul.f32 1.0, %v1602
        %v1604 = vxor.u32 %v1583, 2147483648
        %v1605 = vxor.u32 %v1587, 2147483648
        %v1606 = vmul.f32 %v1604, 1.442695
        %v1607 = vpow.pop %v1606
        %v1608 = vmul.f32 %v1605, 1.442695
        %v1609 = vpow.pop %v1608
        %v1610 = vadd.f32 %v1607, 1.0
        %v1611 = vadd.f32 %v1609, 1.0
        %v1612 = vrcp.pop %v1610
        %v1613 = vmul.f32 1.0, %v1612
        %v1614 = vrcp.pop %v1611
        %v1615 = vmul.f32 1.0, %v1614
        %v1616 = vtanh.pop %v1584
        %v1617 = vtanh.pop %v1588
        %v1618 = vxor.u32 %v1585, 2147483648
        %v1619 = vxor.u32 %v1589, 2147483648
        %v1620 = vmul.f32 %v1618, 1.442695
        %v1621 = vpow.pop %v1620
        %v1622 = vmul.f32 %v1619, 1.442695
        %v1623 = vpow.pop %v1622
        %v1624 = vadd.f32 %v1621, 1.0
        %v1625 = vadd.f32 %v1623, 1.0
        %v1626 = vrcp.pop %v1624
        %v1627 = vmul.f32 1.0, %v1626
        %v1628 = vrcp.pop %v1625
        %v1629 = vmul.f32 1.0, %v1628
        %v1630 = vmul.f32 %v1613, %v1590
        %v1631 = vmul.f32 %v1615, %v1591
        %v1632 = vmul.f32 %v1601, %v1616
        %v1633 = vmul.f32 %v1603, %v1617
        %v1634 = vadd.f32 %v1630, %v1632
        %v1635 = vadd.f32 %v1631, %v1633
        %v1636 = vtanh.pop %v1634
        %v1637 = vtanh.pop %v1635
        %v1638 = vmul.f32 %v1627, %v1636
        %v1639 = vmul.f32 %v1629, %v1637
        %1640 = vst [vmem:[#allocation7] sm:$0xff] %v1638
        %1641 = vst [vmem:[#allocation7 + $0x8] sm:$0xff] %v1639
        %1642 = vst [vmem:[#allocation8] sm:$0xff] %v1634
        %1643 = vst [vmem:[#allocation8 + $0x8] sm:$0xff] %v1635
        %v1644 = vadd.f32 %v1638, %v1422
        %v1645 = vadd.f32 %v1639, %v1423
        %s1646 = scalar_lea.vmem %s311, 16 [#allocation18]
        %1647 = vst [vmem:[%s1646] sm:$0xff] %v1644
        %1648 = vst [vmem:[%s1646 + $0x8] sm:$0xff] %v1645
        %v1649 = vld [vmem:[#allocation7] sm:$0xff]
        %v1650 = vld [vmem:[#allocation7 + $0x8] sm:$0xff]
        %v1651 = vpack.c.bf16 %v1650, %v1649
        %v1652 = vld [vmem:[#allocation4] sm:$0xff]
        %v1653 = vld [vmem:[#allocation4 + $0x8] sm:$0xff]
        %v1654 = vld [vmem:[#allocation4 + $0x10] sm:$0xff]
        %v1655 = vld [vmem:[#allocation4 + $0x18] sm:$0xff]
        %v1656 = vld [vmem:[#allocation4 + $0x20] sm:$0xff]
        %v1657 = vld [vmem:[#allocation4 + $0x28] sm:$0xff]
        %v1658 = vld [vmem:[#allocation4 + $0x30] sm:$0xff]
        %v1659 = vld [vmem:[#allocation4 + $0x38] sm:$0xff]
        %v1660 = vld [vmem:[#allocation4 + $0x40] sm:$0xff]
        %v1661 = vld [vmem:[#allocation4 + $0x48] sm:$0xff]
        %v1662 = vld [vmem:[#allocation4 + $0x50] sm:$0xff]
        %v1663 = vld [vmem:[#allocation4 + $0x58] sm:$0xff]
        %v1664 = vld [vmem:[#allocation4 + $0x60] sm:$0xff]
        %v1665 = vld [vmem:[#allocation4 + $0x68] sm:$0xff]
        %v1666 = vld [vmem:[#allocation4 + $0x70] sm:$0xff]
        %v1667 = vld [vmem:[#allocation4 + $0x78] sm:$0xff]
        %v1668 = vunpack.c.l.s8.bf16 %v1652
        %v1669 = vunpack.c.l.s8.bf16 %v1653
        %v1670 = vunpack.c.l.s8.bf16 %v1654
        %v1671 = vunpack.c.l.s8.bf16 %v1655
        %v1672 = vunpack.c.h.s8.bf16 %v1652
        %v1673 = vunpack.c.h.s8.bf16 %v1653
        %v1674 = vunpack.c.h.s8.bf16 %v1654
        %v1675 = vunpack.c.h.s8.bf16 %v1655
        %v1676 = vunpack.c.l.s8.bf16 %v1656
        %v1677 = vunpack.c.l.s8.bf16 %v1657
        %v1678 = vunpack.c.l.s8.bf16 %v1658
        %v1679 = vunpack.c.l.s8.bf16 %v1659
        %v1680 = vunpack.c.h.s8.bf16 %v1656
        %v1681 = vunpack.c.h.s8.bf16 %v1657
        %v1682 = vunpack.c.h.s8.bf16 %v1658
        %v1683 = vunpack.c.h.s8.bf16 %v1659
        %v1684 = vunpack.c.l.s8.bf16 %v1660
        %v1685 = vunpack.c.l.s8.bf16 %v1661
        %v1686 = vunpack.c.l.s8.bf16 %v1662
        %v1687 = vunpack.c.l.s8.bf16 %v1663
        %v1688 = vunpack.c.h.s8.bf16 %v1660
        %v1689 = vunpack.c.h.s8.bf16 %v1661
        %v1690 = vunpack.c.h.s8.bf16 %v1662
        %v1691 = vunpack.c.h.s8.bf16 %v1663
        %v1692 = vunpack.c.l.s8.bf16 %v1664
        %v1693 = vunpack.c.l.s8.bf16 %v1665
        %v1694 = vunpack.c.l.s8.bf16 %v1666
        %v1695 = vunpack.c.l.s8.bf16 %v1667
        %v1696 = vunpack.c.h.s8.bf16 %v1664
        %v1697 = vunpack.c.h.s8.bf16 %v1665
        %v1698 = vunpack.c.h.s8.bf16 %v1666
        %v1699 = vunpack.c.h.s8.bf16 %v1667
        %1700 = vmatprep.subr.bf16.mxu0 %v1697
        %1701 = vmatpush1.bf16.msra.mxu0 %v1696
        %1702 = vmatprep.subr.bf16.mxu0 %v1693
        %1703 = vmatpush1.bf16.msra.mxu0 %v1692
        %1704 = vmatprep.subr.bf16.mxu0 %v1689
        %1705 = vmatpush1.bf16.msra.mxu0 %v1688
        %1706 = vmatprep.subr.bf16.mxu0 %v1685
        %1707 = vmatpush1.bf16.msra.mxu0 %v1684
        %1708 = vmatprep.subr.bf16.mxu0 %v1681
        %1709 = vmatpush1.bf16.msra.mxu0 %v1680
        %1710 = vmatprep.subr.bf16.mxu0 %v1677
        %1711 = vmatpush1.bf16.msra.mxu0 %v1676
        %1712 = vmatprep.subr.bf16.mxu0 %v1673
        %1713 = vmatpush1.bf16.msra.mxu0 %v1672
        %1714 = vmatprep.subr.bf16.mxu0 %v1669
        %1715 = vmatpush1.bf16.msra.mxu0 %v1668
        %1716 = vmatprep.subr.bf16.mxu0 0
        %1717 = vmatpush2.bf16.msra.mxu0 0
        %1718 = vmatprep.subr.bf16.mxu0 0
        %1719 = vmatpush2.bf16.msra.mxu0 0
        %1720 = vmatprep.subr.bf16.mxu0 0
        %1721 = vmatpush2.bf16.msra.mxu0 0
        %1722 = vmatprep.subr.bf16.mxu0 0
        %1723 = vmatpush2.bf16.msra.mxu0 0
        %1724 = vmatprep.subr.bf16.mxu0 0
        %1725 = vmatpush2.bf16.msra.mxu0 0
        %1726 = vmatprep.subr.bf16.mxu0 0
        %1727 = vmatpush2.bf16.msra.mxu0 0
        %1728 = vmatprep.subr.bf16.mxu0 0
        %1729 = vmatpush2.bf16.msra.mxu0 0
        %1730 = vmatprep.subr.bf16.mxu0 0
        %1731 = vmatpush2.bf16.msra.mxu0 0
        %1732 = vmatprep.mubr.bf16.mxu0 0
        %1733 = vmatmul.mubr.bf16.gmra.mxu0 %v1651
        %v1734 = vpop.f32.mrf.mxu0
        %v1735 = vadd.f32 0.0, %v1734
        %v1736 = vpop.f32.mrf.mxu0
        %v1737 = vadd.f32 0.0, %v1736
        %v1738 = vpop.f32.mrf.mxu0
        %v1739 = vadd.f32 0.0, %v1738
        %v1740 = vpop.f32.mrf.mxu0
        %v1741 = vadd.f32 0.0, %v1740
        %1742 = vdwg.mxu0
        %1743 = vmatprep.subr.bf16.mxu0 %v1699
        %1744 = vmatpush1.bf16.msra.mxu0 %v1698
        %1745 = vmatprep.subr.bf16.mxu0 %v1695
        %1746 = vmatpush1.bf16.msra.mxu0 %v1694
        %1747 = vmatprep.subr.bf16.mxu0 %v1691
        %1748 = vmatpush1.bf16.msra.mxu0 %v1690
        %1749 = vmatprep.subr.bf16.mxu0 %v1687
        %1750 = vmatpush1.bf16.msra.mxu0 %v1686
        %1751 = vmatprep.subr.bf16.mxu0 %v1683
        %1752 = vmatpush1.bf16.msra.mxu0 %v1682
        %1753 = vmatprep.subr.bf16.mxu0 %v1679
        %1754 = vmatpush1.bf16.msra.mxu0 %v1678
        %1755 = vmatprep.subr.bf16.mxu0 %v1675
        %1756 = vmatpush1.bf16.msra.mxu0 %v1674
        %1757 = vmatprep.subr.bf16.mxu0 %v1671
        %1758 = vmatpush1.bf16.msra.mxu0 %v1670
        %1759 = vmatprep.subr.bf16.mxu0 0
        %1760 = vmatpush2.bf16.msra.mxu0 0
        %1761 = vmatprep.subr.bf16.mxu0 0
        %1762 = vmatpush2.bf16.msra.mxu0 0
        %1763 = vmatprep.subr.bf16.mxu0 0
        %1764 = vmatpush2.bf16.msra.mxu0 0
        %1765 = vmatprep.subr.bf16.mxu0 0
        %1766 = vmatpush2.bf16.msra.mxu0 0
        %1767 = vmatprep.subr.bf16.mxu0 0
        %1768 = vmatpush2.bf16.msra.mxu0 0
        %1769 = vmatprep.subr.bf16.mxu0 0
        %1770 = vmatpush2.bf16.msra.mxu0 0
        %1771 = vmatprep.subr.bf16.mxu0 0
        %1772 = vmatpush2.bf16.msra.mxu0 0
        %1773 = vmatprep.subr.bf16.mxu0 0
        %1774 = vmatpush2.bf16.msra.mxu0 0
        %1775 = vmatprep.mubr.bf16.mxu0 0
        %1776 = vmatmul.mubr.bf16.gmra.mxu0 %v1651
        %v1777 = vpop.f32.mrf.mxu0
        %v1778 = vadd.f32 0.0, %v1777
        %v1779 = vpop.f32.mrf.mxu0
        %v1780 = vadd.f32 0.0, %v1779
        %v1781 = vpop.f32.mrf.mxu0
        %v1782 = vadd.f32 0.0, %v1781
        %v1783 = vpop.f32.mrf.mxu0
        %v1784 = vadd.f32 0.0, %v1783
        %1785 = vdwg.mxu0
        %v1786 = vmul.f32 %v1735, %v520
        %v1787 = vmul.f32 %v1737, %v524
        %v1788 = vmul.f32 %v1778, %v528
        %v1789 = vmul.f32 %v1780, %v532
        %v1790 = vmul.f32 %v1739, %v520
        %v1791 = vmul.f32 %v1741, %v524
        %v1792 = vmul.f32 %v1782, %v528
        %v1793 = vmul.f32 %v1784, %v532
        %v1794 = vld [vmem:[#allocation5] sm:$0xff]
        %v1795 = vld [vmem:[#allocation5 + $0x8] sm:$0xff]
        %v1796 = vpack.c.bf16 %v1795, %v1794
        %v1797 = vld [vmem:[#allocation2] sm:$0xff]
        %v1798 = vld [vmem:[#allocation2 + $0x8] sm:$0xff]
        %v1799 = vld [vmem:[#allocation2 + $0x10] sm:$0xff]
        %v1800 = vld [vmem:[#allocation2 + $0x18] sm:$0xff]
        %v1801 = vld [vmem:[#allocation2 + $0x20] sm:$0xff]
        %v1802 = vld [vmem:[#allocation2 + $0x28] sm:$0xff]
        %v1803 = vld [vmem:[#allocation2 + $0x30] sm:$0xff]
        %v1804 = vld [vmem:[#allocation2 + $0x38] sm:$0xff]
        %v1805 = vld [vmem:[#allocation2 + $0x40] sm:$0xff]
        %v1806 = vld [vmem:[#allocation2 + $0x48] sm:$0xff]
        %v1807 = vld [vmem:[#allocation2 + $0x50] sm:$0xff]
        %v1808 = vld [vmem:[#allocation2 + $0x58] sm:$0xff]
        %v1809 = vld [vmem:[#allocation2 + $0x60] sm:$0xff]
        %v1810 = vld [vmem:[#allocation2 + $0x68] sm:$0xff]
        %v1811 = vld [vmem:[#allocation2 + $0x70] sm:$0xff]
        %v1812 = vld [vmem:[#allocation2 + $0x78] sm:$0xff]
        %v1813 = vunpack.c.l.s8.bf16 %v1797
        %v1814 = vunpack.c.l.s8.bf16 %v1798
        %v1815 = vunpack.c.l.s8.bf16 %v1799
        %v1816 = vunpack.c.l.s8.bf16 %v1800
        %v1817 = vunpack.c.h.s8.bf16 %v1797
        %v1818 = vunpack.c.h.s8.bf16 %v1798
        %v1819 = vunpack.c.h.s8.bf16 %v1799
        %v1820 = vunpack.c.h.s8.bf16 %v1800
        %v1821 = vunpack.c.l.s8.bf16 %v1801
        %v1822 = vunpack.c.l.s8.bf16 %v1802
        %v1823 = vunpack.c.l.s8.bf16 %v1803
        %v1824 = vunpack.c.l.s8.bf16 %v1804
        %v1825 = vunpack.c.h.s8.bf16 %v1801
        %v1826 = vunpack.c.h.s8.bf16 %v1802
        %v1827 = vunpack.c.h.s8.bf16 %v1803
        %v1828 = vunpack.c.h.s8.bf16 %v1804
        %v1829 = vunpack.c.l.s8.bf16 %v1805
        %v1830 = vunpack.c.l.s8.bf16 %v1806
        %v1831 = vunpack.c.l.s8.bf16 %v1807
        %v1832 = vunpack.c.l.s8.bf16 %v1808
        %v1833 = vunpack.c.h.s8.bf16 %v1805
        %v1834 = vunpack.c.h.s8.bf16 %v1806
        %v1835 = vunpack.c.h.s8.bf16 %v1807
        %v1836 = vunpack.c.h.s8.bf16 %v1808
        %v1837 = vunpack.c.l.s8.bf16 %v1809
        %v1838 = vunpack.c.l.s8.bf16 %v1810
        %v1839 = vunpack.c.l.s8.bf16 %v1811
        %v1840 = vunpack.c.l.s8.bf16 %v1812
        %v1841 = vunpack.c.h.s8.bf16 %v1809
        %v1842 = vunpack.c.h.s8.bf16 %v1810
        %v1843 = vunpack.c.h.s8.bf16 %v1811
        %v1844 = vunpack.c.h.s8.bf16 %v1812
        %1845 = vmatprep.subr.bf16.mxu0 %v1842
        %1846 = vmatpush1.bf16.msra.mxu0 %v1841
        %1847 = vmatprep.subr.bf16.mxu0 %v1838
        %1848 = vmatpush1.bf16.msra.mxu0 %v1837
        %1849 = vmatprep.subr.bf16.mxu0 %v1834
        %1850 = vmatpush1.bf16.msra.mxu0 %v1833
        %1851 = vmatprep.subr.bf16.mxu0 %v1830
        %1852 = vmatpush1.bf16.msra.mxu0 %v1829
        %1853 = vmatprep.subr.bf16.mxu0 %v1826
        %1854 = vmatpush1.bf16.msra.mxu0 %v1825
        %1855 = vmatprep.subr.bf16.mxu0 %v1822
        %1856 = vmatpush1.bf16.msra.mxu0 %v1821
        %1857 = vmatprep.subr.bf16.mxu0 %v1818
        %1858 = vmatpush1.bf16.msra.mxu0 %v1817
        %1859 = vmatprep.subr.bf16.mxu0 %v1814
        %1860 = vmatpush1.bf16.msra.mxu0 %v1813
        %1861 = vmatprep.subr.bf16.mxu0 0
        %1862 = vmatpush2.bf16.msra.mxu0 0
        %1863 = vmatprep.subr.bf16.mxu0 0
        %1864 = vmatpush2.bf16.msra.mxu0 0
        %1865 = vmatprep.subr.bf16.mxu0 0
        %1866 = vmatpush2.bf16.msra.mxu0 0
        %1867 = vmatprep.subr.bf16.mxu0 0
        %1868 = vmatpush2.bf16.msra.mxu0 0
        %1869 = vmatprep.subr.bf16.mxu0 0
        %1870 = vmatpush2.bf16.msra.mxu0 0
        %1871 = vmatprep.subr.bf16.mxu0 0
        %1872 = vmatpush2.bf16.msra.mxu0 0
        %1873 = vmatprep.subr.bf16.mxu0 0
        %1874 = vmatpush2.bf16.msra.mxu0 0
        %1875 = vmatprep.subr.bf16.mxu0 0
        %1876 = vmatpush2.bf16.msra.mxu0 0
        %1877 = vmatprep.mubr.bf16.mxu0 0
        %1878 = vmatmul.mubr.bf16.gmra.mxu0 %v1796
        %v1879 = vpop.f32.mrf.mxu0
        %v1880 = vadd.f32 0.0, %v1879
        %v1881 = vpop.f32.mrf.mxu0
        %v1882 = vadd.f32 0.0, %v1881
        %v1883 = vpop.f32.mrf.mxu0
        %v1884 = vadd.f32 0.0, %v1883
        %v1885 = vpop.f32.mrf.mxu0
        %v1886 = vadd.f32 0.0, %v1885
        %1887 = vdwg.mxu0
        %1888 = vmatprep.subr.bf16.mxu0 %v1844
        %1889 = vmatpush1.bf16.msra.mxu0 %v1843
        %1890 = vmatprep.subr.bf16.mxu0 %v1840
        %1891 = vmatpush1.bf16.msra.mxu0 %v1839
        %1892 = vmatprep.subr.bf16.mxu0 %v1836
        %1893 = vmatpush1.bf16.msra.mxu0 %v1835
        %1894 = vmatprep.subr.bf16.mxu0 %v1832
        %1895 = vmatpush1.bf16.msra.mxu0 %v1831
        %1896 = vmatprep.subr.bf16.mxu0 %v1828
        %1897 = vmatpush1.bf16.msra.mxu0 %v1827
        %1898 = vmatprep.subr.bf16.mxu0 %v1824
        %1899 = vmatpush1.bf16.msra.mxu0 %v1823
        %1900 = vmatprep.subr.bf16.mxu0 %v1820
        %1901 = vmatpush1.bf16.msra.mxu0 %v1819
        %1902 = vmatprep.subr.bf16.mxu0 %v1816
        %1903 = vmatpush1.bf16.msra.mxu0 %v1815
        %1904 = vmatprep.subr.bf16.mxu0 0
        %1905 = vmatpush2.bf16.msra.mxu0 0
        %1906 = vmatprep.subr.bf16.mxu0 0
        %1907 = vmatpush2.bf16.msra.mxu0 0
        %1908 = vmatprep.subr.bf16.mxu0 0
        %1909 = vmatpush2.bf16.msra.mxu0 0
        %1910 = vmatprep.subr.bf16.mxu0 0
        %1911 = vmatpush2.bf16.msra.mxu0 0
        %1912 = vmatprep.subr.bf16.mxu0 0
        %1913 = vmatpush2.bf16.msra.mxu0 0
        %1914 = vmatprep.subr.bf16.mxu0 0
        %1915 = vmatpush2.bf16.msra.mxu0 0
        %1916 = vmatprep.subr.bf16.mxu0 0
        %1917 = vmatpush2.bf16.msra.mxu0 0
        %1918 = vmatprep.subr.bf16.mxu0 0
        %1919 = vmatpush2.bf16.msra.mxu0 0
        %1920 = vmatprep.mubr.bf16.mxu0 0
        %1921 = vmatmul.mubr.bf16.gmra.mxu0 %v1796
        %v1922 = vpop.f32.mrf.mxu0
        %v1923 = vadd.f32 0.0, %v1922
        %v1924 = vpop.f32.mrf.mxu0
        %v1925 = vadd.f32 0.0, %v1924
        %v1926 = vpop.f32.mrf.mxu0
        %v1927 = vadd.f32 0.0, %v1926
        %v1928 = vpop.f32.mrf.mxu0
        %v1929 = vadd.f32 0.0, %v1928
        %1930 = vdwg.mxu0
        %v1931 = vmul.f32 %v1880, %v686
        %v1932 = vmul.f32 %v1882, %v690
        %v1933 = vmul.f32 %v1923, %v694
        %v1934 = vmul.f32 %v1925, %v698
        %v1935 = vmul.f32 %v1884, %v686
        %v1936 = vmul.f32 %v1886, %v690
        %v1937 = vmul.f32 %v1927, %v694
        %v1938 = vmul.f32 %v1929, %v698
        %s1939 = scalar_lea.vmem %s255, 64 [#allocation10]
        %v1940 = vld [vmem:[%s1939] sm:$0xff]
        %v1941 = vld [vmem:[%s1939 + $0x8] sm:$0xff]
        %v1942 = vld [vmem:[%s1939 + $0x10] sm:$0xff]
        %v1943 = vld [vmem:[%s1939 + $0x18] sm:$0xff]
        %v1944 = vunpack.c.l.bf16 %v1940
        %v1945 = vunpack.c.h.bf16 %v1940
        %v1946 = vunpack.c.l.bf16 %v1941
        %v1947 = vunpack.c.h.bf16 %v1941
        %v1948 = vunpack.c.l.bf16 %v1942
        %v1949 = vunpack.c.h.bf16 %v1942
        %v1950 = vunpack.c.l.bf16 %v1943
        %v1951 = vunpack.c.h.bf16 %v1943
        %v1952 = vadd.f32 %v1931, %v1944
        %v1953 = vadd.f32 %v1932, %v1945
        %v1954 = vadd.f32 %v1933, %v1946
        %v1955 = vadd.f32 %v1934, %v1947
        %v1956 = vadd.f32 %v1935, %v1948
        %v1957 = vadd.f32 %v1936, %v1949
        %v1958 = vadd.f32 %v1937, %v1950
        %v1959 = vadd.f32 %v1938, %v1951
        %v1960 = vld [vmem:[#allocation6] sm:$0xff]
        %v1961 = vld [vmem:[#allocation6 + $0x8] sm:$0xff]
        %v1962 = vxor.u32 %v1952, 2147483648
        %v1963 = vxor.u32 %v1956, 2147483648
        %v1964 = vmul.f32 %v1962, 1.442695
        %v1965 = vpow.pop %v1964
        %v1966 = vmul.f32 %v1963, 1.442695
        %v1967 = vpow.pop %v1966
        %v1968 = vadd.f32 %v1965, 1.0
        %v1969 = vadd.f32 %v1967, 1.0
        %v1970 = vrcp.pop %v1968
        %v1971 = vmul.f32 1.0, %v1970
        %v1972 = vrcp.pop %v1969
        %v1973 = vmul.f32 1.0, %v1972
        %v1974 = vxor.u32 %v1953, 2147483648
        %v1975 = vxor.u32 %v1957, 2147483648
        %v1976 = vmul.f32 %v1974, 1.442695
        %v1977 = vpow.pop %v1976
        %v1978 = vmul.f32 %v1975, 1.442695
        %v1979 = vpow.pop %v1978
        %v1980 = vadd.f32 %v1977, 1.0
        %v1981 = vadd.f32 %v1979, 1.0
        %v1982 = vrcp.pop %v1980
        %v1983 = vmul.f32 1.0, %v1982
        %v1984 = vrcp.pop %v1981
        %v1985 = vmul.f32 1.0, %v1984
        %v1986 = vtanh.pop %v1954
        %v1987 = vtanh.pop %v1958
        %v1988 = vxor.u32 %v1955, 2147483648
        %v1989 = vxor.u32 %v1959, 2147483648
        %v1990 = vmul.f32 %v1988, 1.442695
        %v1991 = vpow.pop %v1990
        %v1992 = vmul.f32 %v1989, 1.442695
        %v1993 = vpow.pop %v1992
        %v1994 = vadd.f32 %v1991, 1.0
        %v1995 = vadd.f32 %v1993, 1.0
        %v1996 = vrcp.pop %v1994
        %v1997 = vmul.f32 1.0, %v1996
        %v1998 = vrcp.pop %v1995
        %v1999 = vmul.f32 1.0, %v1998
        %v2000 = vmul.f32 %v1983, %v1960
        %v2001 = vmul.f32 %v1985, %v1961
        %v2002 = vmul.f32 %v1971, %v1986
        %v2003 = vmul.f32 %v1973, %v1987
        %v2004 = vadd.f32 %v2000, %v2002
        %v2005 = vadd.f32 %v2001, %v2003
        %v2006 = vtanh.pop %v2004
        %v2007 = vtanh.pop %v2005
        %v2008 = vmul.f32 %v1997, %v2006
        %v2009 = vmul.f32 %v1999, %v2007
        %2010 = vst [vmem:[#allocation5] sm:$0xff] %v2008
        %2011 = vst [vmem:[#allocation5 + $0x8] sm:$0xff] %v2009
        %2012 = vst [vmem:[#allocation6] sm:$0xff] %v2004
        %2013 = vst [vmem:[#allocation6 + $0x8] sm:$0xff] %v2005
        %s2014 = scalar_lea.vmem %s264, 32 [#allocation13]
        %v2015 = vld [vmem:[%s2014] sm:$0xff]
        %v2016 = vld [vmem:[%s2014 + $0x8] sm:$0xff]
        %v2017 = vadd.f32 %v2008, %v2015
        %v2018 = vadd.f32 %v2009, %v2016
        %s2019 = scalar_lea.vmem %s273, 16 [#allocation15]
        %v2020 = vld [vmem:[%s2019] sm:$0xf]
        %v2021 = vld [vmem:[%s2019 + $0x4] sm:$0xf]
        %v2022 = vunpack.c.l.bf16 %v2020
        %v2023 = vunpack.c.l.bf16 %v2021
        %v2024 = vmul.f32 %v2017, %v2022
        %v2025 = vmul.f32 %v2018, %v2023
        %v2026 = vadd.f32 %v1786, %v799
        %v2027 = vadd.f32 %v1787, %v803
        %v2028 = vadd.f32 %v1788, %v807
        %v2029 = vadd.f32 %v1789, %v811
        %v2030 = vadd.f32 %v1790, %v799
        %v2031 = vadd.f32 %v1791, %v803
        %v2032 = vadd.f32 %v1792, %v807
        %v2033 = vadd.f32 %v1793, %v811
        %v2034 = vpack.c.bf16 %v2025, %v2024
        %v2035 = vld [vmem:[#allocation3] sm:$0xff]
        %v2036 = vld [vmem:[#allocation3 + $0x8] sm:$0xff]
        %v2037 = vld [vmem:[#allocation3 + $0x10] sm:$0xff]
        %v2038 = vld [vmem:[#allocation3 + $0x18] sm:$0xff]
        %v2039 = vld [vmem:[#allocation3 + $0x20] sm:$0xff]
        %v2040 = vld [vmem:[#allocation3 + $0x28] sm:$0xff]
        %v2041 = vld [vmem:[#allocation3 + $0x30] sm:$0xff]
        %v2042 = vld [vmem:[#allocation3 + $0x38] sm:$0xff]
        %v2043 = vld [vmem:[#allocation3 + $0x40] sm:$0xff]
        %v2044 = vld [vmem:[#allocation3 + $0x48] sm:$0xff]
        %v2045 = vld [vmem:[#allocation3 + $0x50] sm:$0xff]
        %v2046 = vld [vmem:[#allocation3 + $0x58] sm:$0xff]
        %v2047 = vld [vmem:[#allocation3 + $0x60] sm:$0xff]
        %v2048 = vld [vmem:[#allocation3 + $0x68] sm:$0xff]
        %v2049 = vld [vmem:[#allocation3 + $0x70] sm:$0xff]
        %v2050 = vld [vmem:[#allocation3 + $0x78] sm:$0xff]
        %v2051 = vunpack.c.l.s8.bf16 %v2035
        %v2052 = vunpack.c.l.s8.bf16 %v2036
        %v2053 = vunpack.c.l.s8.bf16 %v2037
        %v2054 = vunpack.c.l.s8.bf16 %v2038
        %v2055 = vunpack.c.h.s8.bf16 %v2035
        %v2056 = vunpack.c.h.s8.bf16 %v2036
        %v2057 = vunpack.c.h.s8.bf16 %v2037
        %v2058 = vunpack.c.h.s8.bf16 %v2038
        %v2059 = vunpack.c.l.s8.bf16 %v2039
        %v2060 = vunpack.c.l.s8.bf16 %v2040
        %v2061 = vunpack.c.l.s8.bf16 %v2041
        %v2062 = vunpack.c.l.s8.bf16 %v2042
        %v2063 = vunpack.c.h.s8.bf16 %v2039
        %v2064 = vunpack.c.h.s8.bf16 %v2040
        %v2065 = vunpack.c.h.s8.bf16 %v2041
        %v2066 = vunpack.c.h.s8.bf16 %v2042
        %v2067 = vunpack.c.l.s8.bf16 %v2043
        %v2068 = vunpack.c.l.s8.bf16 %v2044
        %v2069 = vunpack.c.l.s8.bf16 %v2045
        %v2070 = vunpack.c.l.s8.bf16 %v2046
        %v2071 = vunpack.c.h.s8.bf16 %v2043
        %v2072 = vunpack.c.h.s8.bf16 %v2044
        %v2073 = vunpack.c.h.s8.bf16 %v2045
        %v2074 = vunpack.c.h.s8.bf16 %v2046
        %v2075 = vunpack.c.l.s8.bf16 %v2047
        %v2076 = vunpack.c.l.s8.bf16 %v2048
        %v2077 = vunpack.c.l.s8.bf16 %v2049
        %v2078 = vunpack.c.l.s8.bf16 %v2050
        %v2079 = vunpack.c.h.s8.bf16 %v2047
        %v2080 = vunpack.c.h.s8.bf16 %v2048
        %v2081 = vunpack.c.h.s8.bf16 %v2049
        %v2082 = vunpack.c.h.s8.bf16 %v2050
        %2083 = vmatprep.subr.bf16.mxu0 %v2080
        %2084 = vmatpush1.bf16.msra.mxu0 %v2079
        %2085 = vmatprep.subr.bf16.mxu0 %v2076
        %2086 = vmatpush1.bf16.msra.mxu0 %v2075
        %2087 = vmatprep.subr.bf16.mxu0 %v2072
        %2088 = vmatpush1.bf16.msra.mxu0 %v2071
        %2089 = vmatprep.subr.bf16.mxu0 %v2068
        %2090 = vmatpush1.bf16.msra.mxu0 %v2067
        %2091 = vmatprep.subr.bf16.mxu0 %v2064
        %2092 = vmatpush1.bf16.msra.mxu0 %v2063
        %2093 = vmatprep.subr.bf16.mxu0 %v2060
        %2094 = vmatpush1.bf16.msra.mxu0 %v2059
        %2095 = vmatprep.subr.bf16.mxu0 %v2056
        %2096 = vmatpush1.bf16.msra.mxu0 %v2055
        %2097 = vmatprep.subr.bf16.mxu0 %v2052
        %2098 = vmatpush1.bf16.msra.mxu0 %v2051
        %2099 = vmatprep.subr.bf16.mxu0 0
        %2100 = vmatpush2.bf16.msra.mxu0 0
        %2101 = vmatprep.subr.bf16.mxu0 0
        %2102 = vmatpush2.bf16.msra.mxu0 0
        %2103 = vmatprep.subr.bf16.mxu0 0
        %2104 = vmatpush2.bf16.msra.mxu0 0
        %2105 = vmatprep.subr.bf16.mxu0 0
        %2106 = vmatpush2.bf16.msra.mxu0 0
        %2107 = vmatprep.subr.bf16.mxu0 0
        %2108 = vmatpush2.bf16.msra.mxu0 0
        %2109 = vmatprep.subr.bf16.mxu0 0
        %2110 = vmatpush2.bf16.msra.mxu0 0
        %2111 = vmatprep.subr.bf16.mxu0 0
        %2112 = vmatpush2.bf16.msra.mxu0 0
        %2113 = vmatprep.subr.bf16.mxu0 0
        %2114 = vmatpush2.bf16.msra.mxu0 0
        %2115 = vmatprep.mubr.bf16.mxu0 0
        %2116 = vmatmul.mubr.bf16.gmra.mxu0 %v2034
        %v2117 = vpop.f32.mrf.mxu0
        %v2118 = vadd.f32 0.0, %v2117
        %v2119 = vpop.f32.mrf.mxu0
        %v2120 = vadd.f32 0.0, %v2119
        %v2121 = vpop.f32.mrf.mxu0
        %v2122 = vadd.f32 0.0, %v2121
        %v2123 = vpop.f32.mrf.mxu0
        %v2124 = vadd.f32 0.0, %v2123
        %2125 = vdwg.mxu0
        %2126 = vmatprep.subr.bf16.mxu0 %v2082
        %2127 = vmatpush1.bf16.msra.mxu0 %v2081
        %2128 = vmatprep.subr.bf16.mxu0 %v2078
        %2129 = vmatpush1.bf16.msra.mxu0 %v2077
        %2130 = vmatprep.subr.bf16.mxu0 %v2074
        %2131 = vmatpush1.bf16.msra.mxu0 %v2073
        %2132 = vmatprep.subr.bf16.mxu0 %v2070
        %2133 = vmatpush1.bf16.msra.mxu0 %v2069
        %2134 = vmatprep.subr.bf16.mxu0 %v2066
        %2135 = vmatpush1.bf16.msra.mxu0 %v2065
        %2136 = vmatprep.subr.bf16.mxu0 %v2062
        %2137 = vmatpush1.bf16.msra.mxu0 %v2061
        %2138 = vmatprep.subr.bf16.mxu0 %v2058
        %2139 = vmatpush1.bf16.msra.mxu0 %v2057
        %2140 = vmatprep.subr.bf16.mxu0 %v2054
        %2141 = vmatpush1.bf16.msra.mxu0 %v2053
        %2142 = vmatprep.subr.bf16.mxu0 0
        %2143 = vmatpush2.bf16.msra.mxu0 0
        %2144 = vmatprep.subr.bf16.mxu0 0
        %2145 = vmatpush2.bf16.msra.mxu0 0
        %2146 = vmatprep.subr.bf16.mxu0 0
        %2147 = vmatpush2.bf16.msra.mxu0 0
        %2148 = vmatprep.subr.bf16.mxu0 0
        %2149 = vmatpush2.bf16.msra.mxu0 0
        %2150 = vmatprep.subr.bf16.mxu0 0
        %2151 = vmatpush2.bf16.msra.mxu0 0
        %2152 = vmatprep.subr.bf16.mxu0 0
        %2153 = vmatpush2.bf16.msra.mxu0 0
        %2154 = vmatprep.subr.bf16.mxu0 0
        %2155 = vmatpush2.bf16.msra.mxu0 0
        %2156 = vmatprep.subr.bf16.mxu0 0
        %2157 = vmatpush2.bf16.msra.mxu0 0
        %2158 = vmatprep.mubr.bf16.mxu0 0
        %2159 = vmatmul.mubr.bf16.gmra.mxu0 %v2034
        %v2160 = vpop.f32.mrf.mxu0
        %v2161 = vadd.f32 0.0, %v2160
        %v2162 = vpop.f32.mrf.mxu0
        %v2163 = vadd.f32 0.0, %v2162
        %v2164 = vpop.f32.mrf.mxu0
        %v2165 = vadd.f32 0.0, %v2164
        %v2166 = vpop.f32.mrf.mxu0
        %v2167 = vadd.f32 0.0, %v2166
        %2168 = vdwg.mxu0
        %v2169 = vmul.f32 %v2118, %v963
        %v2170 = vmul.f32 %v2120, %v967
        %v2171 = vmul.f32 %v2161, %v971
        %v2172 = vmul.f32 %v2163, %v975
        %v2173 = vmul.f32 %v2122, %v963
        %v2174 = vmul.f32 %v2124, %v967
        %v2175 = vmul.f32 %v2165, %v971
        %v2176 = vmul.f32 %v2167, %v975
        %v2177 = vadd.f32 %v2026, %v2169
        %v2178 = vadd.f32 %v2027, %v2170
        %v2179 = vadd.f32 %v2028, %v2171
        %v2180 = vadd.f32 %v2029, %v2172
        %v2181 = vadd.f32 %v2030, %v2173
        %v2182 = vadd.f32 %v2031, %v2174
        %v2183 = vadd.f32 %v2032, %v2175
        %v2184 = vadd.f32 %v2033, %v2176
        %v2185 = vld [vmem:[#allocation8] sm:$0xff]
        %v2186 = vld [vmem:[#allocation8 + $0x8] sm:$0xff]
        %v2187 = vxor.u32 %v2177, 2147483648
        %v2188 = vxor.u32 %v2181, 2147483648
        %v2189 = vmul.f32 %v2187, 1.442695
        %v2190 = vpow.pop %v2189
        %v2191 = vmul.f32 %v2188, 1.442695
        %v2192 = vpow.pop %v2191
        %v2193 = vadd.f32 %v2190, 1.0
        %v2194 = vadd.f32 %v2192, 1.0
        %v2195 = vrcp.pop %v2193
        %v2196 = vmul.f32 1.0, %v2195
        %v2197 = vrcp.pop %v2194
        %v2198 = vmul.f32 1.0, %v2197
        %v2199 = vxor.u32 %v2178, 2147483648
        %v2200 = vxor.u32 %v2182, 2147483648
        %v2201 = vmul.f32 %v2199, 1.442695
        %v2202 = vpow.pop %v2201
        %v2203 = vmul.f32 %v2200, 1.442695
        %v2204 = vpow.pop %v2203
        %v2205 = vadd.f32 %v2202, 1.0
        %v2206 = vadd.f32 %v2204, 1.0
        %v2207 = vrcp.pop %v2205
        %v2208 = vmul.f32 1.0, %v2207
        %v2209 = vrcp.pop %v2206
        %v2210 = vmul.f32 1.0, %v2209
        %v2211 = vtanh.pop %v2179
        %v2212 = vtanh.pop %v2183
        %v2213 = vxor.u32 %v2180, 2147483648
        %v2214 = vxor.u32 %v2184, 2147483648
        %v2215 = vmul.f32 %v2213, 1.442695
        %v2216 = vpow.pop %v2215
        %v2217 = vmul.f32 %v2214, 1.442695
        %v2218 = vpow.pop %v2217
        %v2219 = vadd.f32 %v2216, 1.0
        %v2220 = vadd.f32 %v2218, 1.0
        %v2221 = vrcp.pop %v2219
        %v2222 = vmul.f32 1.0, %v2221
        %v2223 = vrcp.pop %v2220
        %v2224 = vmul.f32 1.0, %v2223
        %v2225 = vmul.f32 %v2208, %v2185
        %v2226 = vmul.f32 %v2210, %v2186
        %v2227 = vmul.f32 %v2196, %v2211
        %v2228 = vmul.f32 %v2198, %v2212
        %v2229 = vadd.f32 %v2225, %v2227
        %v2230 = vadd.f32 %v2226, %v2228
        %v2231 = vtanh.pop %v2229
        %v2232 = vtanh.pop %v2230
        %v2233 = vmul.f32 %v2222, %v2231
        %v2234 = vmul.f32 %v2224, %v2232
        %2235 = vst [vmem:[#allocation7] sm:$0xff] %v2233
        %2236 = vst [vmem:[#allocation7 + $0x8] sm:$0xff] %v2234
        %2237 = vst [vmem:[#allocation8] sm:$0xff] %v2229
        %2238 = vst [vmem:[#allocation8 + $0x8] sm:$0xff] %v2230
        %v2239 = vadd.f32 %v2233, %v2017
        %v2240 = vadd.f32 %v2234, %v2018
        %s2241 = scalar_lea.vmem %s311, 32 [#allocation18]
        %2242 = vst [vmem:[%s2241] sm:$0xff] %v2239
        %2243 = vst [vmem:[%s2241 + $0x8] sm:$0xff] %v2240
        %v2244 = vld [vmem:[#allocation7] sm:$0xff]
        %v2245 = vld [vmem:[#allocation7 + $0x8] sm:$0xff]
        %v2246 = vpack.c.bf16 %v2245, %v2244
        %v2247 = vld [vmem:[#allocation4] sm:$0xff]
        %v2248 = vld [vmem:[#allocation4 + $0x8] sm:$0xff]
        %v2249 = vld [vmem:[#allocation4 + $0x10] sm:$0xff]
        %v2250 = vld [vmem:[#allocation4 + $0x18] sm:$0xff]
        %v2251 = vld [vmem:[#allocation4 + $0x20] sm:$0xff]
        %v2252 = vld [vmem:[#allocation4 + $0x28] sm:$0xff]
        %v2253 = vld [vmem:[#allocation4 + $0x30] sm:$0xff]
        %v2254 = vld [vmem:[#allocation4 + $0x38] sm:$0xff]
        %v2255 = vld [vmem:[#allocation4 + $0x40] sm:$0xff]
        %v2256 = vld [vmem:[#allocation4 + $0x48] sm:$0xff]
        %v2257 = vld [vmem:[#allocation4 + $0x50] sm:$0xff]
        %v2258 = vld [vmem:[#allocation4 + $0x58] sm:$0xff]
        %v2259 = vld [vmem:[#allocation4 + $0x60] sm:$0xff]
        %v2260 = vld [vmem:[#allocation4 + $0x68] sm:$0xff]
        %v2261 = vld [vmem:[#allocation4 + $0x70] sm:$0xff]
        %v2262 = vld [vmem:[#allocation4 + $0x78] sm:$0xff]
        %v2263 = vunpack.c.l.s8.bf16 %v2247
        %v2264 = vunpack.c.l.s8.bf16 %v2248
        %v2265 = vunpack.c.l.s8.bf16 %v2249
        %v2266 = vunpack.c.l.s8.bf16 %v2250
        %v2267 = vunpack.c.h.s8.bf16 %v2247
        %v2268 = vunpack.c.h.s8.bf16 %v2248
        %v2269 = vunpack.c.h.s8.bf16 %v2249
        %v2270 = vunpack.c.h.s8.bf16 %v2250
        %v2271 = vunpack.c.l.s8.bf16 %v2251
        %v2272 = vunpack.c.l.s8.bf16 %v2252
        %v2273 = vunpack.c.l.s8.bf16 %v2253
        %v2274 = vunpack.c.l.s8.bf16 %v2254
        %v2275 = vunpack.c.h.s8.bf16 %v2251
        %v2276 = vunpack.c.h.s8.bf16 %v2252
        %v2277 = vunpack.c.h.s8.bf16 %v2253
        %v2278 = vunpack.c.h.s8.bf16 %v2254
        %v2279 = vunpack.c.l.s8.bf16 %v2255
        %v2280 = vunpack.c.l.s8.bf16 %v2256
        %v2281 = vunpack.c.l.s8.bf16 %v2257
        %v2282 = vunpack.c.l.s8.bf16 %v2258
        %v2283 = vunpack.c.h.s8.bf16 %v2255
        %v2284 = vunpack.c.h.s8.bf16 %v2256
        %v2285 = vunpack.c.h.s8.bf16 %v2257
        %v2286 = vunpack.c.h.s8.bf16 %v2258
        %v2287 = vunpack.c.l.s8.bf16 %v2259
        %v2288 = vunpack.c.l.s8.bf16 %v2260
        %v2289 = vunpack.c.l.s8.bf16 %v2261
        %v2290 = vunpack.c.l.s8.bf16 %v2262
        %v2291 = vunpack.c.h.s8.bf16 %v2259
        %v2292 = vunpack.c.h.s8.bf16 %v2260
        %v2293 = vunpack.c.h.s8.bf16 %v2261
        %v2294 = vunpack.c.h.s8.bf16 %v2262
        %2295 = vmatprep.subr.bf16.mxu0 %v2292
        %2296 = vmatpush1.bf16.msra.mxu0 %v2291
        %2297 = vmatprep.subr.bf16.mxu0 %v2288
        %2298 = vmatpush1.bf16.msra.mxu0 %v2287
        %2299 = vmatprep.subr.bf16.mxu0 %v2284
        %2300 = vmatpush1.bf16.msra.mxu0 %v2283
        %2301 = vmatprep.subr.bf16.mxu0 %v2280
        %2302 = vmatpush1.bf16.msra.mxu0 %v2279
        %2303 = vmatprep.subr.bf16.mxu0 %v2276
        %2304 = vmatpush1.bf16.msra.mxu0 %v2275
        %2305 = vmatprep.subr.bf16.mxu0 %v2272
        %2306 = vmatpush1.bf16.msra.mxu0 %v2271
        %2307 = vmatprep.subr.bf16.mxu0 %v2268
        %2308 = vmatpush1.bf16.msra.mxu0 %v2267
        %2309 = vmatprep.subr.bf16.mxu0 %v2264
        %2310 = vmatpush1.bf16.msra.mxu0 %v2263
        %2311 = vmatprep.subr.bf16.mxu0 0
        %2312 = vmatpush2.bf16.msra.mxu0 0
        %2313 = vmatprep.subr.bf16.mxu0 0
        %2314 = vmatpush2.bf16.msra.mxu0 0
        %2315 = vmatprep.subr.bf16.mxu0 0
        %2316 = vmatpush2.bf16.msra.mxu0 0
        %2317 = vmatprep.subr.bf16.mxu0 0
        %2318 = vmatpush2.bf16.msra.mxu0 0
        %2319 = vmatprep.subr.bf16.mxu0 0
        %2320 = vmatpush2.bf16.msra.mxu0 0
        %2321 = vmatprep.subr.bf16.mxu0 0
        %2322 = vmatpush2.bf16.msra.mxu0 0
        %2323 = vmatprep.subr.bf16.mxu0 0
        %2324 = vmatpush2.bf16.msra.mxu0 0
        %2325 = vmatprep.subr.bf16.mxu0 0
        %2326 = vmatpush2.bf16.msra.mxu0 0
        %2327 = vmatprep.mubr.bf16.mxu0 0
        %2328 = vmatmul.mubr.bf16.gmra.mxu0 %v2246
        %v2329 = vpop.f32.mrf.mxu0
        %v2330 = vadd.f32 0.0, %v2329
        %v2331 = vpop.f32.mrf.mxu0
        %v2332 = vadd.f32 0.0, %v2331
        %v2333 = vpop.f32.mrf.mxu0
        %v2334 = vadd.f32 0.0, %v2333
        %v2335 = vpop.f32.mrf.mxu0
        %v2336 = vadd.f32 0.0, %v2335
        %2337 = vdwg.mxu0
        %2338 = vmatprep.subr.bf16.mxu0 %v2294
        %2339 = vmatpush1.bf16.msra.mxu0 %v2293
        %2340 = vmatprep.subr.bf16.mxu0 %v2290
        %2341 = vmatpush1.bf16.msra.mxu0 %v2289
        %2342 = vmatprep.subr.bf16.mxu0 %v2286
        %2343 = vmatpush1.bf16.msra.mxu0 %v2285
        %2344 = vmatprep.subr.bf16.mxu0 %v2282
        %2345 = vmatpush1.bf16.msra.mxu0 %v2281
        %2346 = vmatprep.subr.bf16.mxu0 %v2278
        %2347 = vmatpush1.bf16.msra.mxu0 %v2277
        %2348 = vmatprep.subr.bf16.mxu0 %v2274
        %2349 = vmatpush1.bf16.msra.mxu0 %v2273
        %2350 = vmatprep.subr.bf16.mxu0 %v2270
        %2351 = vmatpush1.bf16.msra.mxu0 %v2269
        %2352 = vmatprep.subr.bf16.mxu0 %v2266
        %2353 = vmatpush1.bf16.msra.mxu0 %v2265
        %2354 = vmatprep.subr.bf16.mxu0 0
        %2355 = vmatpush2.bf16.msra.mxu0 0
        %2356 = vmatprep.subr.bf16.mxu0 0
        %2357 = vmatpush2.bf16.msra.mxu0 0
        %2358 = vmatprep.subr.bf16.mxu0 0
        %2359 = vmatpush2.bf16.msra.mxu0 0
        %2360 = vmatprep.subr.bf16.mxu0 0
        %2361 = vmatpush2.bf16.msra.mxu0 0
        %2362 = vmatprep.subr.bf16.mxu0 0
        %2363 = vmatpush2.bf16.msra.mxu0 0
        %2364 = vmatprep.subr.bf16.mxu0 0
        %2365 = vmatpush2.bf16.msra.mxu0 0
        %2366 = vmatprep.subr.bf16.mxu0 0
        %2367 = vmatpush2.bf16.msra.mxu0 0
        %2368 = vmatprep.subr.bf16.mxu0 0
        %2369 = vmatpush2.bf16.msra.mxu0 0
        %2370 = vmatprep.mubr.bf16.mxu0 0
        %2371 = vmatmul.mubr.bf16.gmra.mxu0 %v2246
        %v2372 = vpop.f32.mrf.mxu0
        %v2373 = vadd.f32 0.0, %v2372
        %v2374 = vpop.f32.mrf.mxu0
        %v2375 = vadd.f32 0.0, %v2374
        %v2376 = vpop.f32.mrf.mxu0
        %v2377 = vadd.f32 0.0, %v2376
        %v2378 = vpop.f32.mrf.mxu0
        %v2379 = vadd.f32 0.0, %v2378
        %2380 = vdwg.mxu0
        %v2381 = vmul.f32 %v2330, %v520
        %v2382 = vmul.f32 %v2332, %v524
        %v2383 = vmul.f32 %v2373, %v528
        %v2384 = vmul.f32 %v2375, %v532
        %v2385 = vmul.f32 %v2334, %v520
        %v2386 = vmul.f32 %v2336, %v524
        %v2387 = vmul.f32 %v2377, %v528
        %v2388 = vmul.f32 %v2379, %v532
        %v2389 = vld [vmem:[#allocation5] sm:$0xff]
        %v2390 = vld [vmem:[#allocation5 + $0x8] sm:$0xff]
        %v2391 = vpack.c.bf16 %v2390, %v2389
        %v2392 = vld [vmem:[#allocation2] sm:$0xff]
        %v2393 = vld [vmem:[#allocation2 + $0x8] sm:$0xff]
        %v2394 = vld [vmem:[#allocation2 + $0x10] sm:$0xff]
        %v2395 = vld [vmem:[#allocation2 + $0x18] sm:$0xff]
        %v2396 = vld [vmem:[#allocation2 + $0x20] sm:$0xff]
        %v2397 = vld [vmem:[#allocation2 + $0x28] sm:$0xff]
        %v2398 = vld [vmem:[#allocation2 + $0x30] sm:$0xff]
        %v2399 = vld [vmem:[#allocation2 + $0x38] sm:$0xff]
        %v2400 = vld [vmem:[#allocation2 + $0x40] sm:$0xff]
        %v2401 = vld [vmem:[#allocation2 + $0x48] sm:$0xff]
        %v2402 = vld [vmem:[#allocation2 + $0x50] sm:$0xff]
        %v2403 = vld [vmem:[#allocation2 + $0x58] sm:$0xff]
        %v2404 = vld [vmem:[#allocation2 + $0x60] sm:$0xff]
        %v2405 = vld [vmem:[#allocation2 + $0x68] sm:$0xff]
        %v2406 = vld [vmem:[#allocation2 + $0x70] sm:$0xff]
        %v2407 = vld [vmem:[#allocation2 + $0x78] sm:$0xff]
        %v2408 = vunpack.c.l.s8.bf16 %v2392
        %v2409 = vunpack.c.l.s8.bf16 %v2393
        %v2410 = vunpack.c.l.s8.bf16 %v2394
        %v2411 = vunpack.c.l.s8.bf16 %v2395
        %v2412 = vunpack.c.h.s8.bf16 %v2392
        %v2413 = vunpack.c.h.s8.bf16 %v2393
        %v2414 = vunpack.c.h.s8.bf16 %v2394
        %v2415 = vunpack.c.h.s8.bf16 %v2395
        %v2416 = vunpack.c.l.s8.bf16 %v2396
        %v2417 = vunpack.c.l.s8.bf16 %v2397
        %v2418 = vunpack.c.l.s8.bf16 %v2398
        %v2419 = vunpack.c.l.s8.bf16 %v2399
        %v2420 = vunpack.c.h.s8.bf16 %v2396
        %v2421 = vunpack.c.h.s8.bf16 %v2397
        %v2422 = vunpack.c.h.s8.bf16 %v2398
        %v2423 = vunpack.c.h.s8.bf16 %v2399
        %v2424 = vunpack.c.l.s8.bf16 %v2400
        %v2425 = vunpack.c.l.s8.bf16 %v2401
        %v2426 = vunpack.c.l.s8.bf16 %v2402
        %v2427 = vunpack.c.l.s8.bf16 %v2403
        %v2428 = vunpack.c.h.s8.bf16 %v2400
        %v2429 = vunpack.c.h.s8.bf16 %v2401
        %v2430 = vunpack.c.h.s8.bf16 %v2402
        %v2431 = vunpack.c.h.s8.bf16 %v2403
        %v2432 = vunpack.c.l.s8.bf16 %v2404
        %v2433 = vunpack.c.l.s8.bf16 %v2405
        %v2434 = vunpack.c.l.s8.bf16 %v2406
        %v2435 = vunpack.c.l.s8.bf16 %v2407
        %v2436 = vunpack.c.h.s8.bf16 %v2404
        %v2437 = vunpack.c.h.s8.bf16 %v2405
        %v2438 = vunpack.c.h.s8.bf16 %v2406
        %v2439 = vunpack.c.h.s8.bf16 %v2407
        %2440 = vmatprep.subr.bf16.mxu0 %v2437
        %2441 = vmatpush1.bf16.msra.mxu0 %v2436
        %2442 = vmatprep.subr.bf16.mxu0 %v2433
        %2443 = vmatpush1.bf16.msra.mxu0 %v2432
        %2444 = vmatprep.subr.bf16.mxu0 %v2429
        %2445 = vmatpush1.bf16.msra.mxu0 %v2428
        %2446 = vmatprep.subr.bf16.mxu0 %v2425
        %2447 = vmatpush1.bf16.msra.mxu0 %v2424
        %2448 = vmatprep.subr.bf16.mxu0 %v2421
        %2449 = vmatpush1.bf16.msra.mxu0 %v2420
        %2450 = vmatprep.subr.bf16.mxu0 %v2417
        %2451 = vmatpush1.bf16.msra.mxu0 %v2416
        %2452 = vmatprep.subr.bf16.mxu0 %v2413
        %2453 = vmatpush1.bf16.msra.mxu0 %v2412
        %2454 = vmatprep.subr.bf16.mxu0 %v2409
        %2455 = vmatpush1.bf16.msra.mxu0 %v2408
        %2456 = vmatprep.subr.bf16.mxu0 0
        %2457 = vmatpush2.bf16.msra.mxu0 0
        %2458 = vmatprep.subr.bf16.mxu0 0
        %2459 = vmatpush2.bf16.msra.mxu0 0
        %2460 = vmatprep.subr.bf16.mxu0 0
        %2461 = vmatpush2.bf16.msra.mxu0 0
        %2462 = vmatprep.subr.bf16.mxu0 0
        %2463 = vmatpush2.bf16.msra.mxu0 0
        %2464 = vmatprep.subr.bf16.mxu0 0
        %2465 = vmatpush2.bf16.msra.mxu0 0
        %2466 = vmatprep.subr.bf16.mxu0 0
        %2467 = vmatpush2.bf16.msra.mxu0 0
        %2468 = vmatprep.subr.bf16.mxu0 0
        %2469 = vmatpush2.bf16.msra.mxu0 0
        %2470 = vmatprep.subr.bf16.mxu0 0
        %2471 = vmatpush2.bf16.msra.mxu0 0
        %2472 = vmatprep.mubr.bf16.mxu0 0
        %2473 = vmatmul.mubr.bf16.gmra.mxu0 %v2391
        %v2474 = vpop.f32.mrf.mxu0
        %v2475 = vadd.f32 0.0, %v2474
        %v2476 = vpop.f32.mrf.mxu0
        %v2477 = vadd.f32 0.0, %v2476
        %v2478 = vpop.f32.mrf.mxu0
        %v2479 = vadd.f32 0.0, %v2478
        %v2480 = vpop.f32.mrf.mxu0
        %v2481 = vadd.f32 0.0, %v2480
        %2482 = vdwg.mxu0
        %2483 = vmatprep.subr.bf16.mxu0 %v2439
        %2484 = vmatpush1.bf16.msra.mxu0 %v2438
        %2485 = vmatprep.subr.bf16.mxu0 %v2435
        %2486 = vmatpush1.bf16.msra.mxu0 %v2434
        %2487 = vmatprep.subr.bf16.mxu0 %v2431
        %2488 = vmatpush1.bf16.msra.mxu0 %v2430
        %2489 = vmatprep.subr.bf16.mxu0 %v2427
        %2490 = vmatpush1.bf16.msra.mxu0 %v2426
        %2491 = vmatprep.subr.bf16.mxu0 %v2423
        %2492 = vmatpush1.bf16.msra.mxu0 %v2422
        %2493 = vmatprep.subr.bf16.mxu0 %v2419
        %2494 = vmatpush1.bf16.msra.mxu0 %v2418
        %2495 = vmatprep.subr.bf16.mxu0 %v2415
        %2496 = vmatpush1.bf16.msra.mxu0 %v2414
        %2497 = vmatprep.subr.bf16.mxu0 %v2411
        %2498 = vmatpush1.bf16.msra.mxu0 %v2410
        %2499 = vmatprep.subr.bf16.mxu0 0
        %2500 = vmatpush2.bf16.msra.mxu0 0
        %2501 = vmatprep.subr.bf16.mxu0 0
        %2502 = vmatpush2.bf16.msra.mxu0 0
        %2503 = vmatprep.subr.bf16.mxu0 0
        %2504 = vmatpush2.bf16.msra.mxu0 0
        %2505 = vmatprep.subr.bf16.mxu0 0
        %2506 = vmatpush2.bf16.msra.mxu0 0
        %2507 = vmatprep.subr.bf16.mxu0 0
        %2508 = vmatpush2.bf16.msra.mxu0 0
        %2509 = vmatprep.subr.bf16.mxu0 0
        %2510 = vmatpush2.bf16.msra.mxu0 0
        %2511 = vmatprep.subr.bf16.mxu0 0
        %2512 = vmatpush2.bf16.msra.mxu0 0
        %2513 = vmatprep.subr.bf16.mxu0 0
        %2514 = vmatpush2.bf16.msra.mxu0 0
        %2515 = vmatprep.mubr.bf16.mxu0 0
        %2516 = vmatmul.mubr.bf16.gmra.mxu0 %v2391
        %v2517 = vpop.f32.mrf.mxu0
        %v2518 = vadd.f32 0.0, %v2517
        %v2519 = vpop.f32.mrf.mxu0
        %v2520 = vadd.f32 0.0, %v2519
        %v2521 = vpop.f32.mrf.mxu0
        %v2522 = vadd.f32 0.0, %v2521
        %v2523 = vpop.f32.mrf.mxu0
        %v2524 = vadd.f32 0.0, %v2523
        %2525 = vdwg.mxu0
        %v2526 = vmul.f32 %v2475, %v686
        %v2527 = vmul.f32 %v2477, %v690
        %v2528 = vmul.f32 %v2518, %v694
        %v2529 = vmul.f32 %v2520, %v698
        %v2530 = vmul.f32 %v2479, %v686
        %v2531 = vmul.f32 %v2481, %v690
        %v2532 = vmul.f32 %v2522, %v694
        %v2533 = vmul.f32 %v2524, %v698
        %s2534 = scalar_lea.vmem %s255, 96 [#allocation10]
        %v2535 = vld [vmem:[%s2534] sm:$0xff]
        %v2536 = vld [vmem:[%s2534 + $0x8] sm:$0xff]
        %v2537 = vld [vmem:[%s2534 + $0x10] sm:$0xff]
        %v2538 = vld [vmem:[%s2534 + $0x18] sm:$0xff]
        %v2539 = vunpack.c.l.bf16 %v2535
        %v2540 = vunpack.c.h.bf16 %v2535
        %v2541 = vunpack.c.l.bf16 %v2536
        %v2542 = vunpack.c.h.bf16 %v2536
        %v2543 = vunpack.c.l.bf16 %v2537
        %v2544 = vunpack.c.h.bf16 %v2537
        %v2545 = vunpack.c.l.bf16 %v2538
        %v2546 = vunpack.c.h.bf16 %v2538
        %v2547 = vadd.f32 %v2526, %v2539
        %v2548 = vadd.f32 %v2527, %v2540
        %v2549 = vadd.f32 %v2528, %v2541
        %v2550 = vadd.f32 %v2529, %v2542
        %v2551 = vadd.f32 %v2530, %v2543
        %v2552 = vadd.f32 %v2531, %v2544
        %v2553 = vadd.f32 %v2532, %v2545
        %v2554 = vadd.f32 %v2533, %v2546
        %v2555 = vld [vmem:[#allocation6] sm:$0xff]
        %v2556 = vld [vmem:[#allocation6 + $0x8] sm:$0xff]
        %v2557 = vxor.u32 %v2547, 2147483648
        %v2558 = vxor.u32 %v2551, 2147483648
        %v2559 = vmul.f32 %v2557, 1.442695
        %v2560 = vpow.pop %v2559
        %v2561 = vmul.f32 %v2558, 1.442695
        %v2562 = vpow.pop %v2561
        %v2563 = vadd.f32 %v2560, 1.0
        %v2564 = vadd.f32 %v2562, 1.0
        %v2565 = vrcp.pop %v2563
        %v2566 = vmul.f32 1.0, %v2565
        %v2567 = vrcp.pop %v2564
        %v2568 = vmul.f32 1.0, %v2567
        %v2569 = vxor.u32 %v2548, 2147483648
        %v2570 = vxor.u32 %v2552, 2147483648
        %v2571 = vmul.f32 %v2569, 1.442695
        %v2572 = vpow.pop %v2571
        %v2573 = vmul.f32 %v2570, 1.442695
        %v2574 = vpow.pop %v2573
        %v2575 = vadd.f32 %v2572, 1.0
        %v2576 = vadd.f32 %v2574, 1.0
        %v2577 = vrcp.pop %v2575
        %v2578 = vmul.f32 1.0, %v2577
        %v2579 = vrcp.pop %v2576
        %v2580 = vmul.f32 1.0, %v2579
        %v2581 = vtanh.pop %v2549
        %v2582 = vtanh.pop %v2553
        %v2583 = vxor.u32 %v2550, 2147483648
        %v2584 = vxor.u32 %v2554, 2147483648
        %v2585 = vmul.f32 %v2583, 1.442695
        %v2586 = vpow.pop %v2585
        %v2587 = vmul.f32 %v2584, 1.442695
        %v2588 = vpow.pop %v2587
        %v2589 = vadd.f32 %v2586, 1.0
        %v2590 = vadd.f32 %v2588, 1.0
        %v2591 = vrcp.pop %v2589
        %v2592 = vmul.f32 1.0, %v2591
        %v2593 = vrcp.pop %v2590
        %v2594 = vmul.f32 1.0, %v2593
        %v2595 = vmul.f32 %v2578, %v2555
        %v2596 = vmul.f32 %v2580, %v2556
        %v2597 = vmul.f32 %v2566, %v2581
        %v2598 = vmul.f32 %v2568, %v2582
        %v2599 = vadd.f32 %v2595, %v2597
        %v2600 = vadd.f32 %v2596, %v2598
        %v2601 = vtanh.pop %v2599
        %v2602 = vtanh.pop %v2600
        %v2603 = vmul.f32 %v2592, %v2601
        %v2604 = vmul.f32 %v2594, %v2602
        %2605 = vst [vmem:[#allocation5] sm:$0xff] %v2603
        %2606 = vst [vmem:[#allocation5 + $0x8] sm:$0xff] %v2604
        %2607 = vst [vmem:[#allocation6] sm:$0xff] %v2599
        %2608 = vst [vmem:[#allocation6 + $0x8] sm:$0xff] %v2600
        %s2609 = scalar_lea.vmem %s264, 48 [#allocation13]
        %v2610 = vld [vmem:[%s2609] sm:$0xff]
        %v2611 = vld [vmem:[%s2609 + $0x8] sm:$0xff]
        %v2612 = vadd.f32 %v2603, %v2610
        %v2613 = vadd.f32 %v2604, %v2611
        %s2614 = scalar_lea.vmem %s273, 24 [#allocation15]
        %v2615 = vld [vmem:[%s2614] sm:$0xf]
        %v2616 = vld [vmem:[%s2614 + $0x4] sm:$0xf]
        %v2617 = vunpack.c.l.bf16 %v2615
        %v2618 = vunpack.c.l.bf16 %v2616
        %v2619 = vmul.f32 %v2612, %v2617
        %v2620 = vmul.f32 %v2613, %v2618
        %v2621 = vadd.f32 %v2381, %v799
        %v2622 = vadd.f32 %v2382, %v803
        %v2623 = vadd.f32 %v2383, %v807
        %v2624 = vadd.f32 %v2384, %v811
        %v2625 = vadd.f32 %v2385, %v799
        %v2626 = vadd.f32 %v2386, %v803
        %v2627 = vadd.f32 %v2387, %v807
        %v2628 = vadd.f32 %v2388, %v811
        %v2629 = vpack.c.bf16 %v2620, %v2619
        %v2630 = vld [vmem:[#allocation3] sm:$0xff]
        %v2631 = vld [vmem:[#allocation3 + $0x8] sm:$0xff]
        %v2632 = vld [vmem:[#allocation3 + $0x10] sm:$0xff]
        %v2633 = vld [vmem:[#allocation3 + $0x18] sm:$0xff]
        %v2634 = vld [vmem:[#allocation3 + $0x20] sm:$0xff]
        %v2635 = vld [vmem:[#allocation3 + $0x28] sm:$0xff]
        %v2636 = vld [vmem:[#allocation3 + $0x30] sm:$0xff]
        %v2637 = vld [vmem:[#allocation3 + $0x38] sm:$0xff]
        %v2638 = vld [vmem:[#allocation3 + $0x40] sm:$0xff]
        %v2639 = vld [vmem:[#allocation3 + $0x48] sm:$0xff]
        %v2640 = vld [vmem:[#allocation3 + $0x50] sm:$0xff]
        %v2641 = vld [vmem:[#allocation3 + $0x58] sm:$0xff]
        %v2642 = vld [vmem:[#allocation3 + $0x60] sm:$0xff]
        %v2643 = vld [vmem:[#allocation3 + $0x68] sm:$0xff]
        %v2644 = vld [vmem:[#allocation3 + $0x70] sm:$0xff]
        %v2645 = vld [vmem:[#allocation3 + $0x78] sm:$0xff]
        %v2646 = vunpack.c.l.s8.bf16 %v2630
        %v2647 = vunpack.c.l.s8.bf16 %v2631
        %v2648 = vunpack.c.l.s8.bf16 %v2632
        %v2649 = vunpack.c.l.s8.bf16 %v2633
        %v2650 = vunpack.c.h.s8.bf16 %v2630
        %v2651 = vunpack.c.h.s8.bf16 %v2631
        %v2652 = vunpack.c.h.s8.bf16 %v2632
        %v2653 = vunpack.c.h.s8.bf16 %v2633
        %v2654 = vunpack.c.l.s8.bf16 %v2634
        %v2655 = vunpack.c.l.s8.bf16 %v2635
        %v2656 = vunpack.c.l.s8.bf16 %v2636
        %v2657 = vunpack.c.l.s8.bf16 %v2637
        %v2658 = vunpack.c.h.s8.bf16 %v2634
        %v2659 = vunpack.c.h.s8.bf16 %v2635
        %v2660 = vunpack.c.h.s8.bf16 %v2636
        %v2661 = vunpack.c.h.s8.bf16 %v2637
        %v2662 = vunpack.c.l.s8.bf16 %v2638
        %v2663 = vunpack.c.l.s8.bf16 %v2639
        %v2664 = vunpack.c.l.s8.bf16 %v2640
        %v2665 = vunpack.c.l.s8.bf16 %v2641
        %v2666 = vunpack.c.h.s8.bf16 %v2638
        %v2667 = vunpack.c.h.s8.bf16 %v2639
        %v2668 = vunpack.c.h.s8.bf16 %v2640
        %v2669 = vunpack.c.h.s8.bf16 %v2641
        %v2670 = vunpack.c.l.s8.bf16 %v2642
        %v2671 = vunpack.c.l.s8.bf16 %v2643
        %v2672 = vunpack.c.l.s8.bf16 %v2644
        %v2673 = vunpack.c.l.s8.bf16 %v2645
        %v2674 = vunpack.c.h.s8.bf16 %v2642
        %v2675 = vunpack.c.h.s8.bf16 %v2643
        %v2676 = vunpack.c.h.s8.bf16 %v2644
        %v2677 = vunpack.c.h.s8.bf16 %v2645
        %2678 = vmatprep.subr.bf16.mxu0 %v2675
        %2679 = vmatpush1.bf16.msra.mxu0 %v2674
        %2680 = vmatprep.subr.bf16.mxu0 %v2671
        %2681 = vmatpush1.bf16.msra.mxu0 %v2670
        %2682 = vmatprep.subr.bf16.mxu0 %v2667
        %2683 = vmatpush1.bf16.msra.mxu0 %v2666
        %2684 = vmatprep.subr.bf16.mxu0 %v2663
        %2685 = vmatpush1.bf16.msra.mxu0 %v2662
        %2686 = vmatprep.subr.bf16.mxu0 %v2659
        %2687 = vmatpush1.bf16.msra.mxu0 %v2658
        %2688 = vmatprep.subr.bf16.mxu0 %v2655
        %2689 = vmatpush1.bf16.msra.mxu0 %v2654
        %2690 = vmatprep.subr.bf16.mxu0 %v2651
        %2691 = vmatpush1.bf16.msra.mxu0 %v2650
        %2692 = vmatprep.subr.bf16.mxu0 %v2647
        %2693 = vmatpush1.bf16.msra.mxu0 %v2646
        %2694 = vmatprep.subr.bf16.mxu0 0
        %2695 = vmatpush2.bf16.msra.mxu0 0
        %2696 = vmatprep.subr.bf16.mxu0 0
        %2697 = vmatpush2.bf16.msra.mxu0 0
        %2698 = vmatprep.subr.bf16.mxu0 0
        %2699 = vmatpush2.bf16.msra.mxu0 0
        %2700 = vmatprep.subr.bf16.mxu0 0
        %2701 = vmatpush2.bf16.msra.mxu0 0
        %2702 = vmatprep.subr.bf16.mxu0 0
        %2703 = vmatpush2.bf16.msra.mxu0 0
        %2704 = vmatprep.subr.bf16.mxu0 0
        %2705 = vmatpush2.bf16.msra.mxu0 0
        %2706 = vmatprep.subr.bf16.mxu0 0
        %2707 = vmatpush2.bf16.msra.mxu0 0
        %2708 = vmatprep.subr.bf16.mxu0 0
        %2709 = vmatpush2.bf16.msra.mxu0 0
        %2710 = vmatprep.mubr.bf16.mxu0 0
        %2711 = vmatmul.mubr.bf16.gmra.mxu0 %v2629
        %v2712 = vpop.f32.mrf.mxu0
        %v2713 = vadd.f32 0.0, %v2712
        %v2714 = vpop.f32.mrf.mxu0
        %v2715 = vadd.f32 0.0, %v2714
        %v2716 = vpop.f32.mrf.mxu0
        %v2717 = vadd.f32 0.0, %v2716
        %v2718 = vpop.f32.mrf.mxu0
        %v2719 = vadd.f32 0.0, %v2718
        %2720 = vdwg.mxu0
        %2721 = vmatprep.subr.bf16.mxu0 %v2677
        %2722 = vmatpush1.bf16.msra.mxu0 %v2676
        %2723 = vmatprep.subr.bf16.mxu0 %v2673
        %2724 = vmatpush1.bf16.msra.mxu0 %v2672
        %2725 = vmatprep.subr.bf16.mxu0 %v2669
        %2726 = vmatpush1.bf16.msra.mxu0 %v2668
        %2727 = vmatprep.subr.bf16.mxu0 %v2665
        %2728 = vmatpush1.bf16.msra.mxu0 %v2664
        %2729 = vmatprep.subr.bf16.mxu0 %v2661
        %2730 = vmatpush1.bf16.msra.mxu0 %v2660
        %2731 = vmatprep.subr.bf16.mxu0 %v2657
        %2732 = vmatpush1.bf16.msra.mxu0 %v2656
        %2733 = vmatprep.subr.bf16.mxu0 %v2653
        %2734 = vmatpush1.bf16.msra.mxu0 %v2652
        %2735 = vmatprep.subr.bf16.mxu0 %v2649
        %2736 = vmatpush1.bf16.msra.mxu0 %v2648
        %2737 = vmatprep.subr.bf16.mxu0 0
        %2738 = vmatpush2.bf16.msra.mxu0 0
        %2739 = vmatprep.subr.bf16.mxu0 0
        %2740 = vmatpush2.bf16.msra.mxu0 0
        %2741 = vmatprep.subr.bf16.mxu0 0
        %2742 = vmatpush2.bf16.msra.mxu0 0
        %2743 = vmatprep.subr.bf16.mxu0 0
        %2744 = vmatpush2.bf16.msra.mxu0 0
        %2745 = vmatprep.subr.bf16.mxu0 0
        %2746 = vmatpush2.bf16.msra.mxu0 0
        %2747 = vmatprep.subr.bf16.mxu0 0
        %2748 = vmatpush2.bf16.msra.mxu0 0
        %2749 = vmatprep.subr.bf16.mxu0 0
        %2750 = vmatpush2.bf16.msra.mxu0 0
        %2751 = vmatprep.subr.bf16.mxu0 0
        %2752 = vmatpush2.bf16.msra.mxu0 0
        %2753 = vmatprep.mubr.bf16.mxu0 0
        %2754 = vmatmul.mubr.bf16.gmra.mxu0 %v2629
        %v2755 = vpop.f32.mrf.mxu0
        %v2756 = vadd.f32 0.0, %v2755
        %v2757 = vpop.f32.mrf.mxu0
        %v2758 = vadd.f32 0.0, %v2757
        %v2759 = vpop.f32.mrf.mxu0
        %v2760 = vadd.f32 0.0, %v2759
        %v2761 = vpop.f32.mrf.mxu0
        %v2762 = vadd.f32 0.0, %v2761
        %2763 = vdwg.mxu0
        %v2764 = vmul.f32 %v2713, %v963
        %v2765 = vmul.f32 %v2715, %v967
        %v2766 = vmul.f32 %v2756, %v971
        %v2767 = vmul.f32 %v2758, %v975
        %v2768 = vmul.f32 %v2717, %v963
        %v2769 = vmul.f32 %v2719, %v967
        %v2770 = vmul.f32 %v2760, %v971
        %v2771 = vmul.f32 %v2762, %v975
        %v2772 = vadd.f32 %v2621, %v2764
        %v2773 = vadd.f32 %v2622, %v2765
        %v2774 = vadd.f32 %v2623, %v2766
        %v2775 = vadd.f32 %v2624, %v2767
        %v2776 = vadd.f32 %v2625, %v2768
        %v2777 = vadd.f32 %v2626, %v2769
        %v2778 = vadd.f32 %v2627, %v2770
        %v2779 = vadd.f32 %v2628, %v2771
        %v2780 = vld [vmem:[#allocation8] sm:$0xff]
        %v2781 = vld [vmem:[#allocation8 + $0x8] sm:$0xff]
        %v2782 = vxor.u32 %v2772, 2147483648
        %v2783 = vxor.u32 %v2776, 2147483648
        %v2784 = vmul.f32 %v2782, 1.442695
        %v2785 = vpow.pop %v2784
        %v2786 = vmul.f32 %v2783, 1.442695
        %v2787 = vpow.pop %v2786
        %v2788 = vadd.f32 %v2785, 1.0
        %v2789 = vadd.f32 %v2787, 1.0
        %v2790 = vrcp.pop %v2788
        %v2791 = vmul.f32 1.0, %v2790
        %v2792 = vrcp.pop %v2789
        %v2793 = vmul.f32 1.0, %v2792
        %v2794 = vxor.u32 %v2773, 2147483648
        %v2795 = vxor.u32 %v2777, 2147483648
        %v2796 = vmul.f32 %v2794, 1.442695
        %v2797 = vpow.pop %v2796
        %v2798 = vmul.f32 %v2795, 1.442695
        %v2799 = vpow.pop %v2798
        %v2800 = vadd.f32 %v2797, 1.0
        %v2801 = vadd.f32 %v2799, 1.0
        %v2802 = vrcp.pop %v2800
        %v2803 = vmul.f32 1.0, %v2802
        %v2804 = vrcp.pop %v2801
        %v2805 = vmul.f32 1.0, %v2804
        %v2806 = vtanh.pop %v2774
        %v2807 = vtanh.pop %v2778
        %v2808 = vxor.u32 %v2775, 2147483648
        %v2809 = vxor.u32 %v2779, 2147483648
        %v2810 = vmul.f32 %v2808, 1.442695
        %v2811 = vpow.pop %v2810
        %v2812 = vmul.f32 %v2809, 1.442695
        %v2813 = vpow.pop %v2812
        %v2814 = vadd.f32 %v2811, 1.0
        %v2815 = vadd.f32 %v2813, 1.0
        %v2816 = vrcp.pop %v2814
        %v2817 = vmul.f32 1.0, %v2816
        %v2818 = vrcp.pop %v2815
        %v2819 = vmul.f32 1.0, %v2818
        %v2820 = vmul.f32 %v2803, %v2780
        %v2821 = vmul.f32 %v2805, %v2781
        %v2822 = vmul.f32 %v2791, %v2806
        %v2823 = vmul.f32 %v2793, %v2807
        %v2824 = vadd.f32 %v2820, %v2822
        %v2825 = vadd.f32 %v2821, %v2823
        %v2826 = vtanh.pop %v2824
        %v2827 = vtanh.pop %v2825
        %v2828 = vmul.f32 %v2817, %v2826
        %v2829 = vmul.f32 %v2819, %v2827
        %2830 = vst [vmem:[#allocation7] sm:$0xff] %v2828
        %2831 = vst [vmem:[#allocation7 + $0x8] sm:$0xff] %v2829
        %2832 = vst [vmem:[#allocation8] sm:$0xff] %v2824
        %2833 = vst [vmem:[#allocation8 + $0x8] sm:$0xff] %v2825
        %v2834 = vadd.f32 %v2828, %v2612
        %v2835 = vadd.f32 %v2829, %v2613
        %s2836 = scalar_lea.vmem %s311, 48 [#allocation18]
        %2837 = vst [vmem:[%s2836] sm:$0xff] %v2834
        %2838 = vst [vmem:[%s2836 + $0x8] sm:$0xff] %v2835
        %s2839 = sand.u32 %s135, 1
        %s2840 = scalar_lea.sflag [#allocation12], %s2839
        %s2841 = sand.u32 %s135, 1
        %s2842 = smul.addr %s2841, 64
        %s2843 = scalar_lea.vmem [#allocation18], %s2842
        // Predicated region
        $region69: #{tpu_custom_call.1} parent=35 // pred_check
          %p2844 = pneg %p145
        $region70: #{tpu_custom_call.1} parent=35 // pred_check_branch
          %2846 = sbr.rel (%p2844) target = $region72
        $region71: #{tpu_custom_call.1} parent=35 // pred_region
          %s2847 = smul.u32 4, %s28
          %s2849 = ssub.s32 1024, 1024
          %2850 = vsyncadd %s2840, %s2849
          %s2851 = smul.addr %s2847, 2
          %s2852 = smul.addr %s2851, 128
          %s2853 = scalar_lea.hbm %s7, %s2852
          %s2854 = sshll.u32 %s2843, 4
          %s2855 = int_to_ptr.vmem [resolvable:$true] %s2854
          %2860 = dma.vmem_to_hbm [thread:$0]  %s2855, 1024, %s2853, %s2840, 128, 128, 8
        $region72: #{tpu_custom_call.1} parent=35 // pred_fallthru
          _
      $region36: #{tpu_custom_call.1} parent=5 // pred_fallthru
        _
      %p2861 = scmp.le.s32.totalorder 2, %s23
      // Predicated region
      $region73: #{tpu_custom_call.1} parent=5 // pred_check
        %p2862 = pneg %p2861
      $region74: #{tpu_custom_call.1} parent=5 // pred_check_branch
        %2864 = sbr.rel (%p2862) target = $region76
      $region75: #{tpu_custom_call.1} parent=5 // pred_region
        %s2865 = ssub.s32 %s23, 2
        // Predicated region
        $region77: #{tpu_custom_call.1} parent=75 // pred_check
          %p2866 = pneg %p151
        $region78: #{tpu_custom_call.1} parent=75 // pred_check_branch
          %2868 = sbr.rel (%p2866) target = $region80
        $region79: #{tpu_custom_call.1} parent=75 // pred_region
          %s2869 = sand.u32 %s136, 1
          %s2870 = scalar_lea.sflag [#allocation12], %s2869
          %s2871 = sand.u32 %s136, 1
          %s2872 = smul.addr %s2871, 64
          %s2873 = scalar_lea.vmem [#allocation18], %s2872
          %2874 = dma.done %s2870, 1024
        $region80: #{tpu_custom_call.1} parent=75 // pred_fallthru
          _
      $region76: #{tpu_custom_call.1} parent=5 // pred_fallthru
        _
    $region6: #{tpu_custom_call.1} parent=1 // loop_footer
      %s27 = sadd.s32 1, %s23
    $region7: #{tpu_custom_call.1} parent=1 // loop_footer_branch
      %22 = sbr.rel target = $region3
    $region8: #{tpu_custom_call.1} parent=1 // loop_exit
      _
    %2875 = vsyncpa [#allocation11], 1
    %s2876 = scalar_lea.sflag [#allocation11], 1
    %2877 = vsyncpa %s2876, 1
    %2878 = vsyncpa [#allocation14], 1
    %s2879 = scalar_lea.sflag [#allocation14], 1
    %2880 = vsyncpa %s2879, 1
    %2881 = vsyncpa [#allocation17], 1
    %2882 = vsyncpa [#allocation12], 1
    %s2883 = scalar_lea.sflag [#allocation12], 1
    %2884 = vsyncpa %s2883, 1
  %2885 = vsyncmov [#allocation9]
  %s2886 = vpop.sfrf %2885
  %p2887 = scmp.eq.s32.totalorder %s2886, 0
  %p2888 = pneg %p2887
  %2890 = shalt.err (%p2888)
  %s2891 = scalar_lea.sflag [#allocation9], 1
  %2892 = vsyncmov %s2891
  %s2893 = vpop.sfrf %2892
  %p2894 = scmp.eq.s32.totalorder %s2893, 0
  %p2895 = pneg %p2894
  %2897 = shalt.err (%p2895)
  %s2898 = scalar_lea.sflag [#allocation9], 2
  %2899 = vsyncmov %s2898
  %s2900 = vpop.sfrf %2899
  %p2901 = scmp.eq.s32.totalorder %s2900, 0
  %p2902 = pneg %p2901
  %2904 = shalt.err (%p2902)

</llo_original>
